<compile_context>
chip_gen: v6e
topology: v6e:2x2x1
jax: 0.10.0
libtpu: 0.0.40
codegen_flags: <defaults>
</compile_context>

<pallas_src>
import functools

import jax
import jax.numpy as jnp
from jax.experimental import pallas as pl
from jax.experimental.pallas import tpu as pltpu

_N_SH = 16  # spherical harmonics, degree 4


# ---------------------------------------------------------------------------
# Spherical harmonics (degree 4), returned as 16 separate (tn, 1) columns so
# the kernel never performs a lane-axis concat.
# TODO(synk): tcnn's SphericalHarmonics expects directions remapped to [0,1]
# (it maps back internally); this kernel takes unit directions in [-1,1]
# directly — remap in the wrapper if matching a tcnn-fed pipeline bit-exactly.
# ---------------------------------------------------------------------------
def _sh_deg4_components(d):
    x = d[:, 0:1]
    y = d[:, 1:2]
    z = d[:, 2:3]
    xx, yy, zz = x * x, y * y, z * z
    xy, yz, xz = x * y, y * z, x * z
    one = jnp.ones_like(x)
    return [
        0.28209479177387814 * one,
        -0.48860251190291987 * y,
        0.48860251190291987 * z,
        -0.48860251190291987 * x,
        1.0925484305920792 * xy,
        -1.0925484305920792 * yz,
        0.94617469575755997 * zz - 0.31539156525251999,
        -1.0925484305920792 * xz,
        0.54627421529603959 * (xx - yy),
        0.59004358992664352 * y * (-3.0 * xx + yy),
        2.8906114426405538 * xy * z,
        0.45704579946446572 * y * (1.0 - 5.0 * zz),
        0.3731763325901154 * z * (5.0 * zz - 3.0),
        0.45704579946446572 * x * (1.0 - 5.0 * zz),
        1.4453057213202769 * z * (xx - yy),
        0.59004358992664352 * x * (-xx + 3.0 * yy),
    ]


# ---------------------------------------------------------------------------
# Pallas kernel
# ---------------------------------------------------------------------------
def _rgb_kernel(viewdirs_ref, rest_ref, w1_sh_ref, w1_rest_ref, w2_ref, w3_ref,
                rgb_ref):
    # --- SH encoding folded straight into layer 1 (VPU broadcast FMAs) ---
    dirs = viewdirs_ref[...].astype(jnp.float32)              # (tn, 3)
    comps = _sh_deg4_components(dirs)                         # 16 x (tn, 1)
    w1_sh = w1_sh_ref[...]                                    # (16, hid) f32
    h = comps[0] * w1_sh[0:1, :]                              # (tn, hid)
    for i in range(1, _N_SH):
        h = h + comps[i] * w1_sh[i:i + 1, :]

    # --- [features | points | normal] contribution on the MXU
    #     (bf16 operands, f32 accumulation) ---
    rest = rest_ref[...].astype(jnp.bfloat16)                 # (tn, F+6)
    h = h + jnp.dot(rest, w1_rest_ref[...],
                    preferred_element_type=jnp.float32)

    # --- hidden layers: hid -> hid -> 3, ReLU, no bias ---
    h = jnp.maximum(h, 0.0)
    h = jnp.dot(h.astype(jnp.bfloat16), w2_ref[...],
                preferred_element_type=jnp.float32)
    h = jnp.maximum(h, 0.0)
    rgb = jnp.dot(h.astype(jnp.bfloat16), w3_ref[...],
                  preferred_element_type=jnp.float32)

    # --- color activation: sigmoid (EUP) ---
    # (tn, 3) rows -> masked partial stores; accepted (writes are ~12 B/ray
    # vs ~100 B/ray of reads; padding the output to 128 lanes would be worse).
    rgb_ref[...] = jax.nn.sigmoid(rgb).astype(rgb_ref.dtype)


# ---------------------------------------------------------------------------
# Wrapper
# ---------------------------------------------------------------------------
def _round_up(a, b):
    return ((a + b - 1) // b) * b


@functools.partial(jax.jit, static_argnames=("tile_n",))
def rgb_network_forward(viewdirs, features, points, normal, params, *,
                        tile_n=2048):
    """viewdirs/points/normal: (N, 3); features: (N, F). Returns (N, 3) f32.

    tile_n: rays per grid step. Default 2048 keeps the double-buffered,
    lane-padded tiles around ~10 MiB (fits all generations with the raised
    vmem limit; cap for v7x's 64 MiB physical VMEM). On v6e 4096-8192 is fine.
    """
    n = viewdirs.shape[0]
    w1, w2, w3 = params["w1"], params["w2"], params["w3"]
    n_in, hid = w1.shape
    feats_dim = features.shape[1]
    rest_dim = feats_dim + 3 + 3
    assert n_in == _N_SH + rest_dim

    # Pre-concatenate the non-SH inputs once in XLA (no in-kernel lane concat)
    # and split / cast w1 per input group to match.  Module concat order is
    # [viewdirs_enc, features, points, normal].
    rest = jnp.concatenate(
        [features.astype(jnp.float32),
         points.astype(jnp.float32),
         normal.astype(jnp.float32)], axis=-1)                # (N, F+6)
    w1_sh = w1[:_N_SH].astype(jnp.float32)                    # VPU path, f32
    w1_rest = w1[_N_SH:].astype(jnp.bfloat16)                 # MXU path, bf16
    w2b = w2.astype(jnp.bfloat16)
    w3b = w3.astype(jnp.bfloat16)

    # General N: shrink the tile (8-aligned) for tiny problems, then pad rays
    # up to a whole number of tiles; slice the padding off at the end.
    tile = min(tile_n, _round_up(n, 8))
    n_pad = _round_up(n, tile)
    if n_pad != n:
        pad_rows = ((0, n_pad - n), (0, 0))
        viewdirs = jnp.pad(viewdirs, pad_rows)
        rest = jnp.pad(rest, pad_rows)
    grid = (n_pad // tile,)

    def row_spec(c):
        return pl.BlockSpec((tile, c), lambda i: (i, 0))

    def full_spec(shape):
        return pl.BlockSpec(shape, lambda i: (0, 0))

    cost = pl.CostEstimate(
        flops=n_pad * (2 * (_N_SH * hid + rest_dim * hid + hid * hid + hid * 3)
                       + 64),
        transcendentals=n_pad * 3,
        bytes_accessed=4 * n_pad * (3 + rest_dim + 3)
        + 4 * w1_sh.size + 2 * (w1_rest.size + w2b.size + w3b.size),
    )

    out = pl.pallas_call(
        _rgb_kernel,
        out_shape=jax.ShapeDtypeStruct((n_pad, 3), jnp.float32),
        grid_spec=pltpu.PrefetchScalarGridSpec(
            num_scalar_prefetch=0,
            grid=grid,
            in_specs=[
                row_spec(3),                  # viewdirs
                row_spec(rest_dim),           # [features | points | normal]
                full_spec((_N_SH, hid)),      # w1 rows for SH coeffs (f32)
                full_spec((rest_dim, hid)),   # w1 rows for rest (bf16)
                full_spec((hid, hid)),        # w2 (bf16)
                full_spec((hid, 3)),          # w3 (bf16)
            ],
            out_specs=row_spec(3),
        ),
        compiler_params=pltpu.CompilerParams(
            # Single ray axis: shards across the two TensorCores on v7x,
            # near-neutral on v5e/v6e (1 TC).
            dimension_semantics=("parallel",),
            # Raise the scoped-VMEM default (16 MiB v5e / 32 MiB v6e,v7x)
            # while staying under v7x's 64 MiB physical VMEM.
            vmem_limit_bytes=48 * 1024 * 1024,
        ),
        cost_estimate=cost,
    )(viewdirs, rest, w1_sh, w1_rest, w2b, w3b)
    return out[:n]


def init_params(key, feats_dim, hidden=64):
    n_in = _N_SH + feats_dim + 3 + 3   # SH + feats + include_xyz + include_normal
    k1, k2, k3 = jax.random.split(key, 3)
    # Deterministic He-style init (bias=False, as in VanillaMLP).
    w1 = jax.random.normal(k1, (n_in, hidden), jnp.float32) * (2.0 / n_in) ** 0.5
    w2 = jax.random.normal(k2, (hidden, hidden), jnp.float32) * (2.0 / hidden) ** 0.5
    w3 = jax.random.normal(k3, (hidden, 3), jnp.float32) * (2.0 / hidden) ** 0.5
    return {"w1": w1, "w2": w2, "w3": w3}


# ---------------------------------------------------------------------------
# Pure-JAX f32 reference (module semantics) for the self-check
# ---------------------------------------------------------------------------
def _reference(viewdirs, features, points, normal, params):
    hi = jax.lax.Precision.HIGHEST
    sh = jnp.concatenate(_sh_deg4_components(viewdirs.astype(jnp.float32)),
                         axis=-1)
    h = jnp.concatenate([sh, features, points, normal], axis=-1)
    h = h.astype(jnp.float32)
    h = jnp.maximum(jnp.dot(h, params["w1"], precision=hi), 0.0)
    h = jnp.maximum(jnp.dot(h, params["w2"], precision=hi), 0.0)
    return jax.nn.sigmoid(jnp.dot(h, params["w3"], precision=hi))


if __name__ == "__main__":
    key = jax.random.PRNGKey(0)
    k_dir, k_feat, k_pts, k_nrm, k_par = jax.random.split(key, 5)

    N = 300          # deliberately NOT a tile multiple (exercises padding)
    FEATS_DIM = 16

    viewdirs = jax.random.normal(k_dir, (N, 3), jnp.float32)
    viewdirs = viewdirs / jnp.linalg.norm(viewdirs, axis=-1, keepdims=True)
    features = jax.random.normal(k_feat, (N, FEATS_DIM), jnp.float32)
    points = jax.random.normal(k_pts, (N, 3), jnp.float32)
    normal = jax.random.normal(k_nrm, (N, 3), jnp.float32)
    normal = normal / jnp.linalg.norm(normal, axis=-1, keepdims=True)

    params = init_params(k_par, FEATS_DIM)

    # Small tile for the smoke test (multi-step grid at tiny N); production
    # calls use the default tile_n=2048.
    rgb = rgb_network_forward(viewdirs, features, points, normal, params,
                              tile_n=128)
    jax.block_until_ready(rgb)

    ref = _reference(viewdirs, features, points, normal, params)
    assert rgb.shape == (N, 3) and rgb.dtype == jnp.float32
    err = float(jnp.max(jnp.abs(rgb - ref)))
    # bf16 MXU operands (f32 accumulation) vs a pure-f32 reference.
    assert err < 5e-2, f"mismatch vs reference: max abs err {err}"

    print("KERNEL_OK")
</pallas_src>

<mosaic_0001>
module attributes {stable_mosaic.version = 11 : i64} {
  func.func @_rgb_kernel(%arg0: i32, %arg1: memref<128x3xf32, #tpu.memory_space<vmem>>, %arg2: memref<128x22xf32, #tpu.memory_space<vmem>>, %arg3: memref<16x64xf32, #tpu.memory_space<vmem>>, %arg4: memref<22x64xbf16, #tpu.memory_space<vmem>>, %arg5: memref<64x64xbf16, #tpu.memory_space<vmem>>, %arg6: memref<64x3xbf16, #tpu.memory_space<vmem>>, %arg7: memref<128x3xf32, #tpu.memory_space<vmem>>) attributes {dimension_semantics = [#tpu.dimension_semantics<parallel>], iteration_bounds = array<i64: 3>, scalar_prefetch = 0 : i64, scratch_operands = 0 : i64, tpu.core_type = #tpu.core_type<tc>, window_params = [{transform_indices = @transform_0, window_bounds = array<i64: 128, 3>}, {transform_indices = @transform_1, window_bounds = array<i64: 128, 22>}, {pipeline_mode = #tpu.pipeline_mode<synchronous>, transform_indices = @transform_2, window_bounds = array<i64: 16, 64>}, {pipeline_mode = #tpu.pipeline_mode<synchronous>, transform_indices = @transform_3, window_bounds = array<i64: 22, 64>}, {pipeline_mode = #tpu.pipeline_mode<synchronous>, transform_indices = @transform_4, window_bounds = array<i64: 64, 64>}, {pipeline_mode = #tpu.pipeline_mode<synchronous>, transform_indices = @transform_5, window_bounds = array<i64: 64, 3>}, {transform_indices = @transform_6, window_bounds = array<i64: 128, 3>}]} {
    %c0 = arith.constant 0 : index
    %c0_0 = arith.constant 0 : index
    %0 = vector.load %arg1[%c0, %c0_0] : memref<128x3xf32, #tpu.memory_space<vmem>>, vector<128x3xf32>
    %1 = vector.extract_strided_slice %0 {offsets = [0, 0], sizes = [128, 1], strides = [1, 1]} : vector<128x3xf32> to vector<128x1xf32>
    %2 = vector.extract_strided_slice %0 {offsets = [0, 1], sizes = [128, 1], strides = [1, 1]} : vector<128x3xf32> to vector<128x1xf32>
    %3 = vector.extract_strided_slice %0 {offsets = [0, 2], sizes = [128, 1], strides = [1, 1]} : vector<128x3xf32> to vector<128x1xf32>
    %4 = arith.mulf %1, %1 : vector<128x1xf32>
    %5 = arith.mulf %2, %2 : vector<128x1xf32>
    %6 = arith.mulf %3, %3 : vector<128x1xf32>
    %7 = arith.mulf %1, %2 : vector<128x1xf32>
    %8 = arith.mulf %2, %3 : vector<128x1xf32>
    %9 = arith.mulf %1, %3 : vector<128x1xf32>
    %cst = arith.constant 1.000000e+00 : f32
    %10 = vector.broadcast %cst : f32 to vector<128x1xf32>
    %cst_1 = arith.constant 0.282094806 : f32
    %11 = vector.broadcast %cst_1 : f32 to vector<128x1xf32>
    %12 = arith.mulf %11, %10 : vector<128x1xf32>
    %cst_2 = arith.constant -0.488602519 : f32
    %13 = vector.broadcast %cst_2 : f32 to vector<128x1xf32>
    %14 = arith.mulf %13, %2 : vector<128x1xf32>
    %cst_3 = arith.constant 0.488602519 : f32
    %15 = vector.broadcast %cst_3 : f32 to vector<128x1xf32>
    %16 = arith.mulf %15, %3 : vector<128x1xf32>
    %cst_4 = arith.constant -0.488602519 : f32
    %17 = vector.broadcast %cst_4 : f32 to vector<128x1xf32>
    %18 = arith.mulf %17, %1 : vector<128x1xf32>
    %cst_5 = arith.constant 1.09254849 : f32
    %19 = vector.broadcast %cst_5 : f32 to vector<128x1xf32>
    %20 = arith.mulf %19, %7 : vector<128x1xf32>
    %cst_6 = arith.constant -1.09254849 : f32
    %21 = vector.broadcast %cst_6 : f32 to vector<128x1xf32>
    %22 = arith.mulf %21, %8 : vector<128x1xf32>
    %cst_7 = arith.constant 0.946174681 : f32
    %23 = vector.broadcast %cst_7 : f32 to vector<128x1xf32>
    %24 = arith.mulf %23, %6 : vector<128x1xf32>
    %cst_8 = arith.constant 0.31539157 : f32
    %25 = vector.broadcast %cst_8 : f32 to vector<128x1xf32>
    %26 = arith.subf %24, %25 : vector<128x1xf32>
    %cst_9 = arith.constant -1.09254849 : f32
    %27 = vector.broadcast %cst_9 : f32 to vector<128x1xf32>
    %28 = arith.mulf %27, %9 : vector<128x1xf32>
    %29 = arith.subf %4, %5 : vector<128x1xf32>
    %cst_10 = arith.constant 0.546274245 : f32
    %30 = vector.broadcast %cst_10 : f32 to vector<128x1xf32>
    %31 = arith.mulf %30, %29 : vector<128x1xf32>
    %cst_11 = arith.constant 0.590043604 : f32
    %32 = vector.broadcast %cst_11 : f32 to vector<128x1xf32>
    %33 = arith.mulf %32, %2 : vector<128x1xf32>
    %cst_12 = arith.constant -3.000000e+00 : f32
    %34 = vector.broadcast %cst_12 : f32 to vector<128x1xf32>
    %35 = arith.mulf %34, %4 : vector<128x1xf32>
    %36 = arith.addf %35, %5 : vector<128x1xf32>
    %37 = arith.mulf %33, %36 : vector<128x1xf32>
    %cst_13 = arith.constant 2.89061141 : f32
    %38 = vector.broadcast %cst_13 : f32 to vector<128x1xf32>
    %39 = arith.mulf %38, %7 : vector<128x1xf32>
    %40 = arith.mulf %39, %3 : vector<128x1xf32>
    %cst_14 = arith.constant 0.457045794 : f32
    %41 = vector.broadcast %cst_14 : f32 to vector<128x1xf32>
    %42 = arith.mulf %41, %2 : vector<128x1xf32>
    %cst_15 = arith.constant 5.000000e+00 : f32
    %43 = vector.broadcast %cst_15 : f32 to vector<128x1xf32>
    %44 = arith.mulf %43, %6 : vector<128x1xf32>
    %cst_16 = arith.constant 1.000000e+00 : f32
    %45 = vector.broadcast %cst_16 : f32 to vector<128x1xf32>
    %46 = arith.subf %45, %44 : vector<128x1xf32>
    %47 = arith.mulf %42, %46 : vector<128x1xf32>
    %cst_17 = arith.constant 0.373176336 : f32
    %48 = vector.broadcast %cst_17 : f32 to vector<128x1xf32>
    %49 = arith.mulf %48, %3 : vector<128x1xf32>
    %cst_18 = arith.constant 5.000000e+00 : f32
    %50 = vector.broadcast %cst_18 : f32 to vector<128x1xf32>
    %51 = arith.mulf %50, %6 : vector<128x1xf32>
    %cst_19 = arith.constant 3.000000e+00 : f32
    %52 = vector.broadcast %cst_19 : f32 to vector<128x1xf32>
    %53 = arith.subf %51, %52 : vector<128x1xf32>
    %54 = arith.mulf %49, %53 : vector<128x1xf32>
    %cst_20 = arith.constant 0.457045794 : f32
    %55 = vector.broadcast %cst_20 : f32 to vector<128x1xf32>
    %56 = arith.mulf %55, %1 : vector<128x1xf32>
    %cst_21 = arith.constant 5.000000e+00 : f32
    %57 = vector.broadcast %cst_21 : f32 to vector<128x1xf32>
    %58 = arith.mulf %57, %6 : vector<128x1xf32>
    %cst_22 = arith.constant 1.000000e+00 : f32
    %59 = vector.broadcast %cst_22 : f32 to vector<128x1xf32>
    %60 = arith.subf %59, %58 : vector<128x1xf32>
    %61 = arith.mulf %56, %60 : vector<128x1xf32>
    %cst_23 = arith.constant 1.44530571 : f32
    %62 = vector.broadcast %cst_23 : f32 to vector<128x1xf32>
    %63 = arith.mulf %62, %3 : vector<128x1xf32>
    %64 = arith.subf %4, %5 : vector<128x1xf32>
    %65 = arith.mulf %63, %64 : vector<128x1xf32>
    %cst_24 = arith.constant 0.590043604 : f32
    %66 = vector.broadcast %cst_24 : f32 to vector<128x1xf32>
    %67 = arith.mulf %66, %1 : vector<128x1xf32>
    %cst_25 = arith.constant 0.000000e+00 : f32
    %68 = vector.broadcast %cst_25 : f32 to vector<128x1xf32>
    %69 = arith.subf %68, %4 : vector<128x1xf32>
    %cst_26 = arith.constant 3.000000e+00 : f32
    %70 = vector.broadcast %cst_26 : f32 to vector<128x1xf32>
    %71 = arith.mulf %70, %5 : vector<128x1xf32>
    %72 = arith.addf %69, %71 : vector<128x1xf32>
    %73 = arith.mulf %67, %72 : vector<128x1xf32>
    %c0_27 = arith.constant 0 : index
    %c0_28 = arith.constant 0 : index
    %74 = vector.load %arg3[%c0_27, %c0_28] : memref<16x64xf32, #tpu.memory_space<vmem>>, vector<16x64xf32>
    %75 = vector.extract_strided_slice %74 {offsets = [0, 0], sizes = [1, 64], strides = [1, 1]} : vector<16x64xf32> to vector<1x64xf32>
    %76 = vector.broadcast %12 : vector<128x1xf32> to vector<128x64xf32>
    %77 = vector.broadcast %75 : vector<1x64xf32> to vector<128x64xf32>
    %78 = arith.mulf %76, %77 : vector<128x64xf32>
    %79 = vector.extract_strided_slice %74 {offsets = [1, 0], sizes = [1, 64], strides = [1, 1]} : vector<16x64xf32> to vector<1x64xf32>
    %80 = vector.broadcast %14 : vector<128x1xf32> to vector<128x64xf32>
    %81 = vector.broadcast %79 : vector<1x64xf32> to vector<128x64xf32>
    %82 = arith.mulf %80, %81 : vector<128x64xf32>
    %83 = arith.addf %78, %82 : vector<128x64xf32>
    %84 = vector.extract_strided_slice %74 {offsets = [2, 0], sizes = [1, 64], strides = [1, 1]} : vector<16x64xf32> to vector<1x64xf32>
    %85 = vector.broadcast %16 : vector<128x1xf32> to vector<128x64xf32>
    %86 = vector.broadcast %84 : vector<1x64xf32> to vector<128x64xf32>
    %87 = arith.mulf %85, %86 : vector<128x64xf32>
    %88 = arith.addf %83, %87 : vector<128x64xf32>
    %89 = vector.extract_strided_slice %74 {offsets = [3, 0], sizes = [1, 64], strides = [1, 1]} : vector<16x64xf32> to vector<1x64xf32>
    %90 = vector.broadcast %18 : vector<128x1xf32> to vector<128x64xf32>
    %91 = vector.broadcast %89 : vector<1x64xf32> to vector<128x64xf32>
    %92 = arith.mulf %90, %91 : vector<128x64xf32>
    %93 = arith.addf %88, %92 : vector<128x64xf32>
    %94 = vector.extract_strided_slice %74 {offsets = [4, 0], sizes = [1, 64], strides = [1, 1]} : vector<16x64xf32> to vector<1x64xf32>
    %95 = vector.broadcast %20 : vector<128x1xf32> to vector<128x64xf32>
    %96 = vector.broadcast %94 : vector<1x64xf32> to vector<128x64xf32>
    %97 = arith.mulf %95, %96 : vector<128x64xf32>
    %98 = arith.addf %93, %97 : vector<128x64xf32>
    %99 = vector.extract_strided_slice %74 {offsets = [5, 0], sizes = [1, 64], strides = [1, 1]} : vector<16x64xf32> to vector<1x64xf32>
    %100 = vector.broadcast %22 : vector<128x1xf32> to vector<128x64xf32>
    %101 = vector.broadcast %99 : vector<1x64xf32> to vector<128x64xf32>
    %102 = arith.mulf %100, %101 : vector<128x64xf32>
    %103 = arith.addf %98, %102 : vector<128x64xf32>
    %104 = vector.extract_strided_slice %74 {offsets = [6, 0], sizes = [1, 64], strides = [1, 1]} : vector<16x64xf32> to vector<1x64xf32>
    %105 = vector.broadcast %26 : vector<128x1xf32> to vector<128x64xf32>
    %106 = vector.broadcast %104 : vector<1x64xf32> to vector<128x64xf32>
    %107 = arith.mulf %105, %106 : vector<128x64xf32>
    %108 = arith.addf %103, %107 : vector<128x64xf32>
    %109 = vector.extract_strided_slice %74 {offsets = [7, 0], sizes = [1, 64], strides = [1, 1]} : vector<16x64xf32> to vector<1x64xf32>
    %110 = vector.broadcast %28 : vector<128x1xf32> to vector<128x64xf32>
    %111 = vector.broadcast %109 : vector<1x64xf32> to vector<128x64xf32>
    %112 = arith.mulf %110, %111 : vector<128x64xf32>
    %113 = arith.addf %108, %112 : vector<128x64xf32>
    %114 = vector.extract_strided_slice %74 {offsets = [8, 0], sizes = [1, 64], strides = [1, 1]} : vector<16x64xf32> to vector<1x64xf32>
    %115 = vector.broadcast %31 : vector<128x1xf32> to vector<128x64xf32>
    %116 = vector.broadcast %114 : vector<1x64xf32> to vector<128x64xf32>
    %117 = arith.mulf %115, %116 : vector<128x64xf32>
    %118 = arith.addf %113, %117 : vector<128x64xf32>
    %119 = vector.extract_strided_slice %74 {offsets = [9, 0], sizes = [1, 64], strides = [1, 1]} : vector<16x64xf32> to vector<1x64xf32>
    %120 = vector.broadcast %37 : vector<128x1xf32> to vector<128x64xf32>
    %121 = vector.broadcast %119 : vector<1x64xf32> to vector<128x64xf32>
    %122 = arith.mulf %120, %121 : vector<128x64xf32>
    %123 = arith.addf %118, %122 : vector<128x64xf32>
    %124 = vector.extract_strided_slice %74 {offsets = [10, 0], sizes = [1, 64], strides = [1, 1]} : vector<16x64xf32> to vector<1x64xf32>
    %125 = vector.broadcast %40 : vector<128x1xf32> to vector<128x64xf32>
    %126 = vector.broadcast %124 : vector<1x64xf32> to vector<128x64xf32>
    %127 = arith.mulf %125, %126 : vector<128x64xf32>
    %128 = arith.addf %123, %127 : vector<128x64xf32>
    %129 = vector.extract_strided_slice %74 {offsets = [11, 0], sizes = [1, 64], strides = [1, 1]} : vector<16x64xf32> to vector<1x64xf32>
    %130 = vector.broadcast %47 : vector<128x1xf32> to vector<128x64xf32>
    %131 = vector.broadcast %129 : vector<1x64xf32> to vector<128x64xf32>
    %132 = arith.mulf %130, %131 : vector<128x64xf32>
    %133 = arith.addf %128, %132 : vector<128x64xf32>
    %134 = vector.extract_strided_slice %74 {offsets = [12, 0], sizes = [1, 64], strides = [1, 1]} : vector<16x64xf32> to vector<1x64xf32>
    %135 = vector.broadcast %54 : vector<128x1xf32> to vector<128x64xf32>
    %136 = vector.broadcast %134 : vector<1x64xf32> to vector<128x64xf32>
    %137 = arith.mulf %135, %136 : vector<128x64xf32>
    %138 = arith.addf %133, %137 : vector<128x64xf32>
    %139 = vector.extract_strided_slice %74 {offsets = [13, 0], sizes = [1, 64], strides = [1, 1]} : vector<16x64xf32> to vector<1x64xf32>
    %140 = vector.broadcast %61 : vector<128x1xf32> to vector<128x64xf32>
    %141 = vector.broadcast %139 : vector<1x64xf32> to vector<128x64xf32>
    %142 = arith.mulf %140, %141 : vector<128x64xf32>
    %143 = arith.addf %138, %142 : vector<128x64xf32>
    %144 = vector.extract_strided_slice %74 {offsets = [14, 0], sizes = [1, 64], strides = [1, 1]} : vector<16x64xf32> to vector<1x64xf32>
    %145 = vector.broadcast %65 : vector<128x1xf32> to vector<128x64xf32>
    %146 = vector.broadcast %144 : vector<1x64xf32> to vector<128x64xf32>
    %147 = arith.mulf %145, %146 : vector<128x64xf32>
    %148 = arith.addf %143, %147 : vector<128x64xf32>
    %149 = vector.extract_strided_slice %74 {offsets = [15, 0], sizes = [1, 64], strides = [1, 1]} : vector<16x64xf32> to vector<1x64xf32>
    %150 = vector.broadcast %73 : vector<128x1xf32> to vector<128x64xf32>
    %151 = vector.broadcast %149 : vector<1x64xf32> to vector<128x64xf32>
    %152 = arith.mulf %150, %151 : vector<128x64xf32>
    %153 = arith.addf %148, %152 : vector<128x64xf32>
    %c0_29 = arith.constant 0 : index
    %c0_30 = arith.constant 0 : index
    %154 = vector.load %arg2[%c0_29, %c0_30] : memref<128x22xf32, #tpu.memory_space<vmem>>, vector<128x22xf32>
    %155 = arith.truncf %154 : vector<128x22xf32> to vector<128x22xbf16>
    %c0_31 = arith.constant 0 : index
    %c0_32 = arith.constant 0 : index
    %156 = vector.load %arg4[%c0_31, %c0_32] : memref<22x64xbf16, #tpu.memory_space<vmem>>, vector<22x64xbf16>
    %cst_33 = arith.constant dense<0.000000e+00> : vector<128x64xf32>
    %157 = tpu.matmul %155, %156, %cst_33 {dimension_numbers = #tpu.dot_dimension_numbers<[1], [0], [0], [1], [0, 0, 1, 1], [], []>} : vector<128x22xbf16>, vector<22x64xbf16>, vector<128x64xf32> -> vector<128x64xf32>
    %158 = arith.addf %153, %157 : vector<128x64xf32>
    %cst_34 = arith.constant 0.000000e+00 : f32
    %159 = vector.broadcast %cst_34 : f32 to vector<128x64xf32>
    %160 = arith.maximumf %158, %159 : vector<128x64xf32>
    %161 = arith.truncf %160 : vector<128x64xf32> to vector<128x64xbf16>
    %c0_35 = arith.constant 0 : index
    %c0_36 = arith.constant 0 : index
    %162 = vector.load %arg5[%c0_35, %c0_36] : memref<64x64xbf16, #tpu.memory_space<vmem>>, vector<64x64xbf16>
    %cst_37 = arith.constant dense<0.000000e+00> : vector<128x64xf32>
    %163 = tpu.matmul %161, %162, %cst_37 {dimension_numbers = #tpu.dot_dimension_numbers<[1], [0], [0], [1], [0, 0, 1, 1], [], []>} : vector<128x64xbf16>, vector<64x64xbf16>, vector<128x64xf32> -> vector<128x64xf32>
    %cst_38 = arith.constant 0.000000e+00 : f32
    %164 = vector.broadcast %cst_38 : f32 to vector<128x64xf32>
    %165 = arith.maximumf %163, %164 : vector<128x64xf32>
    %166 = arith.truncf %165 : vector<128x64xf32> to vector<128x64xbf16>
    %c0_39 = arith.constant 0 : index
    %c0_40 = arith.constant 0 : index
    %167 = vector.load %arg6[%c0_39, %c0_40] : memref<64x3xbf16, #tpu.memory_space<vmem>>, vector<64x3xbf16>
    %cst_41 = arith.constant dense<0.000000e+00> : vector<128x3xf32>
    %168 = tpu.matmul %166, %167, %cst_41 {dimension_numbers = #tpu.dot_dimension_numbers<[1], [0], [0], [1], [0, 0, 1, 1], [], []>} : vector<128x64xbf16>, vector<64x3xbf16>, vector<128x3xf32> -> vector<128x3xf32>
    %169 = arith.negf %168 : vector<128x3xf32>
    %170 = math.exp %169 : vector<128x3xf32>
    %cst_42 = arith.constant 1.000000e+00 : f32
    %171 = vector.broadcast %cst_42 : f32 to vector<128x3xf32>
    %172 = arith.addf %171, %170 : vector<128x3xf32>
    %173 = arith.divf %171, %172 : vector<128x3xf32>
    %c0_43 = arith.constant 0 : index
    %c0_44 = arith.constant 0 : index
    %174 = vector.load %arg7[%c0_43, %c0_44] : memref<128x3xf32, #tpu.memory_space<vmem>>, vector<128x3xf32>
    tpu.vector_store %arg7[%c0_43, %c0_44], %173 {strides = array<i32>} : memref<128x3xf32, #tpu.memory_space<vmem>>, vector<128x3xf32>,
    return
  }
  func.func @transform_0(%arg0: i32) -> (i32, i32) {
    %c0_i32 = arith.constant 0 : i32
    %c0_i32_0 = arith.constant 0 : i32
    return %arg0, %c0_i32 : i32, i32
  }
  func.func @transform_1(%arg0: i32) -> (i32, i32) {
    %c0_i32 = arith.constant 0 : i32
    %c0_i32_0 = arith.constant 0 : i32
    return %arg0, %c0_i32 : i32, i32
  }
  func.func @transform_2(%arg0: i32) -> (i32, i32) {
    %c0_i32 = arith.constant 0 : i32
    %c0_i32_0 = arith.constant 0 : i32
    %c0_i32_1 = arith.constant 0 : i32
    return %c0_i32, %c0_i32_0 : i32, i32
  }
  func.func @transform_3(%arg0: i32) -> (i32, i32) {
    %c0_i32 = arith.constant 0 : i32
    %c0_i32_0 = arith.constant 0 : i32
    %c0_i32_1 = arith.constant 0 : i32
    return %c0_i32, %c0_i32_0 : i32, i32
  }
  func.func @transform_4(%arg0: i32) -> (i32, i32) {
    %c0_i32 = arith.constant 0 : i32
    %c0_i32_0 = arith.constant 0 : i32
    %c0_i32_1 = arith.constant 0 : i32
    return %c0_i32, %c0_i32_0 : i32, i32
  }
  func.func @transform_5(%arg0: i32) -> (i32, i32) {
    %c0_i32 = arith.constant 0 : i32
    %c0_i32_0 = arith.constant 0 : i32
    %c0_i32_1 = arith.constant 0 : i32
    return %c0_i32, %c0_i32_0 : i32, i32
  }
  func.func @transform_6(%arg0: i32) -> (i32, i32) {
    %c0_i32 = arith.constant 0 : i32
    %c0_i32_0 = arith.constant 0 : i32
    return %arg0, %c0_i32 : i32, i32
  }
}

</mosaic_0001>

<llo_original>
// kernel: rgb_network_forward.1
$region0: #{rgb_network_forward.1}
  #allocation0 [shape = 'u32[]', space=smem, size = 0x4, offset = 0x4, fixed_abs, tag = 'smem constant byte address 0x4 - core index']
  #allocation1 [shape = 'u32[144,128]{1,0:T(1,128)}', space=vmem, size = 0x12000, scoped, tag = 'internal scratch']
  %s0 = inlined_call_operand.vmem [shape: f32[384,3], index: 0, kind: input, shape index: {}]
  %s1 = inlined_call_operand.vmem [shape: f32[384,22], index: 1, kind: input, shape index: {}]
  %s2 = inlined_call_operand.vmem [shape: f32[16,64], index: 2, kind: input, shape index: {}]
  %s3 = inlined_call_operand.vmem [shape: bf16[22,64], index: 3, kind: input, shape index: {}]
  %s4 = inlined_call_operand.vmem [shape: bf16[64,64], index: 4, kind: input, shape index: {}]
  %s5 = inlined_call_operand.vmem [shape: bf16[64,3], index: 5, kind: input, shape index: {}]
  %s6 = inlined_call_operand.vmem [shape: f32[384,3], index: 6, kind: output, shape index: {}]
  %s7 = sld [smem:[#allocation0]]
  $region57: #{rgb_network_forward.1} parent=0
    _
  %s9 = ssub.s32 1, %s7
  %s10 = scalar_select 0, %s9, %s7
  loop: start=0, step=1, limit=5
  $region2: #{rgb_network_forward.1} parent=0 // loop_pre_header
    _
  $region3: #{rgb_network_forward.1} parent=0 // loop_header
    %s12 = sphi 0, %s16
    %p13 = scmp.ge.s32.totalorder %s12, 5
    %s22 = sphi 0, %s24
    %s25 = sphi 0, %s22
    %s26 = sphi 0, %s25
    %s42 = sphi 0, %s26
    %s48 = sphi 0, %s50
    %s51 = sphi 0, %s48
    %s52 = sphi 0, %s51
    %s68 = sphi 0, %s52
    %s72 = sphi 0, %s72
    %s74 = sphi 0, %s72
    %s75 = sphi 0, %s74
    %s89 = sphi 0, %s75
    %s93 = sphi 0, %s93
    %s95 = sphi 0, %s93
    %s96 = sphi 0, %s95
    %s110 = sphi 0, %s96
    %s114 = sphi 0, %s114
    %s116 = sphi 0, %s114
    %s117 = sphi 0, %s116
    %s131 = sphi 0, %s117
    %s135 = sphi 0, %s135
    %s137 = sphi 0, %s135
    %s138 = sphi 0, %s137
    %s152 = sphi 0, %s138
    %s158 = sphi 0, %s160
    %s161 = sphi 0, %s158
    %s162 = sphi 0, %s161
    %s178 = sphi 0, %s162
  $region4: #{rgb_network_forward.1} parent=0 // loop_header_branch
    %15 = sbr.rel (%p13) target = $region8
  $region5: #{rgb_network_forward.1} parent=0 // loop_body
    %s17 = ssub.s32 %s12, 1
    %s18 = ssub.s32 %s12, 2
    %s19 = sadd.s32 %s12, 1
    %s20 = ssub.s32 %s12, %s19
    %p21 = scmp.eq.s32.totalorder %s20, 0
    %s23 = sadd.s32 %s22, 1
    %s24 = scalar_select %p21, %s22, %s23
    %p27 = pneg %p21
    %p28 = scmp.eq.s32.totalorder %s12, 2
    %p29 = por %p27, %p28
    %p30 = scmp.ne.s32.totalorder %s22, %s25
    %p31 = scmp.eq.s32.totalorder %s12, 0
    %p32 = por %p30, %p31
    %p33 = scmp.ne.s32.totalorder %s22, %s25
    %p34 = scmp.eq.s32.totalorder %s17, 2
    %p35 = por %p33, %p34
    %p36 = scmp.ne.s32.totalorder %s25, %s26
    %p37 = scmp.eq.s32.totalorder %s17, 0
    %p38 = por %p36, %p37
    %p39 = scmp.ne.s32.totalorder %s25, %s26
    %p40 = scmp.eq.s32.totalorder %s18, 2
    %p41 = por %p39, %p40
    %p43 = scmp.ne.s32.totalorder %s26, %s42
    %p44 = scmp.eq.s32.totalorder %s18, 0
    %p45 = por %p43, %p44
    %s46 = ssub.s32 %s12, %s19
    %p47 = scmp.eq.s32.totalorder %s46, 0
    %s49 = sadd.s32 %s48, 1
    %s50 = scalar_select %p47, %s48, %s49
    %p53 = pneg %p47
    %p54 = scmp.eq.s32.totalorder %s12, 2
    %p55 = por %p53, %p54
    %p56 = scmp.ne.s32.totalorder %s48, %s51
    %p57 = scmp.eq.s32.totalorder %s12, 0
    %p58 = por %p56, %p57
    %p59 = scmp.ne.s32.totalorder %s48, %s51
    %p60 = scmp.eq.s32.totalorder %s17, 2
    %p61 = por %p59, %p60
    %p62 = scmp.ne.s32.totalorder %s51, %s52
    %p63 = scmp.eq.s32.totalorder %s17, 0
    %p64 = por %p62, %p63
    %p65 = scmp.ne.s32.totalorder %s51, %s52
    %p66 = scmp.eq.s32.totalorder %s18, 2
    %p67 = por %p65, %p66
    %p69 = scmp.ne.s32.totalorder %s52, %s68
    %p70 = scmp.eq.s32.totalorder %s18, 0
    %p71 = por %p69, %p70
    %s73 = sadd.s32 %s72, 1
    %p76 = scmp.eq.s32.totalorder %s12, 2
    %p77 = scmp.ne.s32.totalorder %s72, %s74
    %p78 = scmp.eq.s32.totalorder %s12, 0
    %p79 = por %p77, %p78
    %p80 = scmp.ne.s32.totalorder %s72, %s74
    %p81 = scmp.eq.s32.totalorder %s17, 2
    %p82 = por %p80, %p81
    %p83 = scmp.ne.s32.totalorder %s74, %s75
    %p84 = scmp.eq.s32.totalorder %s17, 0
    %p85 = por %p83, %p84
    %p86 = scmp.ne.s32.totalorder %s74, %s75
    %p87 = scmp.eq.s32.totalorder %s18, 2
    %p88 = por %p86, %p87
    %p90 = scmp.ne.s32.totalorder %s75, %s89
    %p91 = scmp.eq.s32.totalorder %s18, 0
    %p92 = por %p90, %p91
    %s94 = sadd.s32 %s93, 1
    %p97 = scmp.eq.s32.totalorder %s12, 2
    %p98 = scmp.ne.s32.totalorder %s93, %s95
    %p99 = scmp.eq.s32.totalorder %s12, 0
    %p100 = por %p98, %p99
    %p101 = scmp.ne.s32.totalorder %s93, %s95
    %p102 = scmp.eq.s32.totalorder %s17, 2
    %p103 = por %p101, %p102
    %p104 = scmp.ne.s32.totalorder %s95, %s96
    %p105 = scmp.eq.s32.totalorder %s17, 0
    %p106 = por %p104, %p105
    %p107 = scmp.ne.s32.totalorder %s95, %s96
    %p108 = scmp.eq.s32.totalorder %s18, 2
    %p109 = por %p107, %p108
    %p111 = scmp.ne.s32.totalorder %s96, %s110
    %p112 = scmp.eq.s32.totalorder %s18, 0
    %p113 = por %p111, %p112
    %s115 = sadd.s32 %s114, 1
    %p118 = scmp.eq.s32.totalorder %s12, 2
    %p119 = scmp.ne.s32.totalorder %s114, %s116
    %p120 = scmp.eq.s32.totalorder %s12, 0
    %p121 = por %p119, %p120
    %p122 = scmp.ne.s32.totalorder %s114, %s116
    %p123 = scmp.eq.s32.totalorder %s17, 2
    %p124 = por %p122, %p123
    %p125 = scmp.ne.s32.totalorder %s116, %s117
    %p126 = scmp.eq.s32.totalorder %s17, 0
    %p127 = por %p125, %p126
    %p128 = scmp.ne.s32.totalorder %s116, %s117
    %p129 = scmp.eq.s32.totalorder %s18, 2
    %p130 = por %p128, %p129
    %p132 = scmp.ne.s32.totalorder %s117, %s131
    %p133 = scmp.eq.s32.totalorder %s18, 0
    %p134 = por %p132, %p133
    %s136 = sadd.s32 %s135, 1
    %p139 = scmp.eq.s32.totalorder %s12, 2
    %p140 = scmp.ne.s32.totalorder %s135, %s137
    %p141 = scmp.eq.s32.totalorder %s12, 0
    %p142 = por %p140, %p141
    %p143 = scmp.ne.s32.totalorder %s135, %s137
    %p144 = scmp.eq.s32.totalorder %s17, 2
    %p145 = por %p143, %p144
    %p146 = scmp.ne.s32.totalorder %s137, %s138
    %p147 = scmp.eq.s32.totalorder %s17, 0
    %p148 = por %p146, %p147
    %p149 = scmp.ne.s32.totalorder %s137, %s138
    %p150 = scmp.eq.s32.totalorder %s18, 2
    %p151 = por %p149, %p150
    %p153 = scmp.ne.s32.totalorder %s138, %s152
    %p154 = scmp.eq.s32.totalorder %s18, 0
    %p155 = por %p153, %p154
    %s156 = ssub.s32 %s12, %s19
    %p157 = scmp.eq.s32.totalorder %s156, 0
    %s159 = sadd.s32 %s158, 1
    %s160 = scalar_select %p157, %s158, %s159
    %p163 = pneg %p157
    %p164 = scmp.eq.s32.totalorder %s12, 2
    %p165 = por %p163, %p164
    %p166 = scmp.ne.s32.totalorder %s158, %s161
    %p167 = scmp.eq.s32.totalorder %s12, 0
    %p168 = por %p166, %p167
    %p169 = scmp.ne.s32.totalorder %s158, %s161
    %p170 = scmp.eq.s32.totalorder %s17, 2
    %p171 = por %p169, %p170
    %p172 = scmp.ne.s32.totalorder %s161, %s162
    %p173 = scmp.eq.s32.totalorder %s17, 0
    %p174 = por %p172, %p173
    %p175 = scmp.ne.s32.totalorder %s161, %s162
    %p176 = scmp.eq.s32.totalorder %s18, 2
    %p177 = por %p175, %p176
    %p179 = scmp.ne.s32.totalorder %s162, %s178
    %p180 = scmp.eq.s32.totalorder %s18, 0
    %p181 = por %p179, %p180
    %p182 = scmp.le.s32.totalorder 1, %s12
    %p183 = scmp.lt.s32.totalorder %s12, 4
    %p184 = pnand %p182, %p183
    %p185 = pneg %p184
    // Predicated region
    $region9: #{rgb_network_forward.1} parent=5 // pred_check
      _
    $region10: #{rgb_network_forward.1} parent=5 // pred_check_branch
      %187 = sbr.rel (%p184) target = $region12
    $region11: #{rgb_network_forward.1} parent=5 // pred_region
      %s188 = ssub.s32 %s12, 1
      // Predicated region
      $region13: #{rgb_network_forward.1} parent=11 // pred_check
        %p189 = pneg %p85
      $region14: #{rgb_network_forward.1} parent=11 // pred_check_branch
        %191 = sbr.rel (%p189) target = $region16
      $region15: #{rgb_network_forward.1} parent=11 // pred_region
        _
      $region16: #{rgb_network_forward.1} parent=11 // pred_fallthru
        _
      // Predicated region
      $region17: #{rgb_network_forward.1} parent=11 // pred_check
        %p192 = pneg %p106
      $region18: #{rgb_network_forward.1} parent=11 // pred_check_branch
        %194 = sbr.rel (%p192) target = $region20
      $region19: #{rgb_network_forward.1} parent=11 // pred_region
        _
      $region20: #{rgb_network_forward.1} parent=11 // pred_fallthru
        _
      // Predicated region
      $region21: #{rgb_network_forward.1} parent=11 // pred_check
        %p195 = pneg %p127
      $region22: #{rgb_network_forward.1} parent=11 // pred_check_branch
        %197 = sbr.rel (%p195) target = $region24
      $region23: #{rgb_network_forward.1} parent=11 // pred_region
        _
      $region24: #{rgb_network_forward.1} parent=11 // pred_fallthru
        _
      // Predicated region
      $region25: #{rgb_network_forward.1} parent=11 // pred_check
        %p198 = pneg %p148
      $region26: #{rgb_network_forward.1} parent=11 // pred_check_branch
        %200 = sbr.rel (%p198) target = $region28
      $region27: #{rgb_network_forward.1} parent=11 // pred_region
        _
      $region28: #{rgb_network_forward.1} parent=11 // pred_fallthru
        _
    $region12: #{rgb_network_forward.1} parent=5 // pred_fallthru
      _
    %p201 = scmp.lt.s32.totalorder %s12, 3
    // Predicated region
    $region29: #{rgb_network_forward.1} parent=5 // pred_check
      %p202 = pneg %p201
    $region30: #{rgb_network_forward.1} parent=5 // pred_check_branch
      %204 = sbr.rel (%p202) target = $region32
    $region31: #{rgb_network_forward.1} parent=5 // pred_region
      // Predicated region
      $region33: #{rgb_network_forward.1} parent=31 // pred_check
        %p205 = pneg %p32
      $region34: #{rgb_network_forward.1} parent=31 // pred_check_branch
        %207 = sbr.rel (%p205) target = $region36
      $region35: #{rgb_network_forward.1} parent=31 // pred_region
        %s208 = smul.u32 16, %s12
        %p209 = scmp.lt.s32.totalorder %s208, 47
        %s210 = scalar_select %p209, %s208, 47
        %s211 = smul.addr %s210, 8
        %s212 = scalar_lea.vmem %s0, %s211
        %s213 = smul.u32 16, %s12
      $region36: #{rgb_network_forward.1} parent=31 // pred_fallthru
        _
      // Predicated region
      $region37: #{rgb_network_forward.1} parent=31 // pred_check
        %p214 = pneg %p58
      $region38: #{rgb_network_forward.1} parent=31 // pred_check_branch
        %216 = sbr.rel (%p214) target = $region40
      $region39: #{rgb_network_forward.1} parent=31 // pred_region
        %s217 = smul.u32 16, %s12
        %p218 = scmp.lt.s32.totalorder %s217, 47
        %s219 = scalar_select %p218, %s217, 47
        %s220 = smul.addr %s219, 8
        %s221 = scalar_lea.vmem %s1, %s220
        %s222 = smul.u32 16, %s12
      $region40: #{rgb_network_forward.1} parent=31 // pred_fallthru
        _
    $region32: #{rgb_network_forward.1} parent=5 // pred_fallthru
      _
    %p223 = scmp.le.s32.totalorder 1, %s12
    %p224 = scmp.lt.s32.totalorder %s12, 4
    %p225 = pnand %p223, %p224
    %p226 = pneg %p225
    // Predicated region
    $region41: #{rgb_network_forward.1} parent=5 // pred_check
      _
    $region42: #{rgb_network_forward.1} parent=5 // pred_check_branch
      %228 = sbr.rel (%p225) target = $region44
    $region43: #{rgb_network_forward.1} parent=5 // pred_region
      %s229 = ssub.s32 %s12, 1
      %s230 = smul.u32 16, %s17
      %p231 = scmp.lt.s32.totalorder %s230, 47
      %s232 = scalar_select %p231, %s230, 47
      %s233 = smul.addr %s232, 8
      %s234 = scalar_lea.vmem %s0, %s233
      %p235 = pneg %p38
      %p236 = pneg %p35
      %s237 = smul.u32 16, %s17
      %p238 = scmp.lt.s32.totalorder %s237, 47
      %s239 = scalar_select %p238, %s237, 47
      %s240 = smul.addr %s239, 8
      %s241 = scalar_lea.vmem %s1, %s240
      %p242 = pneg %p64
      %p243 = pneg %p61
      %p244 = pneg %p85
      %p245 = pneg %p82
      %p246 = pneg %p106
      %p247 = pneg %p103
      %p248 = pneg %p127
      %p249 = pneg %p124
      %p250 = pneg %p148
      %p251 = pneg %p145
      %p252 = pneg %p174
      %p253 = pneg %p171
      %s254 = smul.u32 16, %s17
      %p255 = scmp.lt.s32.totalorder %s254, 47
      %s256 = scalar_select %p255, %s254, 47
      %s257 = smul.addr %s256, 8
      %s258 = scalar_lea.vmem %s6, %s257
      %s259 = smul.u32 16, %s17
      %p260 = scmp.lt.s32.totalorder %s259, 47
      %s261 = scalar_select %p260, %s259, 47
      %s262 = smul.addr %s261, 8
      %s263 = scalar_lea.vmem %s0, %s262
      %s264 = smul.u32 16, %s17
      %s265 = smul.u32 16, %s17
      %p266 = scmp.lt.s32.totalorder %s265, 47
      %s267 = scalar_select %p266, %s265, 47
      %s268 = smul.addr %s267, 8
      %s269 = scalar_lea.vmem %s1, %s268
      %s270 = smul.u32 16, %s17
      %s271 = smul.u32 16, %s17
      %p272 = scmp.lt.s32.totalorder %s271, 47
      %s273 = scalar_select %p272, %s271, 47
      %s274 = smul.addr %s273, 8
      %s275 = scalar_lea.vmem %s6, %s274
      %s276 = smul.u32 16, %s17
      %v278 = vld [vmem:[%s263] sm:$0xff]
      %v279 = vld [vmem:[%s263 + $0x8] sm:$0xff]
      %v280 = vld [vmem:[%s263 + $0x10] sm:$0xff]
      %v281 = vld [vmem:[%s263 + $0x18] sm:$0xff]
      %v282 = vld [vmem:[%s263 + $0x20] sm:$0xff]
      %v283 = vld [vmem:[%s263 + $0x28] sm:$0xff]
      %v284 = vld [vmem:[%s263 + $0x30] sm:$0xff]
      %v285 = vld [vmem:[%s263 + $0x38] sm:$0xff]
      %v286 = vld [vmem:[%s263 + $0x40] sm:$0xff]
      %v287 = vld [vmem:[%s263 + $0x48] sm:$0xff]
      %v288 = vld [vmem:[%s263 + $0x50] sm:$0xff]
      %v289 = vld [vmem:[%s263 + $0x58] sm:$0xff]
      %v290 = vld [vmem:[%s263 + $0x60] sm:$0xff]
      %v291 = vld [vmem:[%s263 + $0x68] sm:$0xff]
      %v292 = vld [vmem:[%s263 + $0x70] sm:$0xff]
      %v293 = vld [vmem:[%s263 + $0x78] sm:$0xff]
      %v294 = vmul.f32 %v278, %v278
      %v295 = vmul.f32 %v279, %v279
      %v296 = vmul.f32 %v280, %v280
      %v297 = vmul.f32 %v281, %v281
      %v298 = vmul.f32 %v282, %v282
      %v299 = vmul.f32 %v283, %v283
      %v300 = vmul.f32 %v284, %v284
      %v301 = vmul.f32 %v285, %v285
      %v302 = vmul.f32 %v286, %v286
      %v303 = vmul.f32 %v287, %v287
      %v304 = vmul.f32 %v288, %v288
      %v305 = vmul.f32 %v289, %v289
      %v306 = vmul.f32 %v290, %v290
      %v307 = vmul.f32 %v291, %v291
      %v308 = vmul.f32 %v292, %v292
      %v309 = vmul.f32 %v293, %v293
      %326 = vrot.lane.b32.xlu0 %v278, 127
      %v327 = vpop.permute.xlu0 %326
      %328 = vrot.lane.b32.xlu0 %v279, 127
      %v329 = vpop.permute.xlu0 %328
      %330 = vrot.lane.b32.xlu0 %v280, 127
      %v331 = vpop.permute.xlu0 %330
      %332 = vrot.lane.b32.xlu0 %v281, 127
      %v333 = vpop.permute.xlu0 %332
      %334 = vrot.lane.b32.xlu0 %v282, 127
      %v335 = vpop.permute.xlu0 %334
      %336 = vrot.lane.b32.xlu0 %v283, 127
      %v337 = vpop.permute.xlu0 %336
      %338 = vrot.lane.b32.xlu0 %v284, 127
      %v339 = vpop.permute.xlu0 %338
      %340 = vrot.lane.b32.xlu0 %v285, 127
      %v341 = vpop.permute.xlu0 %340
      %342 = vrot.lane.b32.xlu0 %v286, 127
      %v343 = vpop.permute.xlu0 %342
      %344 = vrot.lane.b32.xlu0 %v287, 127
      %v345 = vpop.permute.xlu0 %344
      %346 = vrot.lane.b32.xlu0 %v288, 127
      %v347 = vpop.permute.xlu0 %346
      %348 = vrot.lane.b32.xlu0 %v289, 127
      %v349 = vpop.permute.xlu0 %348
      %350 = vrot.lane.b32.xlu0 %v290, 127
      %v351 = vpop.permute.xlu0 %350
      %352 = vrot.lane.b32.xlu0 %v291, 127
      %v353 = vpop.permute.xlu0 %352
      %354 = vrot.lane.b32.xlu0 %v292, 127
      %v355 = vpop.permute.xlu0 %354
      %356 = vrot.lane.b32.xlu0 %v293, 127
      %v357 = vpop.permute.xlu0 %356
      %v374 = vmul.f32 %v278, %v327
      %v375 = vmul.f32 %v279, %v329
      %v376 = vmul.f32 %v280, %v331
      %v377 = vmul.f32 %v281, %v333
      %v378 = vmul.f32 %v282, %v335
      %v379 = vmul.f32 %v283, %v337
      %v380 = vmul.f32 %v284, %v339
      %v381 = vmul.f32 %v285, %v341
      %v382 = vmul.f32 %v286, %v343
      %v383 = vmul.f32 %v287, %v345
      %v384 = vmul.f32 %v288, %v347
      %v385 = vmul.f32 %v289, %v349
      %v386 = vmul.f32 %v290, %v351
      %v387 = vmul.f32 %v291, %v353
      %v388 = vmul.f32 %v292, %v355
      %v389 = vmul.f32 %v293, %v357
      %390 = vrot.lane.b32.xlu0 %v278, 126
      %v391 = vpop.permute.xlu0 %390
      %392 = vrot.lane.b32.xlu0 %v279, 126
      %v393 = vpop.permute.xlu0 %392
      %394 = vrot.lane.b32.xlu0 %v280, 126
      %v395 = vpop.permute.xlu0 %394
      %396 = vrot.lane.b32.xlu0 %v281, 126
      %v397 = vpop.permute.xlu0 %396
      %398 = vrot.lane.b32.xlu0 %v282, 126
      %v399 = vpop.permute.xlu0 %398
      %400 = vrot.lane.b32.xlu0 %v283, 126
      %v401 = vpop.permute.xlu0 %400
      %402 = vrot.lane.b32.xlu0 %v284, 126
      %v403 = vpop.permute.xlu0 %402
      %404 = vrot.lane.b32.xlu0 %v285, 126
      %v405 = vpop.permute.xlu0 %404
      %406 = vrot.lane.b32.xlu0 %v286, 126
      %v407 = vpop.permute.xlu0 %406
      %408 = vrot.lane.b32.xlu0 %v287, 126
      %v409 = vpop.permute.xlu0 %408
      %410 = vrot.lane.b32.xlu0 %v288, 126
      %v411 = vpop.permute.xlu0 %410
      %412 = vrot.lane.b32.xlu0 %v289, 126
      %v413 = vpop.permute.xlu0 %412
      %414 = vrot.lane.b32.xlu0 %v290, 126
      %v415 = vpop.permute.xlu0 %414
      %416 = vrot.lane.b32.xlu0 %v291, 126
      %v417 = vpop.permute.xlu0 %416
      %418 = vrot.lane.b32.xlu0 %v292, 126
      %v419 = vpop.permute.xlu0 %418
      %420 = vrot.lane.b32.xlu0 %v293, 126
      %v421 = vpop.permute.xlu0 %420
      %v438 = vmul.f32 %v278, %v391
      %v439 = vmul.f32 %v279, %v393
      %v440 = vmul.f32 %v280, %v395
      %v441 = vmul.f32 %v281, %v397
      %v442 = vmul.f32 %v282, %v399
      %v443 = vmul.f32 %v283, %v401
      %v444 = vmul.f32 %v284, %v403
      %v445 = vmul.f32 %v285, %v405
      %v446 = vmul.f32 %v286, %v407
      %v447 = vmul.f32 %v287, %v409
      %v448 = vmul.f32 %v288, %v411
      %v449 = vmul.f32 %v289, %v413
      %v450 = vmul.f32 %v290, %v415
      %v451 = vmul.f32 %v291, %v417
      %v452 = vmul.f32 %v292, %v419
      %v453 = vmul.f32 %v293, %v421
      %v454 = vmul.f32 %v278, -0.48860252
      %v455 = vmul.f32 %v279, -0.48860252
      %v456 = vmul.f32 %v280, -0.48860252
      %v457 = vmul.f32 %v281, -0.48860252
      %v458 = vmul.f32 %v282, -0.48860252
      %v459 = vmul.f32 %v283, -0.48860252
      %v460 = vmul.f32 %v284, -0.48860252
      %v461 = vmul.f32 %v285, -0.48860252
      %v462 = vmul.f32 %v286, -0.48860252
      %v463 = vmul.f32 %v287, -0.48860252
      %v464 = vmul.f32 %v288, -0.48860252
      %v465 = vmul.f32 %v289, -0.48860252
      %v466 = vmul.f32 %v290, -0.48860252
      %v467 = vmul.f32 %v291, -0.48860252
      %v468 = vmul.f32 %v292, -0.48860252
      %v469 = vmul.f32 %v293, -0.48860252
      %v470 = vmul.f32 %v278, 0.48860252
      %v471 = vmul.f32 %v279, 0.48860252
      %v472 = vmul.f32 %v280, 0.48860252
      %v473 = vmul.f32 %v281, 0.48860252
      %v474 = vmul.f32 %v282, 0.48860252
      %v475 = vmul.f32 %v283, 0.48860252
      %v476 = vmul.f32 %v284, 0.48860252
      %v477 = vmul.f32 %v285, 0.48860252
      %v478 = vmul.f32 %v286, 0.48860252
      %v479 = vmul.f32 %v287, 0.48860252
      %v480 = vmul.f32 %v288, 0.48860252
      %v481 = vmul.f32 %v289, 0.48860252
      %v482 = vmul.f32 %v290, 0.48860252
      %v483 = vmul.f32 %v291, 0.48860252
      %v484 = vmul.f32 %v292, 0.48860252
      %v485 = vmul.f32 %v293, 0.48860252
      %v486 = vmul.f32 %v374, 1.0925485
      %v487 = vmul.f32 %v375, 1.0925485
      %v488 = vmul.f32 %v376, 1.0925485
      %v489 = vmul.f32 %v377, 1.0925485
      %v490 = vmul.f32 %v378, 1.0925485
      %v491 = vmul.f32 %v379, 1.0925485
      %v492 = vmul.f32 %v380, 1.0925485
      %v493 = vmul.f32 %v381, 1.0925485
      %v494 = vmul.f32 %v382, 1.0925485
      %v495 = vmul.f32 %v383, 1.0925485
      %v496 = vmul.f32 %v384, 1.0925485
      %v497 = vmul.f32 %v385, 1.0925485
      %v498 = vmul.f32 %v386, 1.0925485
      %v499 = vmul.f32 %v387, 1.0925485
      %v500 = vmul.f32 %v388, 1.0925485
      %v501 = vmul.f32 %v389, 1.0925485
      %v502 = vmul.f32 %v374, -1.0925485
      %v503 = vmul.f32 %v375, -1.0925485
      %v504 = vmul.f32 %v376, -1.0925485
      %v505 = vmul.f32 %v377, -1.0925485
      %v506 = vmul.f32 %v378, -1.0925485
      %v507 = vmul.f32 %v379, -1.0925485
      %v508 = vmul.f32 %v380, -1.0925485
      %v509 = vmul.f32 %v381, -1.0925485
      %v510 = vmul.f32 %v382, -1.0925485
      %v511 = vmul.f32 %v383, -1.0925485
      %v512 = vmul.f32 %v384, -1.0925485
      %v513 = vmul.f32 %v385, -1.0925485
      %v514 = vmul.f32 %v386, -1.0925485
      %v515 = vmul.f32 %v387, -1.0925485
      %v516 = vmul.f32 %v388, -1.0925485
      %v517 = vmul.f32 %v389, -1.0925485
      %v518 = vmul.f32 %v294, 0.9461747
      %v519 = vmul.f32 %v295, 0.9461747
      %v520 = vmul.f32 %v296, 0.9461747
      %v521 = vmul.f32 %v297, 0.9461747
      %v522 = vmul.f32 %v298, 0.9461747
      %v523 = vmul.f32 %v299, 0.9461747
      %v524 = vmul.f32 %v300, 0.9461747
      %v525 = vmul.f32 %v301, 0.9461747
      %v526 = vmul.f32 %v302, 0.9461747
      %v527 = vmul.f32 %v303, 0.9461747
      %v528 = vmul.f32 %v304, 0.9461747
      %v529 = vmul.f32 %v305, 0.9461747
      %v530 = vmul.f32 %v306, 0.9461747
      %v531 = vmul.f32 %v307, 0.9461747
      %v532 = vmul.f32 %v308, 0.9461747
      %v533 = vmul.f32 %v309, 0.9461747
      %v534 = vsub.f32 %v518, 0.31539157
      %v535 = vsub.f32 %v519, 0.31539157
      %v536 = vsub.f32 %v520, 0.31539157
      %v537 = vsub.f32 %v521, 0.31539157
      %v538 = vsub.f32 %v522, 0.31539157
      %v539 = vsub.f32 %v523, 0.31539157
      %v540 = vsub.f32 %v524, 0.31539157
      %v541 = vsub.f32 %v525, 0.31539157
      %v542 = vsub.f32 %v526, 0.31539157
      %v543 = vsub.f32 %v527, 0.31539157
      %v544 = vsub.f32 %v528, 0.31539157
      %v545 = vsub.f32 %v529, 0.31539157
      %v546 = vsub.f32 %v530, 0.31539157
      %v547 = vsub.f32 %v531, 0.31539157
      %v548 = vsub.f32 %v532, 0.31539157
      %v549 = vsub.f32 %v533, 0.31539157
      %v550 = vmul.f32 %v438, -1.0925485
      %v551 = vmul.f32 %v439, -1.0925485
      %v552 = vmul.f32 %v440, -1.0925485
      %v553 = vmul.f32 %v441, -1.0925485
      %v554 = vmul.f32 %v442, -1.0925485
      %v555 = vmul.f32 %v443, -1.0925485
      %v556 = vmul.f32 %v444, -1.0925485
      %v557 = vmul.f32 %v445, -1.0925485
      %v558 = vmul.f32 %v446, -1.0925485
      %v559 = vmul.f32 %v447, -1.0925485
      %v560 = vmul.f32 %v448, -1.0925485
      %v561 = vmul.f32 %v449, -1.0925485
      %v562 = vmul.f32 %v450, -1.0925485
      %v563 = vmul.f32 %v451, -1.0925485
      %v564 = vmul.f32 %v452, -1.0925485
      %v565 = vmul.f32 %v453, -1.0925485
      %582 = vrot.lane.b32.xlu0 %v294, 127
      %v583 = vpop.permute.xlu0 %582
      %584 = vrot.lane.b32.xlu0 %v295, 127
      %v585 = vpop.permute.xlu0 %584
      %586 = vrot.lane.b32.xlu0 %v296, 127
      %v587 = vpop.permute.xlu0 %586
      %588 = vrot.lane.b32.xlu0 %v297, 127
      %v589 = vpop.permute.xlu0 %588
      %590 = vrot.lane.b32.xlu0 %v298, 127
      %v591 = vpop.permute.xlu0 %590
      %592 = vrot.lane.b32.xlu0 %v299, 127
      %v593 = vpop.permute.xlu0 %592
      %594 = vrot.lane.b32.xlu0 %v300, 127
      %v595 = vpop.permute.xlu0 %594
      %596 = vrot.lane.b32.xlu0 %v301, 127
      %v597 = vpop.permute.xlu0 %596
      %598 = vrot.lane.b32.xlu0 %v302, 127
      %v599 = vpop.permute.xlu0 %598
      %600 = vrot.lane.b32.xlu0 %v303, 127
      %v601 = vpop.permute.xlu0 %600
      %602 = vrot.lane.b32.xlu0 %v304, 127
      %v603 = vpop.permute.xlu0 %602
      %604 = vrot.lane.b32.xlu0 %v305, 127
      %v605 = vpop.permute.xlu0 %604
      %606 = vrot.lane.b32.xlu0 %v306, 127
      %v607 = vpop.permute.xlu0 %606
      %608 = vrot.lane.b32.xlu0 %v307, 127
      %v609 = vpop.permute.xlu0 %608
      %610 = vrot.lane.b32.xlu0 %v308, 127
      %v611 = vpop.permute.xlu0 %610
      %612 = vrot.lane.b32.xlu0 %v309, 127
      %v613 = vpop.permute.xlu0 %612
      %v630 = vsub.f32 %v294, %v583
      %v631 = vsub.f32 %v295, %v585
      %v632 = vsub.f32 %v296, %v587
      %v633 = vsub.f32 %v297, %v589
      %v634 = vsub.f32 %v298, %v591
      %v635 = vsub.f32 %v299, %v593
      %v636 = vsub.f32 %v300, %v595
      %v637 = vsub.f32 %v301, %v597
      %v638 = vsub.f32 %v302, %v599
      %v639 = vsub.f32 %v303, %v601
      %v640 = vsub.f32 %v304, %v603
      %v641 = vsub.f32 %v305, %v605
      %v642 = vsub.f32 %v306, %v607
      %v643 = vsub.f32 %v307, %v609
      %v644 = vsub.f32 %v308, %v611
      %v645 = vsub.f32 %v309, %v613
      %v646 = vmul.f32 %v630, 0.54627424
      %v647 = vmul.f32 %v631, 0.54627424
      %v648 = vmul.f32 %v632, 0.54627424
      %v649 = vmul.f32 %v633, 0.54627424
      %v650 = vmul.f32 %v634, 0.54627424
      %v651 = vmul.f32 %v635, 0.54627424
      %v652 = vmul.f32 %v636, 0.54627424
      %v653 = vmul.f32 %v637, 0.54627424
      %v654 = vmul.f32 %v638, 0.54627424
      %v655 = vmul.f32 %v639, 0.54627424
      %v656 = vmul.f32 %v640, 0.54627424
      %v657 = vmul.f32 %v641, 0.54627424
      %v658 = vmul.f32 %v642, 0.54627424
      %v659 = vmul.f32 %v643, 0.54627424
      %v660 = vmul.f32 %v644, 0.54627424
      %v661 = vmul.f32 %v645, 0.54627424
      %v662 = vmul.f32 %v278, 0.5900436
      %v663 = vmul.f32 %v279, 0.5900436
      %v664 = vmul.f32 %v280, 0.5900436
      %v665 = vmul.f32 %v281, 0.5900436
      %v666 = vmul.f32 %v282, 0.5900436
      %v667 = vmul.f32 %v283, 0.5900436
      %v668 = vmul.f32 %v284, 0.5900436
      %v669 = vmul.f32 %v285, 0.5900436
      %v670 = vmul.f32 %v286, 0.5900436
      %v671 = vmul.f32 %v287, 0.5900436
      %v672 = vmul.f32 %v288, 0.5900436
      %v673 = vmul.f32 %v289, 0.5900436
      %v674 = vmul.f32 %v290, 0.5900436
      %v675 = vmul.f32 %v291, 0.5900436
      %v676 = vmul.f32 %v292, 0.5900436
      %v677 = vmul.f32 %v293, 0.5900436
      %v678 = vmul.f32 %v294, -3.0
      %v679 = vmul.f32 %v295, -3.0
      %v680 = vmul.f32 %v296, -3.0
      %v681 = vmul.f32 %v297, -3.0
      %v682 = vmul.f32 %v298, -3.0
      %v683 = vmul.f32 %v299, -3.0
      %v684 = vmul.f32 %v300, -3.0
      %v685 = vmul.f32 %v301, -3.0
      %v686 = vmul.f32 %v302, -3.0
      %v687 = vmul.f32 %v303, -3.0
      %v688 = vmul.f32 %v304, -3.0
      %v689 = vmul.f32 %v305, -3.0
      %v690 = vmul.f32 %v306, -3.0
      %v691 = vmul.f32 %v307, -3.0
      %v692 = vmul.f32 %v308, -3.0
      %v693 = vmul.f32 %v309, -3.0
      %v694 = vadd.f32 %v678, %v583
      %v695 = vadd.f32 %v679, %v585
      %v696 = vadd.f32 %v680, %v587
      %v697 = vadd.f32 %v681, %v589
      %v698 = vadd.f32 %v682, %v591
      %v699 = vadd.f32 %v683, %v593
      %v700 = vadd.f32 %v684, %v595
      %v701 = vadd.f32 %v685, %v597
      %v702 = vadd.f32 %v686, %v599
      %v703 = vadd.f32 %v687, %v601
      %v704 = vadd.f32 %v688, %v603
      %v705 = vadd.f32 %v689, %v605
      %v706 = vadd.f32 %v690, %v607
      %v707 = vadd.f32 %v691, %v609
      %v708 = vadd.f32 %v692, %v611
      %v709 = vadd.f32 %v693, %v613
      %726 = vrot.lane.b32.xlu0 %v694, 1
      %v727 = vpop.permute.xlu0 %726
      %728 = vrot.lane.b32.xlu0 %v695, 1
      %v729 = vpop.permute.xlu0 %728
      %730 = vrot.lane.b32.xlu0 %v696, 1
      %v731 = vpop.permute.xlu0 %730
      %732 = vrot.lane.b32.xlu0 %v697, 1
      %v733 = vpop.permute.xlu0 %732
      %734 = vrot.lane.b32.xlu0 %v698, 1
      %v735 = vpop.permute.xlu0 %734
      %736 = vrot.lane.b32.xlu0 %v699, 1
      %v737 = vpop.permute.xlu0 %736
      %738 = vrot.lane.b32.xlu0 %v700, 1
      %v739 = vpop.permute.xlu0 %738
      %740 = vrot.lane.b32.xlu0 %v701, 1
      %v741 = vpop.permute.xlu0 %740
      %742 = vrot.lane.b32.xlu0 %v702, 1
      %v743 = vpop.permute.xlu0 %742
      %744 = vrot.lane.b32.xlu0 %v703, 1
      %v745 = vpop.permute.xlu0 %744
      %746 = vrot.lane.b32.xlu0 %v704, 1
      %v747 = vpop.permute.xlu0 %746
      %748 = vrot.lane.b32.xlu0 %v705, 1
      %v749 = vpop.permute.xlu0 %748
      %750 = vrot.lane.b32.xlu0 %v706, 1
      %v751 = vpop.permute.xlu0 %750
      %752 = vrot.lane.b32.xlu0 %v707, 1
      %v753 = vpop.permute.xlu0 %752
      %754 = vrot.lane.b32.xlu0 %v708, 1
      %v755 = vpop.permute.xlu0 %754
      %756 = vrot.lane.b32.xlu0 %v709, 1
      %v757 = vpop.permute.xlu0 %756
      %v774 = vmul.f32 %v662, %v727
      %v775 = vmul.f32 %v663, %v729
      %v776 = vmul.f32 %v664, %v731
      %v777 = vmul.f32 %v665, %v733
      %v778 = vmul.f32 %v666, %v735
      %v779 = vmul.f32 %v667, %v737
      %v780 = vmul.f32 %v668, %v739
      %v781 = vmul.f32 %v669, %v741
      %v782 = vmul.f32 %v670, %v743
      %v783 = vmul.f32 %v671, %v745
      %v784 = vmul.f32 %v672, %v747
      %v785 = vmul.f32 %v673, %v749
      %v786 = vmul.f32 %v674, %v751
      %v787 = vmul.f32 %v675, %v753
      %v788 = vmul.f32 %v676, %v755
      %v789 = vmul.f32 %v677, %v757
      %v790 = vmul.f32 %v374, 2.8906114
      %v791 = vmul.f32 %v375, 2.8906114
      %v792 = vmul.f32 %v376, 2.8906114
      %v793 = vmul.f32 %v377, 2.8906114
      %v794 = vmul.f32 %v378, 2.8906114
      %v795 = vmul.f32 %v379, 2.8906114
      %v796 = vmul.f32 %v380, 2.8906114
      %v797 = vmul.f32 %v381, 2.8906114
      %v798 = vmul.f32 %v382, 2.8906114
      %v799 = vmul.f32 %v383, 2.8906114
      %v800 = vmul.f32 %v384, 2.8906114
      %v801 = vmul.f32 %v385, 2.8906114
      %v802 = vmul.f32 %v386, 2.8906114
      %v803 = vmul.f32 %v387, 2.8906114
      %v804 = vmul.f32 %v388, 2.8906114
      %v805 = vmul.f32 %v389, 2.8906114
      %v806 = vmul.f32 %v790, %v391
      %v807 = vmul.f32 %v791, %v393
      %v808 = vmul.f32 %v792, %v395
      %v809 = vmul.f32 %v793, %v397
      %v810 = vmul.f32 %v794, %v399
      %v811 = vmul.f32 %v795, %v401
      %v812 = vmul.f32 %v796, %v403
      %v813 = vmul.f32 %v797, %v405
      %v814 = vmul.f32 %v798, %v407
      %v815 = vmul.f32 %v799, %v409
      %v816 = vmul.f32 %v800, %v411
      %v817 = vmul.f32 %v801, %v413
      %v818 = vmul.f32 %v802, %v415
      %v819 = vmul.f32 %v803, %v417
      %v820 = vmul.f32 %v804, %v419
      %v821 = vmul.f32 %v805, %v421
      %v822 = vmul.f32 %v278, 0.4570458
      %v823 = vmul.f32 %v279, 0.4570458
      %v824 = vmul.f32 %v280, 0.4570458
      %v825 = vmul.f32 %v281, 0.4570458
      %v826 = vmul.f32 %v282, 0.4570458
      %v827 = vmul.f32 %v283, 0.4570458
      %v828 = vmul.f32 %v284, 0.4570458
      %v829 = vmul.f32 %v285, 0.4570458
      %v830 = vmul.f32 %v286, 0.4570458
      %v831 = vmul.f32 %v287, 0.4570458
      %v832 = vmul.f32 %v288, 0.4570458
      %v833 = vmul.f32 %v289, 0.4570458
      %v834 = vmul.f32 %v290, 0.4570458
      %v835 = vmul.f32 %v291, 0.4570458
      %v836 = vmul.f32 %v292, 0.4570458
      %v837 = vmul.f32 %v293, 0.4570458
      %v838 = vmul.f32 %v294, 5.0
      %v839 = vmul.f32 %v295, 5.0
      %v840 = vmul.f32 %v296, 5.0
      %v841 = vmul.f32 %v297, 5.0
      %v842 = vmul.f32 %v298, 5.0
      %v843 = vmul.f32 %v299, 5.0
      %v844 = vmul.f32 %v300, 5.0
      %v845 = vmul.f32 %v301, 5.0
      %v846 = vmul.f32 %v302, 5.0
      %v847 = vmul.f32 %v303, 5.0
      %v848 = vmul.f32 %v304, 5.0
      %v849 = vmul.f32 %v305, 5.0
      %v850 = vmul.f32 %v306, 5.0
      %v851 = vmul.f32 %v307, 5.0
      %v852 = vmul.f32 %v308, 5.0
      %v853 = vmul.f32 %v309, 5.0
      %v854 = vsub.f32 1.0, %v838
      %v855 = vsub.f32 1.0, %v839
      %v856 = vsub.f32 1.0, %v840
      %v857 = vsub.f32 1.0, %v841
      %v858 = vsub.f32 1.0, %v842
      %v859 = vsub.f32 1.0, %v843
      %v860 = vsub.f32 1.0, %v844
      %v861 = vsub.f32 1.0, %v845
      %v862 = vsub.f32 1.0, %v846
      %v863 = vsub.f32 1.0, %v847
      %v864 = vsub.f32 1.0, %v848
      %v865 = vsub.f32 1.0, %v849
      %v866 = vsub.f32 1.0, %v850
      %v867 = vsub.f32 1.0, %v851
      %v868 = vsub.f32 1.0, %v852
      %v869 = vsub.f32 1.0, %v853
      %886 = vrot.lane.b32.xlu0 %v854, 127
      %v887 = vpop.permute.xlu0 %886
      %888 = vrot.lane.b32.xlu0 %v855, 127
      %v889 = vpop.permute.xlu0 %888
      %890 = vrot.lane.b32.xlu0 %v856, 127
      %v891 = vpop.permute.xlu0 %890
      %892 = vrot.lane.b32.xlu0 %v857, 127
      %v893 = vpop.permute.xlu0 %892
      %894 = vrot.lane.b32.xlu0 %v858, 127
      %v895 = vpop.permute.xlu0 %894
      %896 = vrot.lane.b32.xlu0 %v859, 127
      %v897 = vpop.permute.xlu0 %896
      %898 = vrot.lane.b32.xlu0 %v860, 127
      %v899 = vpop.permute.xlu0 %898
      %900 = vrot.lane.b32.xlu0 %v861, 127
      %v901 = vpop.permute.xlu0 %900
      %902 = vrot.lane.b32.xlu0 %v862, 127
      %v903 = vpop.permute.xlu0 %902
      %904 = vrot.lane.b32.xlu0 %v863, 127
      %v905 = vpop.permute.xlu0 %904
      %906 = vrot.lane.b32.xlu0 %v864, 127
      %v907 = vpop.permute.xlu0 %906
      %908 = vrot.lane.b32.xlu0 %v865, 127
      %v909 = vpop.permute.xlu0 %908
      %910 = vrot.lane.b32.xlu0 %v866, 127
      %v911 = vpop.permute.xlu0 %910
      %912 = vrot.lane.b32.xlu0 %v867, 127
      %v913 = vpop.permute.xlu0 %912
      %914 = vrot.lane.b32.xlu0 %v868, 127
      %v915 = vpop.permute.xlu0 %914
      %916 = vrot.lane.b32.xlu0 %v869, 127
      %v917 = vpop.permute.xlu0 %916
      %v934 = vmul.f32 %v822, %v887
      %v935 = vmul.f32 %v823, %v889
      %v936 = vmul.f32 %v824, %v891
      %v937 = vmul.f32 %v825, %v893
      %v938 = vmul.f32 %v826, %v895
      %v939 = vmul.f32 %v827, %v897
      %v940 = vmul.f32 %v828, %v899
      %v941 = vmul.f32 %v829, %v901
      %v942 = vmul.f32 %v830, %v903
      %v943 = vmul.f32 %v831, %v905
      %v944 = vmul.f32 %v832, %v907
      %v945 = vmul.f32 %v833, %v909
      %v946 = vmul.f32 %v834, %v911
      %v947 = vmul.f32 %v835, %v913
      %v948 = vmul.f32 %v836, %v915
      %v949 = vmul.f32 %v837, %v917
      %v950 = vmul.f32 %v278, 0.37317634
      %v951 = vmul.f32 %v279, 0.37317634
      %v952 = vmul.f32 %v280, 0.37317634
      %v953 = vmul.f32 %v281, 0.37317634
      %v954 = vmul.f32 %v282, 0.37317634
      %v955 = vmul.f32 %v283, 0.37317634
      %v956 = vmul.f32 %v284, 0.37317634
      %v957 = vmul.f32 %v285, 0.37317634
      %v958 = vmul.f32 %v286, 0.37317634
      %v959 = vmul.f32 %v287, 0.37317634
      %v960 = vmul.f32 %v288, 0.37317634
      %v961 = vmul.f32 %v289, 0.37317634
      %v962 = vmul.f32 %v290, 0.37317634
      %v963 = vmul.f32 %v291, 0.37317634
      %v964 = vmul.f32 %v292, 0.37317634
      %v965 = vmul.f32 %v293, 0.37317634
      %v966 = vsub.f32 %v838, 3.0
      %v967 = vsub.f32 %v839, 3.0
      %v968 = vsub.f32 %v840, 3.0
      %v969 = vsub.f32 %v841, 3.0
      %v970 = vsub.f32 %v842, 3.0
      %v971 = vsub.f32 %v843, 3.0
      %v972 = vsub.f32 %v844, 3.0
      %v973 = vsub.f32 %v845, 3.0
      %v974 = vsub.f32 %v846, 3.0
      %v975 = vsub.f32 %v847, 3.0
      %v976 = vsub.f32 %v848, 3.0
      %v977 = vsub.f32 %v849, 3.0
      %v978 = vsub.f32 %v850, 3.0
      %v979 = vsub.f32 %v851, 3.0
      %v980 = vsub.f32 %v852, 3.0
      %v981 = vsub.f32 %v853, 3.0
      %v982 = vmul.f32 %v950, %v966
      %v983 = vmul.f32 %v951, %v967
      %v984 = vmul.f32 %v952, %v968
      %v985 = vmul.f32 %v953, %v969
      %v986 = vmul.f32 %v954, %v970
      %v987 = vmul.f32 %v955, %v971
      %v988 = vmul.f32 %v956, %v972
      %v989 = vmul.f32 %v957, %v973
      %v990 = vmul.f32 %v958, %v974
      %v991 = vmul.f32 %v959, %v975
      %v992 = vmul.f32 %v960, %v976
      %v993 = vmul.f32 %v961, %v977
      %v994 = vmul.f32 %v962, %v978
      %v995 = vmul.f32 %v963, %v979
      %v996 = vmul.f32 %v964, %v980
      %v997 = vmul.f32 %v965, %v981
      %998 = vrot.lane.b32.xlu0 %v854, 126
      %v999 = vpop.permute.xlu0 %998
      %1000 = vrot.lane.b32.xlu0 %v855, 126
      %v1001 = vpop.permute.xlu0 %1000
      %1002 = vrot.lane.b32.xlu0 %v856, 126
      %v1003 = vpop.permute.xlu0 %1002
      %1004 = vrot.lane.b32.xlu0 %v857, 126
      %v1005 = vpop.permute.xlu0 %1004
      %1006 = vrot.lane.b32.xlu0 %v858, 126
      %v1007 = vpop.permute.xlu0 %1006
      %1008 = vrot.lane.b32.xlu0 %v859, 126
      %v1009 = vpop.permute.xlu0 %1008
      %1010 = vrot.lane.b32.xlu0 %v860, 126
      %v1011 = vpop.permute.xlu0 %1010
      %1012 = vrot.lane.b32.xlu0 %v861, 126
      %v1013 = vpop.permute.xlu0 %1012
      %1014 = vrot.lane.b32.xlu0 %v862, 126
      %v1015 = vpop.permute.xlu0 %1014
      %1016 = vrot.lane.b32.xlu0 %v863, 126
      %v1017 = vpop.permute.xlu0 %1016
      %1018 = vrot.lane.b32.xlu0 %v864, 126
      %v1019 = vpop.permute.xlu0 %1018
      %1020 = vrot.lane.b32.xlu0 %v865, 126
      %v1021 = vpop.permute.xlu0 %1020
      %1022 = vrot.lane.b32.xlu0 %v866, 126
      %v1023 = vpop.permute.xlu0 %1022
      %1024 = vrot.lane.b32.xlu0 %v867, 126
      %v1025 = vpop.permute.xlu0 %1024
      %1026 = vrot.lane.b32.xlu0 %v868, 126
      %v1027 = vpop.permute.xlu0 %1026
      %1028 = vrot.lane.b32.xlu0 %v869, 126
      %v1029 = vpop.permute.xlu0 %1028
      %v1046 = vmul.f32 %v822, %v999
      %v1047 = vmul.f32 %v823, %v1001
      %v1048 = vmul.f32 %v824, %v1003
      %v1049 = vmul.f32 %v825, %v1005
      %v1050 = vmul.f32 %v826, %v1007
      %v1051 = vmul.f32 %v827, %v1009
      %v1052 = vmul.f32 %v828, %v1011
      %v1053 = vmul.f32 %v829, %v1013
      %v1054 = vmul.f32 %v830, %v1015
      %v1055 = vmul.f32 %v831, %v1017
      %v1056 = vmul.f32 %v832, %v1019
      %v1057 = vmul.f32 %v833, %v1021
      %v1058 = vmul.f32 %v834, %v1023
      %v1059 = vmul.f32 %v835, %v1025
      %v1060 = vmul.f32 %v836, %v1027
      %v1061 = vmul.f32 %v837, %v1029
      %v1062 = vmul.f32 %v278, 1.4453057
      %v1063 = vmul.f32 %v279, 1.4453057
      %v1064 = vmul.f32 %v280, 1.4453057
      %v1065 = vmul.f32 %v281, 1.4453057
      %v1066 = vmul.f32 %v282, 1.4453057
      %v1067 = vmul.f32 %v283, 1.4453057
      %v1068 = vmul.f32 %v284, 1.4453057
      %v1069 = vmul.f32 %v285, 1.4453057
      %v1070 = vmul.f32 %v286, 1.4453057
      %v1071 = vmul.f32 %v287, 1.4453057
      %v1072 = vmul.f32 %v288, 1.4453057
      %v1073 = vmul.f32 %v289, 1.4453057
      %v1074 = vmul.f32 %v290, 1.4453057
      %v1075 = vmul.f32 %v291, 1.4453057
      %v1076 = vmul.f32 %v292, 1.4453057
      %v1077 = vmul.f32 %v293, 1.4453057
      %1094 = vrot.lane.b32.xlu0 %v630, 2
      %v1095 = vpop.permute.xlu0 %1094
      %1096 = vrot.lane.b32.xlu0 %v631, 2
      %v1097 = vpop.permute.xlu0 %1096
      %1098 = vrot.lane.b32.xlu0 %v632, 2
      %v1099 = vpop.permute.xlu0 %1098
      %1100 = vrot.lane.b32.xlu0 %v633, 2
      %v1101 = vpop.permute.xlu0 %1100
      %1102 = vrot.lane.b32.xlu0 %v634, 2
      %v1103 = vpop.permute.xlu0 %1102
      %1104 = vrot.lane.b32.xlu0 %v635, 2
      %v1105 = vpop.permute.xlu0 %1104
      %1106 = vrot.lane.b32.xlu0 %v636, 2
      %v1107 = vpop.permute.xlu0 %1106
      %1108 = vrot.lane.b32.xlu0 %v637, 2
      %v1109 = vpop.permute.xlu0 %1108
      %1110 = vrot.lane.b32.xlu0 %v638, 2
      %v1111 = vpop.permute.xlu0 %1110
      %1112 = vrot.lane.b32.xlu0 %v639, 2
      %v1113 = vpop.permute.xlu0 %1112
      %1114 = vrot.lane.b32.xlu0 %v640, 2
      %v1115 = vpop.permute.xlu0 %1114
      %1116 = vrot.lane.b32.xlu0 %v641, 2
      %v1117 = vpop.permute.xlu0 %1116
      %1118 = vrot.lane.b32.xlu0 %v642, 2
      %v1119 = vpop.permute.xlu0 %1118
      %1120 = vrot.lane.b32.xlu0 %v643, 2
      %v1121 = vpop.permute.xlu0 %1120
      %1122 = vrot.lane.b32.xlu0 %v644, 2
      %v1123 = vpop.permute.xlu0 %1122
      %1124 = vrot.lane.b32.xlu0 %v645, 2
      %v1125 = vpop.permute.xlu0 %1124
      %v1142 = vmul.f32 %v1062, %v1095
      %v1143 = vmul.f32 %v1063, %v1097
      %v1144 = vmul.f32 %v1064, %v1099
      %v1145 = vmul.f32 %v1065, %v1101
      %v1146 = vmul.f32 %v1066, %v1103
      %v1147 = vmul.f32 %v1067, %v1105
      %v1148 = vmul.f32 %v1068, %v1107
      %v1149 = vmul.f32 %v1069, %v1109
      %v1150 = vmul.f32 %v1070, %v1111
      %v1151 = vmul.f32 %v1071, %v1113
      %v1152 = vmul.f32 %v1072, %v1115
      %v1153 = vmul.f32 %v1073, %v1117
      %v1154 = vmul.f32 %v1074, %v1119
      %v1155 = vmul.f32 %v1075, %v1121
      %v1156 = vmul.f32 %v1076, %v1123
      %v1157 = vmul.f32 %v1077, %v1125
      %v1158 = vsub.f32 0.0, %v294
      %v1159 = vsub.f32 0.0, %v295
      %v1160 = vsub.f32 0.0, %v296
      %v1161 = vsub.f32 0.0, %v297
      %v1162 = vsub.f32 0.0, %v298
      %v1163 = vsub.f32 0.0, %v299
      %v1164 = vsub.f32 0.0, %v300
      %v1165 = vsub.f32 0.0, %v301
      %v1166 = vsub.f32 0.0, %v302
      %v1167 = vsub.f32 0.0, %v303
      %v1168 = vsub.f32 0.0, %v304
      %v1169 = vsub.f32 0.0, %v305
      %v1170 = vsub.f32 0.0, %v306
      %v1171 = vsub.f32 0.0, %v307
      %v1172 = vsub.f32 0.0, %v308
      %v1173 = vsub.f32 0.0, %v309
      %v1174 = vmul.f32 %v294, 3.0
      %v1175 = vmul.f32 %v295, 3.0
      %v1176 = vmul.f32 %v296, 3.0
      %v1177 = vmul.f32 %v297, 3.0
      %v1178 = vmul.f32 %v298, 3.0
      %v1179 = vmul.f32 %v299, 3.0
      %v1180 = vmul.f32 %v300, 3.0
      %v1181 = vmul.f32 %v301, 3.0
      %v1182 = vmul.f32 %v302, 3.0
      %v1183 = vmul.f32 %v303, 3.0
      %v1184 = vmul.f32 %v304, 3.0
      %v1185 = vmul.f32 %v305, 3.0
      %v1186 = vmul.f32 %v306, 3.0
      %v1187 = vmul.f32 %v307, 3.0
      %v1188 = vmul.f32 %v308, 3.0
      %v1189 = vmul.f32 %v309, 3.0
      %1206 = vrot.lane.b32.xlu0 %v1174, 127
      %v1207 = vpop.permute.xlu0 %1206
      %1208 = vrot.lane.b32.xlu0 %v1175, 127
      %v1209 = vpop.permute.xlu0 %1208
      %1210 = vrot.lane.b32.xlu0 %v1176, 127
      %v1211 = vpop.permute.xlu0 %1210
      %1212 = vrot.lane.b32.xlu0 %v1177, 127
      %v1213 = vpop.permute.xlu0 %1212
      %1214 = vrot.lane.b32.xlu0 %v1178, 127
      %v1215 = vpop.permute.xlu0 %1214
      %1216 = vrot.lane.b32.xlu0 %v1179, 127
      %v1217 = vpop.permute.xlu0 %1216
      %1218 = vrot.lane.b32.xlu0 %v1180, 127
      %v1219 = vpop.permute.xlu0 %1218
      %1220 = vrot.lane.b32.xlu0 %v1181, 127
      %v1221 = vpop.permute.xlu0 %1220
      %1222 = vrot.lane.b32.xlu0 %v1182, 127
      %v1223 = vpop.permute.xlu0 %1222
      %1224 = vrot.lane.b32.xlu0 %v1183, 127
      %v1225 = vpop.permute.xlu0 %1224
      %1226 = vrot.lane.b32.xlu0 %v1184, 127
      %v1227 = vpop.permute.xlu0 %1226
      %1228 = vrot.lane.b32.xlu0 %v1185, 127
      %v1229 = vpop.permute.xlu0 %1228
      %1230 = vrot.lane.b32.xlu0 %v1186, 127
      %v1231 = vpop.permute.xlu0 %1230
      %1232 = vrot.lane.b32.xlu0 %v1187, 127
      %v1233 = vpop.permute.xlu0 %1232
      %1234 = vrot.lane.b32.xlu0 %v1188, 127
      %v1235 = vpop.permute.xlu0 %1234
      %1236 = vrot.lane.b32.xlu0 %v1189, 127
      %v1237 = vpop.permute.xlu0 %1236
      %v1254 = vadd.f32 %v1158, %v1207
      %v1255 = vadd.f32 %v1159, %v1209
      %v1256 = vadd.f32 %v1160, %v1211
      %v1257 = vadd.f32 %v1161, %v1213
      %v1258 = vadd.f32 %v1162, %v1215
      %v1259 = vadd.f32 %v1163, %v1217
      %v1260 = vadd.f32 %v1164, %v1219
      %v1261 = vadd.f32 %v1165, %v1221
      %v1262 = vadd.f32 %v1166, %v1223
      %v1263 = vadd.f32 %v1167, %v1225
      %v1264 = vadd.f32 %v1168, %v1227
      %v1265 = vadd.f32 %v1169, %v1229
      %v1266 = vadd.f32 %v1170, %v1231
      %v1267 = vadd.f32 %v1171, %v1233
      %v1268 = vadd.f32 %v1172, %v1235
      %v1269 = vadd.f32 %v1173, %v1237
      %v1270 = vmul.f32 %v662, %v1254
      %v1271 = vmul.f32 %v663, %v1255
      %v1272 = vmul.f32 %v664, %v1256
      %v1273 = vmul.f32 %v665, %v1257
      %v1274 = vmul.f32 %v666, %v1258
      %v1275 = vmul.f32 %v667, %v1259
      %v1276 = vmul.f32 %v668, %v1260
      %v1277 = vmul.f32 %v669, %v1261
      %v1278 = vmul.f32 %v670, %v1262
      %v1279 = vmul.f32 %v671, %v1263
      %v1280 = vmul.f32 %v672, %v1264
      %v1281 = vmul.f32 %v673, %v1265
      %v1282 = vmul.f32 %v674, %v1266
      %v1283 = vmul.f32 %v675, %v1267
      %v1284 = vmul.f32 %v676, %v1268
      %v1285 = vmul.f32 %v677, %v1269
      %v1286 = vld [vmem:[%s2] sm:$0xff]
      %v1287 = vld [vmem:[%s2 + $0x8] sm:$0xff]
      %v1288 = vlaneseq
      %v1289 = vshrl.u32 %v1288, 7
      %v1290 = vsub.s32 0, %v1289
      %v1291 = vrot.slane %v1286, %v1290
      %v1292 = vmul.f32 %v1291, 0.2820948
      %1294 = vset.pattern.permute.xlu0 1
      %1295 = vperm.xlu0 %1294, %v454
      %v1296 = vpop.permute.xlu0 %1295
      %1299 = vset.pattern.permute.xlu0 1
      %1300 = vperm.xlu0 %1299, %v455
      %v1301 = vpop.permute.xlu0 %1300
      %1304 = vset.pattern.permute.xlu0 1
      %1305 = vperm.xlu0 %1304, %v456
      %v1306 = vpop.permute.xlu0 %1305
      %1309 = vset.pattern.permute.xlu0 1
      %1310 = vperm.xlu0 %1309, %v457
      %v1311 = vpop.permute.xlu0 %1310
      %1314 = vset.pattern.permute.xlu0 1
      %1315 = vperm.xlu0 %1314, %v458
      %v1316 = vpop.permute.xlu0 %1315
      %1319 = vset.pattern.permute.xlu0 1
      %1320 = vperm.xlu0 %1319, %v459
      %v1321 = vpop.permute.xlu0 %1320
      %1324 = vset.pattern.permute.xlu0 1
      %1325 = vperm.xlu0 %1324, %v460
      %v1326 = vpop.permute.xlu0 %1325
      %1329 = vset.pattern.permute.xlu0 1
      %1330 = vperm.xlu0 %1329, %v461
      %v1331 = vpop.permute.xlu0 %1330
      %1334 = vset.pattern.permute.xlu0 1
      %1335 = vperm.xlu0 %1334, %v462
      %v1336 = vpop.permute.xlu0 %1335
      %1339 = vset.pattern.permute.xlu0 1
      %1340 = vperm.xlu0 %1339, %v463
      %v1341 = vpop.permute.xlu0 %1340
      %1344 = vset.pattern.permute.xlu0 1
      %1345 = vperm.xlu0 %1344, %v464
      %v1346 = vpop.permute.xlu0 %1345
      %1349 = vset.pattern.permute.xlu0 1
      %1350 = vperm.xlu0 %1349, %v465
      %v1351 = vpop.permute.xlu0 %1350
      %1354 = vset.pattern.permute.xlu0 1
      %1355 = vperm.xlu0 %1354, %v466
      %v1356 = vpop.permute.xlu0 %1355
      %1359 = vset.pattern.permute.xlu0 1
      %1360 = vperm.xlu0 %1359, %v467
      %v1361 = vpop.permute.xlu0 %1360
      %1364 = vset.pattern.permute.xlu0 1
      %1365 = vperm.xlu0 %1364, %v468
      %v1366 = vpop.permute.xlu0 %1365
      %1369 = vset.pattern.permute.xlu0 1
      %1370 = vperm.xlu0 %1369, %v469
      %v1371 = vpop.permute.xlu0 %1370
      %v1373 = vlaneseq
      %v1374 = vshrl.u32 %v1373, 7
      %v1375 = vsub.s32 1, %v1374
      %v1376 = vrot.slane %v1286, %v1375
      %v1377 = vmul.f32 %v1296, %v1376
      %v1378 = vmul.f32 %v1301, %v1376
      %v1379 = vmul.f32 %v1306, %v1376
      %v1380 = vmul.f32 %v1311, %v1376
      %v1381 = vmul.f32 %v1316, %v1376
      %v1382 = vmul.f32 %v1321, %v1376
      %v1383 = vmul.f32 %v1326, %v1376
      %v1384 = vmul.f32 %v1331, %v1376
      %v1385 = vmul.f32 %v1336, %v1376
      %v1386 = vmul.f32 %v1341, %v1376
      %v1387 = vmul.f32 %v1346, %v1376
      %v1388 = vmul.f32 %v1351, %v1376
      %v1389 = vmul.f32 %v1356, %v1376
      %v1390 = vmul.f32 %v1361, %v1376
      %v1391 = vmul.f32 %v1366, %v1376
      %v1392 = vmul.f32 %v1371, %v1376
      %v1393 = vadd.f32 %v1292, %v1377
      %v1394 = vadd.f32 %v1292, %v1378
      %v1395 = vadd.f32 %v1292, %v1379
      %v1396 = vadd.f32 %v1292, %v1380
      %v1397 = vadd.f32 %v1292, %v1381
      %v1398 = vadd.f32 %v1292, %v1382
      %v1399 = vadd.f32 %v1292, %v1383
      %v1400 = vadd.f32 %v1292, %v1384
      %v1401 = vadd.f32 %v1292, %v1385
      %v1402 = vadd.f32 %v1292, %v1386
      %v1403 = vadd.f32 %v1292, %v1387
      %v1404 = vadd.f32 %v1292, %v1388
      %v1405 = vadd.f32 %v1292, %v1389
      %v1406 = vadd.f32 %v1292, %v1390
      %v1407 = vadd.f32 %v1292, %v1391
      %v1408 = vadd.f32 %v1292, %v1392
      %1410 = vset.pattern.permute.xlu0 2
      %1411 = vperm.xlu0 %1410, %v470
      %v1412 = vpop.permute.xlu0 %1411
      %1415 = vset.pattern.permute.xlu0 2
      %1416 = vperm.xlu0 %1415, %v471
      %v1417 = vpop.permute.xlu0 %1416
      %1420 = vset.pattern.permute.xlu0 2
      %1421 = vperm.xlu0 %1420, %v472
      %v1422 = vpop.permute.xlu0 %1421
      %1425 = vset.pattern.permute.xlu0 2
      %1426 = vperm.xlu0 %1425, %v473
      %v1427 = vpop.permute.xlu0 %1426
      %1430 = vset.pattern.permute.xlu0 2
      %1431 = vperm.xlu0 %1430, %v474
      %v1432 = vpop.permute.xlu0 %1431
      %1435 = vset.pattern.permute.xlu0 2
      %1436 = vperm.xlu0 %1435, %v475
      %v1437 = vpop.permute.xlu0 %1436
      %1440 = vset.pattern.permute.xlu0 2
      %1441 = vperm.xlu0 %1440, %v476
      %v1442 = vpop.permute.xlu0 %1441
      %1445 = vset.pattern.permute.xlu0 2
      %1446 = vperm.xlu0 %1445, %v477
      %v1447 = vpop.permute.xlu0 %1446
      %1450 = vset.pattern.permute.xlu0 2
      %1451 = vperm.xlu0 %1450, %v478
      %v1452 = vpop.permute.xlu0 %1451
      %1455 = vset.pattern.permute.xlu0 2
      %1456 = vperm.xlu0 %1455, %v479
      %v1457 = vpop.permute.xlu0 %1456
      %1460 = vset.pattern.permute.xlu0 2
      %1461 = vperm.xlu0 %1460, %v480
      %v1462 = vpop.permute.xlu0 %1461
      %1465 = vset.pattern.permute.xlu0 2
      %1466 = vperm.xlu0 %1465, %v481
      %v1467 = vpop.permute.xlu0 %1466
      %1470 = vset.pattern.permute.xlu0 2
      %1471 = vperm.xlu0 %1470, %v482
      %v1472 = vpop.permute.xlu0 %1471
      %1475 = vset.pattern.permute.xlu0 2
      %1476 = vperm.xlu0 %1475, %v483
      %v1477 = vpop.permute.xlu0 %1476
      %1480 = vset.pattern.permute.xlu0 2
      %1481 = vperm.xlu0 %1480, %v484
      %v1482 = vpop.permute.xlu0 %1481
      %1485 = vset.pattern.permute.xlu0 2
      %1486 = vperm.xlu0 %1485, %v485
      %v1487 = vpop.permute.xlu0 %1486
      %v1489 = vlaneseq
      %v1490 = vshrl.u32 %v1489, 7
      %v1491 = vsub.s32 2, %v1490
      %v1492 = vrot.slane %v1286, %v1491
      %v1493 = vmul.f32 %v1412, %v1492
      %v1494 = vmul.f32 %v1417, %v1492
      %v1495 = vmul.f32 %v1422, %v1492
      %v1496 = vmul.f32 %v1427, %v1492
      %v1497 = vmul.f32 %v1432, %v1492
      %v1498 = vmul.f32 %v1437, %v1492
      %v1499 = vmul.f32 %v1442, %v1492
      %v1500 = vmul.f32 %v1447, %v1492
      %v1501 = vmul.f32 %v1452, %v1492
      %v1502 = vmul.f32 %v1457, %v1492
      %v1503 = vmul.f32 %v1462, %v1492
      %v1504 = vmul.f32 %v1467, %v1492
      %v1505 = vmul.f32 %v1472, %v1492
      %v1506 = vmul.f32 %v1477, %v1492
      %v1507 = vmul.f32 %v1482, %v1492
      %v1508 = vmul.f32 %v1487, %v1492
      %v1509 = vadd.f32 %v1393, %v1493
      %v1510 = vadd.f32 %v1394, %v1494
      %v1511 = vadd.f32 %v1395, %v1495
      %v1512 = vadd.f32 %v1396, %v1496
      %v1513 = vadd.f32 %v1397, %v1497
      %v1514 = vadd.f32 %v1398, %v1498
      %v1515 = vadd.f32 %v1399, %v1499
      %v1516 = vadd.f32 %v1400, %v1500
      %v1517 = vadd.f32 %v1401, %v1501
      %v1518 = vadd.f32 %v1402, %v1502
      %v1519 = vadd.f32 %v1403, %v1503
      %v1520 = vadd.f32 %v1404, %v1504
      %v1521 = vadd.f32 %v1405, %v1505
      %v1522 = vadd.f32 %v1406, %v1506
      %v1523 = vadd.f32 %v1407, %v1507
      %v1524 = vadd.f32 %v1408, %v1508
      %1525 = vset.pattern.permute.xlu0 0
      %1526 = vperm.xlu0 %1525, %v454
      %v1527 = vpop.permute.xlu0 %1526
      %1529 = vset.pattern.permute.xlu0 0
      %1530 = vperm.xlu0 %1529, %v455
      %v1531 = vpop.permute.xlu0 %1530
      %1533 = vset.pattern.permute.xlu0 0
      %1534 = vperm.xlu0 %1533, %v456
      %v1535 = vpop.permute.xlu0 %1534
      %1537 = vset.pattern.permute.xlu0 0
      %1538 = vperm.xlu0 %1537, %v457
      %v1539 = vpop.permute.xlu0 %1538
      %1541 = vset.pattern.permute.xlu0 0
      %1542 = vperm.xlu0 %1541, %v458
      %v1543 = vpop.permute.xlu0 %1542
      %1545 = vset.pattern.permute.xlu0 0
      %1546 = vperm.xlu0 %1545, %v459
      %v1547 = vpop.permute.xlu0 %1546
      %1549 = vset.pattern.permute.xlu0 0
      %1550 = vperm.xlu0 %1549, %v460
      %v1551 = vpop.permute.xlu0 %1550
      %1553 = vset.pattern.permute.xlu0 0
      %1554 = vperm.xlu0 %1553, %v461
      %v1555 = vpop.permute.xlu0 %1554
      %1557 = vset.pattern.permute.xlu0 0
      %1558 = vperm.xlu0 %1557, %v462
      %v1559 = vpop.permute.xlu0 %1558
      %1561 = vset.pattern.permute.xlu0 0
      %1562 = vperm.xlu0 %1561, %v463
      %v1563 = vpop.permute.xlu0 %1562
      %1565 = vset.pattern.permute.xlu0 0
      %1566 = vperm.xlu0 %1565, %v464
      %v1567 = vpop.permute.xlu0 %1566
      %1569 = vset.pattern.permute.xlu0 0
      %1570 = vperm.xlu0 %1569, %v465
      %v1571 = vpop.permute.xlu0 %1570
      %1573 = vset.pattern.permute.xlu0 0
      %1574 = vperm.xlu0 %1573, %v466
      %v1575 = vpop.permute.xlu0 %1574
      %1577 = vset.pattern.permute.xlu0 0
      %1578 = vperm.xlu0 %1577, %v467
      %v1579 = vpop.permute.xlu0 %1578
      %1581 = vset.pattern.permute.xlu0 0
      %1582 = vperm.xlu0 %1581, %v468
      %v1583 = vpop.permute.xlu0 %1582
      %1585 = vset.pattern.permute.xlu0 0
      %1586 = vperm.xlu0 %1585, %v469
      %v1587 = vpop.permute.xlu0 %1586
      %v1589 = vlaneseq
      %v1590 = vshrl.u32 %v1589, 7
      %v1591 = vsub.s32 3, %v1590
      %v1592 = vrot.slane %v1286, %v1591
      %v1593 = vmul.f32 %v1527, %v1592
      %v1594 = vmul.f32 %v1531, %v1592
      %v1595 = vmul.f32 %v1535, %v1592
      %v1596 = vmul.f32 %v1539, %v1592
      %v1597 = vmul.f32 %v1543, %v1592
      %v1598 = vmul.f32 %v1547, %v1592
      %v1599 = vmul.f32 %v1551, %v1592
      %v1600 = vmul.f32 %v1555, %v1592
      %v1601 = vmul.f32 %v1559, %v1592
      %v1602 = vmul.f32 %v1563, %v1592
      %v1603 = vmul.f32 %v1567, %v1592
      %v1604 = vmul.f32 %v1571, %v1592
      %v1605 = vmul.f32 %v1575, %v1592
      %v1606 = vmul.f32 %v1579, %v1592
      %v1607 = vmul.f32 %v1583, %v1592
      %v1608 = vmul.f32 %v1587, %v1592
      %v1609 = vadd.f32 %v1509, %v1593
      %v1610 = vadd.f32 %v1510, %v1594
      %v1611 = vadd.f32 %v1511, %v1595
      %v1612 = vadd.f32 %v1512, %v1596
      %v1613 = vadd.f32 %v1513, %v1597
      %v1614 = vadd.f32 %v1514, %v1598
      %v1615 = vadd.f32 %v1515, %v1599
      %v1616 = vadd.f32 %v1516, %v1600
      %v1617 = vadd.f32 %v1517, %v1601
      %v1618 = vadd.f32 %v1518, %v1602
      %v1619 = vadd.f32 %v1519, %v1603
      %v1620 = vadd.f32 %v1520, %v1604
      %v1621 = vadd.f32 %v1521, %v1605
      %v1622 = vadd.f32 %v1522, %v1606
      %v1623 = vadd.f32 %v1523, %v1607
      %v1624 = vadd.f32 %v1524, %v1608
      %1626 = vset.pattern.permute.xlu0 0
      %1627 = vperm.xlu0 %1626, %v486
      %v1628 = vpop.permute.xlu0 %1627
      %1631 = vset.pattern.permute.xlu0 0
      %1632 = vperm.xlu0 %1631, %v487
      %v1633 = vpop.permute.xlu0 %1632
      %1636 = vset.pattern.permute.xlu0 0
      %1637 = vperm.xlu0 %1636, %v488
      %v1638 = vpop.permute.xlu0 %1637
      %1641 = vset.pattern.permute.xlu0 0
      %1642 = vperm.xlu0 %1641, %v489
      %v1643 = vpop.permute.xlu0 %1642
      %1646 = vset.pattern.permute.xlu0 0
      %1647 = vperm.xlu0 %1646, %v490
      %v1648 = vpop.permute.xlu0 %1647
      %1651 = vset.pattern.permute.xlu0 0
      %1652 = vperm.xlu0 %1651, %v491
      %v1653 = vpop.permute.xlu0 %1652
      %1656 = vset.pattern.permute.xlu0 0
      %1657 = vperm.xlu0 %1656, %v492
      %v1658 = vpop.permute.xlu0 %1657
      %1661 = vset.pattern.permute.xlu0 0
      %1662 = vperm.xlu0 %1661, %v493
      %v1663 = vpop.permute.xlu0 %1662
      %1666 = vset.pattern.permute.xlu0 0
      %1667 = vperm.xlu0 %1666, %v494
      %v1668 = vpop.permute.xlu0 %1667
      %1671 = vset.pattern.permute.xlu0 0
      %1672 = vperm.xlu0 %1671, %v495
      %v1673 = vpop.permute.xlu0 %1672
      %1676 = vset.pattern.permute.xlu0 0
      %1677 = vperm.xlu0 %1676, %v496
      %v1678 = vpop.permute.xlu0 %1677
      %1681 = vset.pattern.permute.xlu0 0
      %1682 = vperm.xlu0 %1681, %v497
      %v1683 = vpop.permute.xlu0 %1682
      %1686 = vset.pattern.permute.xlu0 0
      %1687 = vperm.xlu0 %1686, %v498
      %v1688 = vpop.permute.xlu0 %1687
      %1691 = vset.pattern.permute.xlu0 0
      %1692 = vperm.xlu0 %1691, %v499
      %v1693 = vpop.permute.xlu0 %1692
      %1696 = vset.pattern.permute.xlu0 0
      %1697 = vperm.xlu0 %1696, %v500
      %v1698 = vpop.permute.xlu0 %1697
      %1701 = vset.pattern.permute.xlu0 0
      %1702 = vperm.xlu0 %1701, %v501
      %v1703 = vpop.permute.xlu0 %1702
      %v1705 = vlaneseq
      %v1706 = vshrl.u32 %v1705, 7
      %v1707 = vsub.s32 4, %v1706
      %v1708 = vrot.slane %v1286, %v1707
      %v1709 = vmul.f32 %v1628, %v1708
      %v1710 = vmul.f32 %v1633, %v1708
      %v1711 = vmul.f32 %v1638, %v1708
      %v1712 = vmul.f32 %v1643, %v1708
      %v1713 = vmul.f32 %v1648, %v1708
      %v1714 = vmul.f32 %v1653, %v1708
      %v1715 = vmul.f32 %v1658, %v1708
      %v1716 = vmul.f32 %v1663, %v1708
      %v1717 = vmul.f32 %v1668, %v1708
      %v1718 = vmul.f32 %v1673, %v1708
      %v1719 = vmul.f32 %v1678, %v1708
      %v1720 = vmul.f32 %v1683, %v1708
      %v1721 = vmul.f32 %v1688, %v1708
      %v1722 = vmul.f32 %v1693, %v1708
      %v1723 = vmul.f32 %v1698, %v1708
      %v1724 = vmul.f32 %v1703, %v1708
      %v1725 = vadd.f32 %v1609, %v1709
      %v1726 = vadd.f32 %v1610, %v1710
      %v1727 = vadd.f32 %v1611, %v1711
      %v1728 = vadd.f32 %v1612, %v1712
      %v1729 = vadd.f32 %v1613, %v1713
      %v1730 = vadd.f32 %v1614, %v1714
      %v1731 = vadd.f32 %v1615, %v1715
      %v1732 = vadd.f32 %v1616, %v1716
      %v1733 = vadd.f32 %v1617, %v1717
      %v1734 = vadd.f32 %v1618, %v1718
      %v1735 = vadd.f32 %v1619, %v1719
      %v1736 = vadd.f32 %v1620, %v1720
      %v1737 = vadd.f32 %v1621, %v1721
      %v1738 = vadd.f32 %v1622, %v1722
      %v1739 = vadd.f32 %v1623, %v1723
      %v1740 = vadd.f32 %v1624, %v1724
      %1742 = vset.pattern.permute.xlu0 1
      %1743 = vperm.xlu0 %1742, %v502
      %v1744 = vpop.permute.xlu0 %1743
      %1747 = vset.pattern.permute.xlu0 1
      %1748 = vperm.xlu0 %1747, %v503
      %v1749 = vpop.permute.xlu0 %1748
      %1752 = vset.pattern.permute.xlu0 1
      %1753 = vperm.xlu0 %1752, %v504
      %v1754 = vpop.permute.xlu0 %1753
      %1757 = vset.pattern.permute.xlu0 1
      %1758 = vperm.xlu0 %1757, %v505
      %v1759 = vpop.permute.xlu0 %1758
      %1762 = vset.pattern.permute.xlu0 1
      %1763 = vperm.xlu0 %1762, %v506
      %v1764 = vpop.permute.xlu0 %1763
      %1767 = vset.pattern.permute.xlu0 1
      %1768 = vperm.xlu0 %1767, %v507
      %v1769 = vpop.permute.xlu0 %1768
      %1772 = vset.pattern.permute.xlu0 1
      %1773 = vperm.xlu0 %1772, %v508
      %v1774 = vpop.permute.xlu0 %1773
      %1777 = vset.pattern.permute.xlu0 1
      %1778 = vperm.xlu0 %1777, %v509
      %v1779 = vpop.permute.xlu0 %1778
      %1782 = vset.pattern.permute.xlu0 1
      %1783 = vperm.xlu0 %1782, %v510
      %v1784 = vpop.permute.xlu0 %1783
      %1787 = vset.pattern.permute.xlu0 1
      %1788 = vperm.xlu0 %1787, %v511
      %v1789 = vpop.permute.xlu0 %1788
      %1792 = vset.pattern.permute.xlu0 1
      %1793 = vperm.xlu0 %1792, %v512
      %v1794 = vpop.permute.xlu0 %1793
      %1797 = vset.pattern.permute.xlu0 1
      %1798 = vperm.xlu0 %1797, %v513
      %v1799 = vpop.permute.xlu0 %1798
      %1802 = vset.pattern.permute.xlu0 1
      %1803 = vperm.xlu0 %1802, %v514
      %v1804 = vpop.permute.xlu0 %1803
      %1807 = vset.pattern.permute.xlu0 1
      %1808 = vperm.xlu0 %1807, %v515
      %v1809 = vpop.permute.xlu0 %1808
      %1812 = vset.pattern.permute.xlu0 1
      %1813 = vperm.xlu0 %1812, %v516
      %v1814 = vpop.permute.xlu0 %1813
      %1817 = vset.pattern.permute.xlu0 1
      %1818 = vperm.xlu0 %1817, %v517
      %v1819 = vpop.permute.xlu0 %1818
      %v1821 = vlaneseq
      %v1822 = vshrl.u32 %v1821, 7
      %v1823 = vsub.s32 5, %v1822
      %v1824 = vrot.slane %v1286, %v1823
      %v1825 = vmul.f32 %v1744, %v1824
      %v1826 = vmul.f32 %v1749, %v1824
      %v1827 = vmul.f32 %v1754, %v1824
      %v1828 = vmul.f32 %v1759, %v1824
      %v1829 = vmul.f32 %v1764, %v1824
      %v1830 = vmul.f32 %v1769, %v1824
      %v1831 = vmul.f32 %v1774, %v1824
      %v1832 = vmul.f32 %v1779, %v1824
      %v1833 = vmul.f32 %v1784, %v1824
      %v1834 = vmul.f32 %v1789, %v1824
      %v1835 = vmul.f32 %v1794, %v1824
      %v1836 = vmul.f32 %v1799, %v1824
      %v1837 = vmul.f32 %v1804, %v1824
      %v1838 = vmul.f32 %v1809, %v1824
      %v1839 = vmul.f32 %v1814, %v1824
      %v1840 = vmul.f32 %v1819, %v1824
      %v1841 = vadd.f32 %v1725, %v1825
      %v1842 = vadd.f32 %v1726, %v1826
      %v1843 = vadd.f32 %v1727, %v1827
      %v1844 = vadd.f32 %v1728, %v1828
      %v1845 = vadd.f32 %v1729, %v1829
      %v1846 = vadd.f32 %v1730, %v1830
      %v1847 = vadd.f32 %v1731, %v1831
      %v1848 = vadd.f32 %v1732, %v1832
      %v1849 = vadd.f32 %v1733, %v1833
      %v1850 = vadd.f32 %v1734, %v1834
      %v1851 = vadd.f32 %v1735, %v1835
      %v1852 = vadd.f32 %v1736, %v1836
      %v1853 = vadd.f32 %v1737, %v1837
      %v1854 = vadd.f32 %v1738, %v1838
      %v1855 = vadd.f32 %v1739, %v1839
      %v1856 = vadd.f32 %v1740, %v1840
      %1858 = vset.pattern.permute.xlu0 2
      %1859 = vperm.xlu0 %1858, %v534
      %v1860 = vpop.permute.xlu0 %1859
      %1863 = vset.pattern.permute.xlu0 2
      %1864 = vperm.xlu0 %1863, %v535
      %v1865 = vpop.permute.xlu0 %1864
      %1868 = vset.pattern.permute.xlu0 2
      %1869 = vperm.xlu0 %1868, %v536
      %v1870 = vpop.permute.xlu0 %1869
      %1873 = vset.pattern.permute.xlu0 2
      %1874 = vperm.xlu0 %1873, %v537
      %v1875 = vpop.permute.xlu0 %1874
      %1878 = vset.pattern.permute.xlu0 2
      %1879 = vperm.xlu0 %1878, %v538
      %v1880 = vpop.permute.xlu0 %1879
      %1883 = vset.pattern.permute.xlu0 2
      %1884 = vperm.xlu0 %1883, %v539
      %v1885 = vpop.permute.xlu0 %1884
      %1888 = vset.pattern.permute.xlu0 2
      %1889 = vperm.xlu0 %1888, %v540
      %v1890 = vpop.permute.xlu0 %1889
      %1893 = vset.pattern.permute.xlu0 2
      %1894 = vperm.xlu0 %1893, %v541
      %v1895 = vpop.permute.xlu0 %1894
      %1898 = vset.pattern.permute.xlu0 2
      %1899 = vperm.xlu0 %1898, %v542
      %v1900 = vpop.permute.xlu0 %1899
      %1903 = vset.pattern.permute.xlu0 2
      %1904 = vperm.xlu0 %1903, %v543
      %v1905 = vpop.permute.xlu0 %1904
      %1908 = vset.pattern.permute.xlu0 2
      %1909 = vperm.xlu0 %1908, %v544
      %v1910 = vpop.permute.xlu0 %1909
      %1913 = vset.pattern.permute.xlu0 2
      %1914 = vperm.xlu0 %1913, %v545
      %v1915 = vpop.permute.xlu0 %1914
      %1918 = vset.pattern.permute.xlu0 2
      %1919 = vperm.xlu0 %1918, %v546
      %v1920 = vpop.permute.xlu0 %1919
      %1923 = vset.pattern.permute.xlu0 2
      %1924 = vperm.xlu0 %1923, %v547
      %v1925 = vpop.permute.xlu0 %1924
      %1928 = vset.pattern.permute.xlu0 2
      %1929 = vperm.xlu0 %1928, %v548
      %v1930 = vpop.permute.xlu0 %1929
      %1933 = vset.pattern.permute.xlu0 2
      %1934 = vperm.xlu0 %1933, %v549
      %v1935 = vpop.permute.xlu0 %1934
      %v1937 = vlaneseq
      %v1938 = vshrl.u32 %v1937, 7
      %v1939 = vsub.s32 6, %v1938
      %v1940 = vrot.slane %v1286, %v1939
      %v1941 = vmul.f32 %v1860, %v1940
      %v1942 = vmul.f32 %v1865, %v1940
      %v1943 = vmul.f32 %v1870, %v1940
      %v1944 = vmul.f32 %v1875, %v1940
      %v1945 = vmul.f32 %v1880, %v1940
      %v1946 = vmul.f32 %v1885, %v1940
      %v1947 = vmul.f32 %v1890, %v1940
      %v1948 = vmul.f32 %v1895, %v1940
      %v1949 = vmul.f32 %v1900, %v1940
      %v1950 = vmul.f32 %v1905, %v1940
      %v1951 = vmul.f32 %v1910, %v1940
      %v1952 = vmul.f32 %v1915, %v1940
      %v1953 = vmul.f32 %v1920, %v1940
      %v1954 = vmul.f32 %v1925, %v1940
      %v1955 = vmul.f32 %v1930, %v1940
      %v1956 = vmul.f32 %v1935, %v1940
      %v1957 = vadd.f32 %v1841, %v1941
      %v1958 = vadd.f32 %v1842, %v1942
      %v1959 = vadd.f32 %v1843, %v1943
      %v1960 = vadd.f32 %v1844, %v1944
      %v1961 = vadd.f32 %v1845, %v1945
      %v1962 = vadd.f32 %v1846, %v1946
      %v1963 = vadd.f32 %v1847, %v1947
      %v1964 = vadd.f32 %v1848, %v1948
      %v1965 = vadd.f32 %v1849, %v1949
      %v1966 = vadd.f32 %v1850, %v1950
      %v1967 = vadd.f32 %v1851, %v1951
      %v1968 = vadd.f32 %v1852, %v1952
      %v1969 = vadd.f32 %v1853, %v1953
      %v1970 = vadd.f32 %v1854, %v1954
      %v1971 = vadd.f32 %v1855, %v1955
      %v1972 = vadd.f32 %v1856, %v1956
      %1974 = vset.pattern.permute.xlu0 0
      %1975 = vperm.xlu0 %1974, %v550
      %v1976 = vpop.permute.xlu0 %1975
      %1979 = vset.pattern.permute.xlu0 0
      %1980 = vperm.xlu0 %1979, %v551
      %v1981 = vpop.permute.xlu0 %1980
      %1984 = vset.pattern.permute.xlu0 0
      %1985 = vperm.xlu0 %1984, %v552
      %v1986 = vpop.permute.xlu0 %1985
      %1989 = vset.pattern.permute.xlu0 0
      %1990 = vperm.xlu0 %1989, %v553
      %v1991 = vpop.permute.xlu0 %1990
      %1994 = vset.pattern.permute.xlu0 0
      %1995 = vperm.xlu0 %1994, %v554
      %v1996 = vpop.permute.xlu0 %1995
      %1999 = vset.pattern.permute.xlu0 0
      %2000 = vperm.xlu0 %1999, %v555
      %v2001 = vpop.permute.xlu0 %2000
      %2004 = vset.pattern.permute.xlu0 0
      %2005 = vperm.xlu0 %2004, %v556
      %v2006 = vpop.permute.xlu0 %2005
      %2009 = vset.pattern.permute.xlu0 0
      %2010 = vperm.xlu0 %2009, %v557
      %v2011 = vpop.permute.xlu0 %2010
      %2014 = vset.pattern.permute.xlu0 0
      %2015 = vperm.xlu0 %2014, %v558
      %v2016 = vpop.permute.xlu0 %2015
      %2019 = vset.pattern.permute.xlu0 0
      %2020 = vperm.xlu0 %2019, %v559
      %v2021 = vpop.permute.xlu0 %2020
      %2024 = vset.pattern.permute.xlu0 0
      %2025 = vperm.xlu0 %2024, %v560
      %v2026 = vpop.permute.xlu0 %2025
      %2029 = vset.pattern.permute.xlu0 0
      %2030 = vperm.xlu0 %2029, %v561
      %v2031 = vpop.permute.xlu0 %2030
      %2034 = vset.pattern.permute.xlu0 0
      %2035 = vperm.xlu0 %2034, %v562
      %v2036 = vpop.permute.xlu0 %2035
      %2039 = vset.pattern.permute.xlu0 0
      %2040 = vperm.xlu0 %2039, %v563
      %v2041 = vpop.permute.xlu0 %2040
      %2044 = vset.pattern.permute.xlu0 0
      %2045 = vperm.xlu0 %2044, %v564
      %v2046 = vpop.permute.xlu0 %2045
      %2049 = vset.pattern.permute.xlu0 0
      %2050 = vperm.xlu0 %2049, %v565
      %v2051 = vpop.permute.xlu0 %2050
      %v2053 = vlaneseq
      %v2054 = vshrl.u32 %v2053, 7
      %v2055 = vsub.s32 7, %v2054
      %v2056 = vrot.slane %v1286, %v2055
      %v2057 = vmul.f32 %v1976, %v2056
      %v2058 = vmul.f32 %v1981, %v2056
      %v2059 = vmul.f32 %v1986, %v2056
      %v2060 = vmul.f32 %v1991, %v2056
      %v2061 = vmul.f32 %v1996, %v2056
      %v2062 = vmul.f32 %v2001, %v2056
      %v2063 = vmul.f32 %v2006, %v2056
      %v2064 = vmul.f32 %v2011, %v2056
      %v2065 = vmul.f32 %v2016, %v2056
      %v2066 = vmul.f32 %v2021, %v2056
      %v2067 = vmul.f32 %v2026, %v2056
      %v2068 = vmul.f32 %v2031, %v2056
      %v2069 = vmul.f32 %v2036, %v2056
      %v2070 = vmul.f32 %v2041, %v2056
      %v2071 = vmul.f32 %v2046, %v2056
      %v2072 = vmul.f32 %v2051, %v2056
      %v2073 = vadd.f32 %v1957, %v2057
      %v2074 = vadd.f32 %v1958, %v2058
      %v2075 = vadd.f32 %v1959, %v2059
      %v2076 = vadd.f32 %v1960, %v2060
      %v2077 = vadd.f32 %v1961, %v2061
      %v2078 = vadd.f32 %v1962, %v2062
      %v2079 = vadd.f32 %v1963, %v2063
      %v2080 = vadd.f32 %v1964, %v2064
      %v2081 = vadd.f32 %v1965, %v2065
      %v2082 = vadd.f32 %v1966, %v2066
      %v2083 = vadd.f32 %v1967, %v2067
      %v2084 = vadd.f32 %v1968, %v2068
      %v2085 = vadd.f32 %v1969, %v2069
      %v2086 = vadd.f32 %v1970, %v2070
      %v2087 = vadd.f32 %v1971, %v2071
      %v2088 = vadd.f32 %v1972, %v2072
      %2090 = vset.pattern.permute.xlu0 0
      %2091 = vperm.xlu0 %2090, %v646
      %v2092 = vpop.permute.xlu0 %2091
      %2095 = vset.pattern.permute.xlu0 0
      %2096 = vperm.xlu0 %2095, %v647
      %v2097 = vpop.permute.xlu0 %2096
      %2100 = vset.pattern.permute.xlu0 0
      %2101 = vperm.xlu0 %2100, %v648
      %v2102 = vpop.permute.xlu0 %2101
      %2105 = vset.pattern.permute.xlu0 0
      %2106 = vperm.xlu0 %2105, %v649
      %v2107 = vpop.permute.xlu0 %2106
      %2110 = vset.pattern.permute.xlu0 0
      %2111 = vperm.xlu0 %2110, %v650
      %v2112 = vpop.permute.xlu0 %2111
      %2115 = vset.pattern.permute.xlu0 0
      %2116 = vperm.xlu0 %2115, %v651
      %v2117 = vpop.permute.xlu0 %2116
      %2120 = vset.pattern.permute.xlu0 0
      %2121 = vperm.xlu0 %2120, %v652
      %v2122 = vpop.permute.xlu0 %2121
      %2125 = vset.pattern.permute.xlu0 0
      %2126 = vperm.xlu0 %2125, %v653
      %v2127 = vpop.permute.xlu0 %2126
      %2130 = vset.pattern.permute.xlu0 0
      %2131 = vperm.xlu0 %2130, %v654
      %v2132 = vpop.permute.xlu0 %2131
      %2135 = vset.pattern.permute.xlu0 0
      %2136 = vperm.xlu0 %2135, %v655
      %v2137 = vpop.permute.xlu0 %2136
      %2140 = vset.pattern.permute.xlu0 0
      %2141 = vperm.xlu0 %2140, %v656
      %v2142 = vpop.permute.xlu0 %2141
      %2145 = vset.pattern.permute.xlu0 0
      %2146 = vperm.xlu0 %2145, %v657
      %v2147 = vpop.permute.xlu0 %2146
      %2150 = vset.pattern.permute.xlu0 0
      %2151 = vperm.xlu0 %2150, %v658
      %v2152 = vpop.permute.xlu0 %2151
      %2155 = vset.pattern.permute.xlu0 0
      %2156 = vperm.xlu0 %2155, %v659
      %v2157 = vpop.permute.xlu0 %2156
      %2160 = vset.pattern.permute.xlu0 0
      %2161 = vperm.xlu0 %2160, %v660
      %v2162 = vpop.permute.xlu0 %2161
      %2165 = vset.pattern.permute.xlu0 0
      %2166 = vperm.xlu0 %2165, %v661
      %v2167 = vpop.permute.xlu0 %2166
      %v2169 = vlaneseq
      %v2170 = vshrl.u32 %v2169, 7
      %v2171 = vsub.s32 0, %v2170
      %v2172 = vrot.slane %v1287, %v2171
      %v2173 = vmul.f32 %v2092, %v2172
      %v2174 = vmul.f32 %v2097, %v2172
      %v2175 = vmul.f32 %v2102, %v2172
      %v2176 = vmul.f32 %v2107, %v2172
      %v2177 = vmul.f32 %v2112, %v2172
      %v2178 = vmul.f32 %v2117, %v2172
      %v2179 = vmul.f32 %v2122, %v2172
      %v2180 = vmul.f32 %v2127, %v2172
      %v2181 = vmul.f32 %v2132, %v2172
      %v2182 = vmul.f32 %v2137, %v2172
      %v2183 = vmul.f32 %v2142, %v2172
      %v2184 = vmul.f32 %v2147, %v2172
      %v2185 = vmul.f32 %v2152, %v2172
      %v2186 = vmul.f32 %v2157, %v2172
      %v2187 = vmul.f32 %v2162, %v2172
      %v2188 = vmul.f32 %v2167, %v2172
      %v2189 = vadd.f32 %v2073, %v2173
      %v2190 = vadd.f32 %v2074, %v2174
      %v2191 = vadd.f32 %v2075, %v2175
      %v2192 = vadd.f32 %v2076, %v2176
      %v2193 = vadd.f32 %v2077, %v2177
      %v2194 = vadd.f32 %v2078, %v2178
      %v2195 = vadd.f32 %v2079, %v2179
      %v2196 = vadd.f32 %v2080, %v2180
      %v2197 = vadd.f32 %v2081, %v2181
      %v2198 = vadd.f32 %v2082, %v2182
      %v2199 = vadd.f32 %v2083, %v2183
      %v2200 = vadd.f32 %v2084, %v2184
      %v2201 = vadd.f32 %v2085, %v2185
      %v2202 = vadd.f32 %v2086, %v2186
      %v2203 = vadd.f32 %v2087, %v2187
      %v2204 = vadd.f32 %v2088, %v2188
      %2206 = vset.pattern.permute.xlu0 1
      %2207 = vperm.xlu0 %2206, %v774
      %v2208 = vpop.permute.xlu0 %2207
      %2211 = vset.pattern.permute.xlu0 1
      %2212 = vperm.xlu0 %2211, %v775
      %v2213 = vpop.permute.xlu0 %2212
      %2216 = vset.pattern.permute.xlu0 1
      %2217 = vperm.xlu0 %2216, %v776
      %v2218 = vpop.permute.xlu0 %2217
      %2221 = vset.pattern.permute.xlu0 1
      %2222 = vperm.xlu0 %2221, %v777
      %v2223 = vpop.permute.xlu0 %2222
      %2226 = vset.pattern.permute.xlu0 1
      %2227 = vperm.xlu0 %2226, %v778
      %v2228 = vpop.permute.xlu0 %2227
      %2231 = vset.pattern.permute.xlu0 1
      %2232 = vperm.xlu0 %2231, %v779
      %v2233 = vpop.permute.xlu0 %2232
      %2236 = vset.pattern.permute.xlu0 1
      %2237 = vperm.xlu0 %2236, %v780
      %v2238 = vpop.permute.xlu0 %2237
      %2241 = vset.pattern.permute.xlu0 1
      %2242 = vperm.xlu0 %2241, %v781
      %v2243 = vpop.permute.xlu0 %2242
      %2246 = vset.pattern.permute.xlu0 1
      %2247 = vperm.xlu0 %2246, %v782
      %v2248 = vpop.permute.xlu0 %2247
      %2251 = vset.pattern.permute.xlu0 1
      %2252 = vperm.xlu0 %2251, %v783
      %v2253 = vpop.permute.xlu0 %2252
      %2256 = vset.pattern.permute.xlu0 1
      %2257 = vperm.xlu0 %2256, %v784
      %v2258 = vpop.permute.xlu0 %2257
      %2261 = vset.pattern.permute.xlu0 1
      %2262 = vperm.xlu0 %2261, %v785
      %v2263 = vpop.permute.xlu0 %2262
      %2266 = vset.pattern.permute.xlu0 1
      %2267 = vperm.xlu0 %2266, %v786
      %v2268 = vpop.permute.xlu0 %2267
      %2271 = vset.pattern.permute.xlu0 1
      %2272 = vperm.xlu0 %2271, %v787
      %v2273 = vpop.permute.xlu0 %2272
      %2276 = vset.pattern.permute.xlu0 1
      %2277 = vperm.xlu0 %2276, %v788
      %v2278 = vpop.permute.xlu0 %2277
      %2281 = vset.pattern.permute.xlu0 1
      %2282 = vperm.xlu0 %2281, %v789
      %v2283 = vpop.permute.xlu0 %2282
      %v2285 = vlaneseq
      %v2286 = vshrl.u32 %v2285, 7
      %v2287 = vsub.s32 1, %v2286
      %v2288 = vrot.slane %v1287, %v2287
      %v2289 = vmul.f32 %v2208, %v2288
      %v2290 = vmul.f32 %v2213, %v2288
      %v2291 = vmul.f32 %v2218, %v2288
      %v2292 = vmul.f32 %v2223, %v2288
      %v2293 = vmul.f32 %v2228, %v2288
      %v2294 = vmul.f32 %v2233, %v2288
      %v2295 = vmul.f32 %v2238, %v2288
      %v2296 = vmul.f32 %v2243, %v2288
      %v2297 = vmul.f32 %v2248, %v2288
      %v2298 = vmul.f32 %v2253, %v2288
      %v2299 = vmul.f32 %v2258, %v2288
      %v2300 = vmul.f32 %v2263, %v2288
      %v2301 = vmul.f32 %v2268, %v2288
      %v2302 = vmul.f32 %v2273, %v2288
      %v2303 = vmul.f32 %v2278, %v2288
      %v2304 = vmul.f32 %v2283, %v2288
      %v2305 = vadd.f32 %v2189, %v2289
      %v2306 = vadd.f32 %v2190, %v2290
      %v2307 = vadd.f32 %v2191, %v2291
      %v2308 = vadd.f32 %v2192, %v2292
      %v2309 = vadd.f32 %v2193, %v2293
      %v2310 = vadd.f32 %v2194, %v2294
      %v2311 = vadd.f32 %v2195, %v2295
      %v2312 = vadd.f32 %v2196, %v2296
      %v2313 = vadd.f32 %v2197, %v2297
      %v2314 = vadd.f32 %v2198, %v2298
      %v2315 = vadd.f32 %v2199, %v2299
      %v2316 = vadd.f32 %v2200, %v2300
      %v2317 = vadd.f32 %v2201, %v2301
      %v2318 = vadd.f32 %v2202, %v2302
      %v2319 = vadd.f32 %v2203, %v2303
      %v2320 = vadd.f32 %v2204, %v2304
      %2322 = vset.pattern.permute.xlu0 0
      %2323 = vperm.xlu0 %2322, %v806
      %v2324 = vpop.permute.xlu0 %2323
      %2327 = vset.pattern.permute.xlu0 0
      %2328 = vperm.xlu0 %2327, %v807
      %v2329 = vpop.permute.xlu0 %2328
      %2332 = vset.pattern.permute.xlu0 0
      %2333 = vperm.xlu0 %2332, %v808
      %v2334 = vpop.permute.xlu0 %2333
      %2337 = vset.pattern.permute.xlu0 0
      %2338 = vperm.xlu0 %2337, %v809
      %v2339 = vpop.permute.xlu0 %2338
      %2342 = vset.pattern.permute.xlu0 0
      %2343 = vperm.xlu0 %2342, %v810
      %v2344 = vpop.permute.xlu0 %2343
      %2347 = vset.pattern.permute.xlu0 0
      %2348 = vperm.xlu0 %2347, %v811
      %v2349 = vpop.permute.xlu0 %2348
      %2352 = vset.pattern.permute.xlu0 0
      %2353 = vperm.xlu0 %2352, %v812
      %v2354 = vpop.permute.xlu0 %2353
      %2357 = vset.pattern.permute.xlu0 0
      %2358 = vperm.xlu0 %2357, %v813
      %v2359 = vpop.permute.xlu0 %2358
      %2362 = vset.pattern.permute.xlu0 0
      %2363 = vperm.xlu0 %2362, %v814
      %v2364 = vpop.permute.xlu0 %2363
      %2367 = vset.pattern.permute.xlu0 0
      %2368 = vperm.xlu0 %2367, %v815
      %v2369 = vpop.permute.xlu0 %2368
      %2372 = vset.pattern.permute.xlu0 0
      %2373 = vperm.xlu0 %2372, %v816
      %v2374 = vpop.permute.xlu0 %2373
      %2377 = vset.pattern.permute.xlu0 0
      %2378 = vperm.xlu0 %2377, %v817
      %v2379 = vpop.permute.xlu0 %2378
      %2382 = vset.pattern.permute.xlu0 0
      %2383 = vperm.xlu0 %2382, %v818
      %v2384 = vpop.permute.xlu0 %2383
      %2387 = vset.pattern.permute.xlu0 0
      %2388 = vperm.xlu0 %2387, %v819
      %v2389 = vpop.permute.xlu0 %2388
      %2392 = vset.pattern.permute.xlu0 0
      %2393 = vperm.xlu0 %2392, %v820
      %v2394 = vpop.permute.xlu0 %2393
      %2397 = vset.pattern.permute.xlu0 0
      %2398 = vperm.xlu0 %2397, %v821
      %v2399 = vpop.permute.xlu0 %2398
      %v2401 = vlaneseq
      %v2402 = vshrl.u32 %v2401, 7
      %v2403 = vsub.s32 2, %v2402
      %v2404 = vrot.slane %v1287, %v2403
      %v2405 = vmul.f32 %v2324, %v2404
      %v2406 = vmul.f32 %v2329, %v2404
      %v2407 = vmul.f32 %v2334, %v2404
      %v2408 = vmul.f32 %v2339, %v2404
      %v2409 = vmul.f32 %v2344, %v2404
      %v2410 = vmul.f32 %v2349, %v2404
      %v2411 = vmul.f32 %v2354, %v2404
      %v2412 = vmul.f32 %v2359, %v2404
      %v2413 = vmul.f32 %v2364, %v2404
      %v2414 = vmul.f32 %v2369, %v2404
      %v2415 = vmul.f32 %v2374, %v2404
      %v2416 = vmul.f32 %v2379, %v2404
      %v2417 = vmul.f32 %v2384, %v2404
      %v2418 = vmul.f32 %v2389, %v2404
      %v2419 = vmul.f32 %v2394, %v2404
      %v2420 = vmul.f32 %v2399, %v2404
      %v2421 = vadd.f32 %v2305, %v2405
      %v2422 = vadd.f32 %v2306, %v2406
      %v2423 = vadd.f32 %v2307, %v2407
      %v2424 = vadd.f32 %v2308, %v2408
      %v2425 = vadd.f32 %v2309, %v2409
      %v2426 = vadd.f32 %v2310, %v2410
      %v2427 = vadd.f32 %v2311, %v2411
      %v2428 = vadd.f32 %v2312, %v2412
      %v2429 = vadd.f32 %v2313, %v2413
      %v2430 = vadd.f32 %v2314, %v2414
      %v2431 = vadd.f32 %v2315, %v2415
      %v2432 = vadd.f32 %v2316, %v2416
      %v2433 = vadd.f32 %v2317, %v2417
      %v2434 = vadd.f32 %v2318, %v2418
      %v2435 = vadd.f32 %v2319, %v2419
      %v2436 = vadd.f32 %v2320, %v2420
      %2438 = vset.pattern.permute.xlu0 1
      %2439 = vperm.xlu0 %2438, %v934
      %v2440 = vpop.permute.xlu0 %2439
      %2443 = vset.pattern.permute.xlu0 1
      %2444 = vperm.xlu0 %2443, %v935
      %v2445 = vpop.permute.xlu0 %2444
      %2448 = vset.pattern.permute.xlu0 1
      %2449 = vperm.xlu0 %2448, %v936
      %v2450 = vpop.permute.xlu0 %2449
      %2453 = vset.pattern.permute.xlu0 1
      %2454 = vperm.xlu0 %2453, %v937
      %v2455 = vpop.permute.xlu0 %2454
      %2458 = vset.pattern.permute.xlu0 1
      %2459 = vperm.xlu0 %2458, %v938
      %v2460 = vpop.permute.xlu0 %2459
      %2463 = vset.pattern.permute.xlu0 1
      %2464 = vperm.xlu0 %2463, %v939
      %v2465 = vpop.permute.xlu0 %2464
      %2468 = vset.pattern.permute.xlu0 1
      %2469 = vperm.xlu0 %2468, %v940
      %v2470 = vpop.permute.xlu0 %2469
      %2473 = vset.pattern.permute.xlu0 1
      %2474 = vperm.xlu0 %2473, %v941
      %v2475 = vpop.permute.xlu0 %2474
      %2478 = vset.pattern.permute.xlu0 1
      %2479 = vperm.xlu0 %2478, %v942
      %v2480 = vpop.permute.xlu0 %2479
      %2483 = vset.pattern.permute.xlu0 1
      %2484 = vperm.xlu0 %2483, %v943
      %v2485 = vpop.permute.xlu0 %2484
      %2488 = vset.pattern.permute.xlu0 1
      %2489 = vperm.xlu0 %2488, %v944
      %v2490 = vpop.permute.xlu0 %2489
      %2493 = vset.pattern.permute.xlu0 1
      %2494 = vperm.xlu0 %2493, %v945
      %v2495 = vpop.permute.xlu0 %2494
      %2498 = vset.pattern.permute.xlu0 1
      %2499 = vperm.xlu0 %2498, %v946
      %v2500 = vpop.permute.xlu0 %2499
      %2503 = vset.pattern.permute.xlu0 1
      %2504 = vperm.xlu0 %2503, %v947
      %v2505 = vpop.permute.xlu0 %2504
      %2508 = vset.pattern.permute.xlu0 1
      %2509 = vperm.xlu0 %2508, %v948
      %v2510 = vpop.permute.xlu0 %2509
      %2513 = vset.pattern.permute.xlu0 1
      %2514 = vperm.xlu0 %2513, %v949
      %v2515 = vpop.permute.xlu0 %2514
      %v2517 = vlaneseq
      %v2518 = vshrl.u32 %v2517, 7
      %v2519 = vsub.s32 3, %v2518
      %v2520 = vrot.slane %v1287, %v2519
      %v2521 = vmul.f32 %v2440, %v2520
      %v2522 = vmul.f32 %v2445, %v2520
      %v2523 = vmul.f32 %v2450, %v2520
      %v2524 = vmul.f32 %v2455, %v2520
      %v2525 = vmul.f32 %v2460, %v2520
      %v2526 = vmul.f32 %v2465, %v2520
      %v2527 = vmul.f32 %v2470, %v2520
      %v2528 = vmul.f32 %v2475, %v2520
      %v2529 = vmul.f32 %v2480, %v2520
      %v2530 = vmul.f32 %v2485, %v2520
      %v2531 = vmul.f32 %v2490, %v2520
      %v2532 = vmul.f32 %v2495, %v2520
      %v2533 = vmul.f32 %v2500, %v2520
      %v2534 = vmul.f32 %v2505, %v2520
      %v2535 = vmul.f32 %v2510, %v2520
      %v2536 = vmul.f32 %v2515, %v2520
      %v2537 = vadd.f32 %v2421, %v2521
      %v2538 = vadd.f32 %v2422, %v2522
      %v2539 = vadd.f32 %v2423, %v2523
      %v2540 = vadd.f32 %v2424, %v2524
      %v2541 = vadd.f32 %v2425, %v2525
      %v2542 = vadd.f32 %v2426, %v2526
      %v2543 = vadd.f32 %v2427, %v2527
      %v2544 = vadd.f32 %v2428, %v2528
      %v2545 = vadd.f32 %v2429, %v2529
      %v2546 = vadd.f32 %v2430, %v2530
      %v2547 = vadd.f32 %v2431, %v2531
      %v2548 = vadd.f32 %v2432, %v2532
      %v2549 = vadd.f32 %v2433, %v2533
      %v2550 = vadd.f32 %v2434, %v2534
      %v2551 = vadd.f32 %v2435, %v2535
      %v2552 = vadd.f32 %v2436, %v2536
      %2554 = vset.pattern.permute.xlu0 2
      %2555 = vperm.xlu0 %2554, %v982
      %v2556 = vpop.permute.xlu0 %2555
      %2559 = vset.pattern.permute.xlu0 2
      %2560 = vperm.xlu0 %2559, %v983
      %v2561 = vpop.permute.xlu0 %2560
      %2564 = vset.pattern.permute.xlu0 2
      %2565 = vperm.xlu0 %2564, %v984
      %v2566 = vpop.permute.xlu0 %2565
      %2569 = vset.pattern.permute.xlu0 2
      %2570 = vperm.xlu0 %2569, %v985
      %v2571 = vpop.permute.xlu0 %2570
      %2574 = vset.pattern.permute.xlu0 2
      %2575 = vperm.xlu0 %2574, %v986
      %v2576 = vpop.permute.xlu0 %2575
      %2579 = vset.pattern.permute.xlu0 2
      %2580 = vperm.xlu0 %2579, %v987
      %v2581 = vpop.permute.xlu0 %2580
      %2584 = vset.pattern.permute.xlu0 2
      %2585 = vperm.xlu0 %2584, %v988
      %v2586 = vpop.permute.xlu0 %2585
      %2589 = vset.pattern.permute.xlu0 2
      %2590 = vperm.xlu0 %2589, %v989
      %v2591 = vpop.permute.xlu0 %2590
      %2594 = vset.pattern.permute.xlu0 2
      %2595 = vperm.xlu0 %2594, %v990
      %v2596 = vpop.permute.xlu0 %2595
      %2599 = vset.pattern.permute.xlu0 2
      %2600 = vperm.xlu0 %2599, %v991
      %v2601 = vpop.permute.xlu0 %2600
      %2604 = vset.pattern.permute.xlu0 2
      %2605 = vperm.xlu0 %2604, %v992
      %v2606 = vpop.permute.xlu0 %2605
      %2609 = vset.pattern.permute.xlu0 2
      %2610 = vperm.xlu0 %2609, %v993
      %v2611 = vpop.permute.xlu0 %2610
      %2614 = vset.pattern.permute.xlu0 2
      %2615 = vperm.xlu0 %2614, %v994
      %v2616 = vpop.permute.xlu0 %2615
      %2619 = vset.pattern.permute.xlu0 2
      %2620 = vperm.xlu0 %2619, %v995
      %v2621 = vpop.permute.xlu0 %2620
      %2624 = vset.pattern.permute.xlu0 2
      %2625 = vperm.xlu0 %2624, %v996
      %v2626 = vpop.permute.xlu0 %2625
      %2629 = vset.pattern.permute.xlu0 2
      %2630 = vperm.xlu0 %2629, %v997
      %v2631 = vpop.permute.xlu0 %2630
      %v2633 = vlaneseq
      %v2634 = vshrl.u32 %v2633, 7
      %v2635 = vsub.s32 4, %v2634
      %v2636 = vrot.slane %v1287, %v2635
      %v2637 = vmul.f32 %v2556, %v2636
      %v2638 = vmul.f32 %v2561, %v2636
      %v2639 = vmul.f32 %v2566, %v2636
      %v2640 = vmul.f32 %v2571, %v2636
      %v2641 = vmul.f32 %v2576, %v2636
      %v2642 = vmul.f32 %v2581, %v2636
      %v2643 = vmul.f32 %v2586, %v2636
      %v2644 = vmul.f32 %v2591, %v2636
      %v2645 = vmul.f32 %v2596, %v2636
      %v2646 = vmul.f32 %v2601, %v2636
      %v2647 = vmul.f32 %v2606, %v2636
      %v2648 = vmul.f32 %v2611, %v2636
      %v2649 = vmul.f32 %v2616, %v2636
      %v2650 = vmul.f32 %v2621, %v2636
      %v2651 = vmul.f32 %v2626, %v2636
      %v2652 = vmul.f32 %v2631, %v2636
      %v2653 = vadd.f32 %v2537, %v2637
      %v2654 = vadd.f32 %v2538, %v2638
      %v2655 = vadd.f32 %v2539, %v2639
      %v2656 = vadd.f32 %v2540, %v2640
      %v2657 = vadd.f32 %v2541, %v2641
      %v2658 = vadd.f32 %v2542, %v2642
      %v2659 = vadd.f32 %v2543, %v2643
      %v2660 = vadd.f32 %v2544, %v2644
      %v2661 = vadd.f32 %v2545, %v2645
      %v2662 = vadd.f32 %v2546, %v2646
      %v2663 = vadd.f32 %v2547, %v2647
      %v2664 = vadd.f32 %v2548, %v2648
      %v2665 = vadd.f32 %v2549, %v2649
      %v2666 = vadd.f32 %v2550, %v2650
      %v2667 = vadd.f32 %v2551, %v2651
      %v2668 = vadd.f32 %v2552, %v2652
      %2670 = vset.pattern.permute.xlu0 0
      %2671 = vperm.xlu0 %2670, %v1046
      %v2672 = vpop.permute.xlu0 %2671
      %2675 = vset.pattern.permute.xlu0 0
      %2676 = vperm.xlu0 %2675, %v1047
      %v2677 = vpop.permute.xlu0 %2676
      %2680 = vset.pattern.permute.xlu0 0
      %2681 = vperm.xlu0 %2680, %v1048
      %v2682 = vpop.permute.xlu0 %2681
      %2685 = vset.pattern.permute.xlu0 0
      %2686 = vperm.xlu0 %2685, %v1049
      %v2687 = vpop.permute.xlu0 %2686
      %2690 = vset.pattern.permute.xlu0 0
      %2691 = vperm.xlu0 %2690, %v1050
      %v2692 = vpop.permute.xlu0 %2691
      %2695 = vset.pattern.permute.xlu0 0
      %2696 = vperm.xlu0 %2695, %v1051
      %v2697 = vpop.permute.xlu0 %2696
      %2700 = vset.pattern.permute.xlu0 0
      %2701 = vperm.xlu0 %2700, %v1052
      %v2702 = vpop.permute.xlu0 %2701
      %2705 = vset.pattern.permute.xlu0 0
      %2706 = vperm.xlu0 %2705, %v1053
      %v2707 = vpop.permute.xlu0 %2706
      %2710 = vset.pattern.permute.xlu0 0
      %2711 = vperm.xlu0 %2710, %v1054
      %v2712 = vpop.permute.xlu0 %2711
      %2715 = vset.pattern.permute.xlu0 0
      %2716 = vperm.xlu0 %2715, %v1055
      %v2717 = vpop.permute.xlu0 %2716
      %2720 = vset.pattern.permute.xlu0 0
      %2721 = vperm.xlu0 %2720, %v1056
      %v2722 = vpop.permute.xlu0 %2721
      %2725 = vset.pattern.permute.xlu0 0
      %2726 = vperm.xlu0 %2725, %v1057
      %v2727 = vpop.permute.xlu0 %2726
      %2730 = vset.pattern.permute.xlu0 0
      %2731 = vperm.xlu0 %2730, %v1058
      %v2732 = vpop.permute.xlu0 %2731
      %2735 = vset.pattern.permute.xlu0 0
      %2736 = vperm.xlu0 %2735, %v1059
      %v2737 = vpop.permute.xlu0 %2736
      %2740 = vset.pattern.permute.xlu0 0
      %2741 = vperm.xlu0 %2740, %v1060
      %v2742 = vpop.permute.xlu0 %2741
      %2745 = vset.pattern.permute.xlu0 0
      %2746 = vperm.xlu0 %2745, %v1061
      %v2747 = vpop.permute.xlu0 %2746
      %v2749 = vlaneseq
      %v2750 = vshrl.u32 %v2749, 7
      %v2751 = vsub.s32 5, %v2750
      %v2752 = vrot.slane %v1287, %v2751
      %v2753 = vmul.f32 %v2672, %v2752
      %v2754 = vmul.f32 %v2677, %v2752
      %v2755 = vmul.f32 %v2682, %v2752
      %v2756 = vmul.f32 %v2687, %v2752
      %v2757 = vmul.f32 %v2692, %v2752
      %v2758 = vmul.f32 %v2697, %v2752
      %v2759 = vmul.f32 %v2702, %v2752
      %v2760 = vmul.f32 %v2707, %v2752
      %v2761 = vmul.f32 %v2712, %v2752
      %v2762 = vmul.f32 %v2717, %v2752
      %v2763 = vmul.f32 %v2722, %v2752
      %v2764 = vmul.f32 %v2727, %v2752
      %v2765 = vmul.f32 %v2732, %v2752
      %v2766 = vmul.f32 %v2737, %v2752
      %v2767 = vmul.f32 %v2742, %v2752
      %v2768 = vmul.f32 %v2747, %v2752
      %v2769 = vadd.f32 %v2653, %v2753
      %v2770 = vadd.f32 %v2654, %v2754
      %v2771 = vadd.f32 %v2655, %v2755
      %v2772 = vadd.f32 %v2656, %v2756
      %v2773 = vadd.f32 %v2657, %v2757
      %v2774 = vadd.f32 %v2658, %v2758
      %v2775 = vadd.f32 %v2659, %v2759
      %v2776 = vadd.f32 %v2660, %v2760
      %v2777 = vadd.f32 %v2661, %v2761
      %v2778 = vadd.f32 %v2662, %v2762
      %v2779 = vadd.f32 %v2663, %v2763
      %v2780 = vadd.f32 %v2664, %v2764
      %v2781 = vadd.f32 %v2665, %v2765
      %v2782 = vadd.f32 %v2666, %v2766
      %v2783 = vadd.f32 %v2667, %v2767
      %v2784 = vadd.f32 %v2668, %v2768
      %2786 = vset.pattern.permute.xlu0 2
      %2787 = vperm.xlu0 %2786, %v1142
      %v2788 = vpop.permute.xlu0 %2787
      %2791 = vset.pattern.permute.xlu0 2
      %2792 = vperm.xlu0 %2791, %v1143
      %v2793 = vpop.permute.xlu0 %2792
      %2796 = vset.pattern.permute.xlu0 2
      %2797 = vperm.xlu0 %2796, %v1144
      %v2798 = vpop.permute.xlu0 %2797
      %2801 = vset.pattern.permute.xlu0 2
      %2802 = vperm.xlu0 %2801, %v1145
      %v2803 = vpop.permute.xlu0 %2802
      %2806 = vset.pattern.permute.xlu0 2
      %2807 = vperm.xlu0 %2806, %v1146
      %v2808 = vpop.permute.xlu0 %2807
      %2811 = vset.pattern.permute.xlu0 2
      %2812 = vperm.xlu0 %2811, %v1147
      %v2813 = vpop.permute.xlu0 %2812
      %2816 = vset.pattern.permute.xlu0 2
      %2817 = vperm.xlu0 %2816, %v1148
      %v2818 = vpop.permute.xlu0 %2817
      %2821 = vset.pattern.permute.xlu0 2
      %2822 = vperm.xlu0 %2821, %v1149
      %v2823 = vpop.permute.xlu0 %2822
      %2826 = vset.pattern.permute.xlu0 2
      %2827 = vperm.xlu0 %2826, %v1150
      %v2828 = vpop.permute.xlu0 %2827
      %2831 = vset.pattern.permute.xlu0 2
      %2832 = vperm.xlu0 %2831, %v1151
      %v2833 = vpop.permute.xlu0 %2832
      %2836 = vset.pattern.permute.xlu0 2
      %2837 = vperm.xlu0 %2836, %v1152
      %v2838 = vpop.permute.xlu0 %2837
      %2841 = vset.pattern.permute.xlu0 2
      %2842 = vperm.xlu0 %2841, %v1153
      %v2843 = vpop.permute.xlu0 %2842
      %2846 = vset.pattern.permute.xlu0 2
      %2847 = vperm.xlu0 %2846, %v1154
      %v2848 = vpop.permute.xlu0 %2847
      %2851 = vset.pattern.permute.xlu0 2
      %2852 = vperm.xlu0 %2851, %v1155
      %v2853 = vpop.permute.xlu0 %2852
      %2856 = vset.pattern.permute.xlu0 2
      %2857 = vperm.xlu0 %2856, %v1156
      %v2858 = vpop.permute.xlu0 %2857
      %2861 = vset.pattern.permute.xlu0 2
      %2862 = vperm.xlu0 %2861, %v1157
      %v2863 = vpop.permute.xlu0 %2862
      %v2865 = vlaneseq
      %v2866 = vshrl.u32 %v2865, 7
      %v2867 = vsub.s32 6, %v2866
      %v2868 = vrot.slane %v1287, %v2867
      %v2869 = vmul.f32 %v2788, %v2868
      %v2870 = vmul.f32 %v2793, %v2868
      %v2871 = vmul.f32 %v2798, %v2868
      %v2872 = vmul.f32 %v2803, %v2868
      %v2873 = vmul.f32 %v2808, %v2868
      %v2874 = vmul.f32 %v2813, %v2868
      %v2875 = vmul.f32 %v2818, %v2868
      %v2876 = vmul.f32 %v2823, %v2868
      %v2877 = vmul.f32 %v2828, %v2868
      %v2878 = vmul.f32 %v2833, %v2868
      %v2879 = vmul.f32 %v2838, %v2868
      %v2880 = vmul.f32 %v2843, %v2868
      %v2881 = vmul.f32 %v2848, %v2868
      %v2882 = vmul.f32 %v2853, %v2868
      %v2883 = vmul.f32 %v2858, %v2868
      %v2884 = vmul.f32 %v2863, %v2868
      %v2885 = vadd.f32 %v2769, %v2869
      %v2886 = vadd.f32 %v2770, %v2870
      %v2887 = vadd.f32 %v2771, %v2871
      %v2888 = vadd.f32 %v2772, %v2872
      %v2889 = vadd.f32 %v2773, %v2873
      %v2890 = vadd.f32 %v2774, %v2874
      %v2891 = vadd.f32 %v2775, %v2875
      %v2892 = vadd.f32 %v2776, %v2876
      %v2893 = vadd.f32 %v2777, %v2877
      %v2894 = vadd.f32 %v2778, %v2878
      %v2895 = vadd.f32 %v2779, %v2879
      %v2896 = vadd.f32 %v2780, %v2880
      %v2897 = vadd.f32 %v2781, %v2881
      %v2898 = vadd.f32 %v2782, %v2882
      %v2899 = vadd.f32 %v2783, %v2883
      %v2900 = vadd.f32 %v2784, %v2884
      %2902 = vset.pattern.permute.xlu0 0
      %2903 = vperm.xlu0 %2902, %v1270
      %v2904 = vpop.permute.xlu0 %2903
      %2907 = vset.pattern.permute.xlu0 0
      %2908 = vperm.xlu0 %2907, %v1271
      %v2909 = vpop.permute.xlu0 %2908
      %2912 = vset.pattern.permute.xlu0 0
      %2913 = vperm.xlu0 %2912, %v1272
      %v2914 = vpop.permute.xlu0 %2913
      %2917 = vset.pattern.permute.xlu0 0
      %2918 = vperm.xlu0 %2917, %v1273
      %v2919 = vpop.permute.xlu0 %2918
      %2922 = vset.pattern.permute.xlu0 0
      %2923 = vperm.xlu0 %2922, %v1274
      %v2924 = vpop.permute.xlu0 %2923
      %2927 = vset.pattern.permute.xlu0 0
      %2928 = vperm.xlu0 %2927, %v1275
      %v2929 = vpop.permute.xlu0 %2928
      %2932 = vset.pattern.permute.xlu0 0
      %2933 = vperm.xlu0 %2932, %v1276
      %v2934 = vpop.permute.xlu0 %2933
      %2937 = vset.pattern.permute.xlu0 0
      %2938 = vperm.xlu0 %2937, %v1277
      %v2939 = vpop.permute.xlu0 %2938
      %2942 = vset.pattern.permute.xlu0 0
      %2943 = vperm.xlu0 %2942, %v1278
      %v2944 = vpop.permute.xlu0 %2943
      %2947 = vset.pattern.permute.xlu0 0
      %2948 = vperm.xlu0 %2947, %v1279
      %v2949 = vpop.permute.xlu0 %2948
      %2952 = vset.pattern.permute.xlu0 0
      %2953 = vperm.xlu0 %2952, %v1280
      %v2954 = vpop.permute.xlu0 %2953
      %2957 = vset.pattern.permute.xlu0 0
      %2958 = vperm.xlu0 %2957, %v1281
      %v2959 = vpop.permute.xlu0 %2958
      %2962 = vset.pattern.permute.xlu0 0
      %2963 = vperm.xlu0 %2962, %v1282
      %v2964 = vpop.permute.xlu0 %2963
      %2967 = vset.pattern.permute.xlu0 0
      %2968 = vperm.xlu0 %2967, %v1283
      %v2969 = vpop.permute.xlu0 %2968
      %2972 = vset.pattern.permute.xlu0 0
      %2973 = vperm.xlu0 %2972, %v1284
      %v2974 = vpop.permute.xlu0 %2973
      %2977 = vset.pattern.permute.xlu0 0
      %2978 = vperm.xlu0 %2977, %v1285
      %v2979 = vpop.permute.xlu0 %2978
      %v2981 = vlaneseq
      %v2982 = vshrl.u32 %v2981, 7
      %v2983 = vsub.s32 7, %v2982
      %v2984 = vrot.slane %v1287, %v2983
      %v2985 = vmul.f32 %v2904, %v2984
      %v2986 = vmul.f32 %v2909, %v2984
      %v2987 = vmul.f32 %v2914, %v2984
      %v2988 = vmul.f32 %v2919, %v2984
      %v2989 = vmul.f32 %v2924, %v2984
      %v2990 = vmul.f32 %v2929, %v2984
      %v2991 = vmul.f32 %v2934, %v2984
      %v2992 = vmul.f32 %v2939, %v2984
      %v2993 = vmul.f32 %v2944, %v2984
      %v2994 = vmul.f32 %v2949, %v2984
      %v2995 = vmul.f32 %v2954, %v2984
      %v2996 = vmul.f32 %v2959, %v2984
      %v2997 = vmul.f32 %v2964, %v2984
      %v2998 = vmul.f32 %v2969, %v2984
      %v2999 = vmul.f32 %v2974, %v2984
      %v3000 = vmul.f32 %v2979, %v2984
      %v3001 = vadd.f32 %v2885, %v2985
      %v3002 = vadd.f32 %v2886, %v2986
      %v3003 = vadd.f32 %v2887, %v2987
      %v3004 = vadd.f32 %v2888, %v2988
      %v3005 = vadd.f32 %v2889, %v2989
      %v3006 = vadd.f32 %v2890, %v2990
      %v3007 = vadd.f32 %v2891, %v2991
      %v3008 = vadd.f32 %v2892, %v2992
      %v3009 = vadd.f32 %v2893, %v2993
      %v3010 = vadd.f32 %v2894, %v2994
      %v3011 = vadd.f32 %v2895, %v2995
      %v3012 = vadd.f32 %v2896, %v2996
      %v3013 = vadd.f32 %v2897, %v2997
      %v3014 = vadd.f32 %v2898, %v2998
      %v3015 = vadd.f32 %v2899, %v2999
      %v3016 = vadd.f32 %v2900, %v3000
      %v3017 = vld [vmem:[%s269] sm:$0xff]
      %v3018 = vld [vmem:[%s269 + $0x8] sm:$0xff]
      %v3019 = vld [vmem:[%s269 + $0x10] sm:$0xff]
      %v3020 = vld [vmem:[%s269 + $0x18] sm:$0xff]
      %v3021 = vld [vmem:[%s269 + $0x20] sm:$0xff]
      %v3022 = vld [vmem:[%s269 + $0x28] sm:$0xff]
      %v3023 = vld [vmem:[%s269 + $0x30] sm:$0xff]
      %v3024 = vld [vmem:[%s269 + $0x38] sm:$0xff]
      %v3025 = vld [vmem:[%s269 + $0x40] sm:$0xff]
      %v3026 = vld [vmem:[%s269 + $0x48] sm:$0xff]
      %v3027 = vld [vmem:[%s269 + $0x50] sm:$0xff]
      %v3028 = vld [vmem:[%s269 + $0x58] sm:$0xff]
      %v3029 = vld [vmem:[%s269 + $0x60] sm:$0xff]
      %v3030 = vld [vmem:[%s269 + $0x68] sm:$0xff]
      %v3031 = vld [vmem:[%s269 + $0x70] sm:$0xff]
      %v3032 = vld [vmem:[%s269 + $0x78] sm:$0xff]
      %v3033 = vpack.c.bf16 %v3018, %v3017
      %v3034 = vpack.c.bf16 %v3020, %v3019
      %v3035 = vpack.c.bf16 %v3022, %v3021
      %v3036 = vpack.c.bf16 %v3024, %v3023
      %v3037 = vpack.c.bf16 %v3026, %v3025
      %v3038 = vpack.c.bf16 %v3028, %v3027
      %v3039 = vpack.c.bf16 %v3030, %v3029
      %v3040 = vpack.c.bf16 %v3032, %v3031
      %v3041 = vld [vmem:[%s3] sm:$0xf]
      %v3042 = vld [vmem:[%s3 + $0x4] sm:$0xf]
      %v3043 = vld [vmem:[%s3 + $0x8] sm:$0x7]
      %v3047 = vunpack.c.l.b16 %v3041
      %v3048 = vunpack.c.l.b16 %v3042
      %v3049 = vunpack.c.l.b16 %v3043
      %v3050 = vpack.c.b16 %v3048, %v3047
      %v3051 = vpack.c.b16 %v3049, %v3049
      %vm3053 = vcmask 179200
      %v3055 = vsel %vm3053, %v3033, 0
      %v3058 = vsel %vm3053, %v3034, 0
      %v3061 = vsel %vm3053, %v3035, 0
      %v3064 = vsel %vm3053, %v3036, 0
      %v3067 = vsel %vm3053, %v3037, 0
      %v3070 = vsel %vm3053, %v3038, 0
      %v3073 = vsel %vm3053, %v3039, 0
      %v3076 = vsel %vm3053, %v3040, 0
      %vm3078 = vcmask 1042432
      %v3080 = vsel %vm3078, %v3051, 0
      %3082 = vmatprep.subr.bf16.mxu0 0
      %3083 = vmatpush1.bf16.msra.mxu0 0
      %3084 = vmatprep.subr.bf16.mxu0 0
      %3085 = vmatpush1.bf16.msra.mxu0 0
      %3086 = vmatprep.subr.bf16.mxu0 0
      %3087 = vmatpush1.bf16.msra.mxu0 0
      %3088 = vmatprep.subr.bf16.mxu0 0
      %3089 = vmatpush1.bf16.msra.mxu0 0
      %3090 = vmatprep.subr.bf16.mxu0 0
      %3091 = vmatpush1.bf16.msra.mxu0 0
      %3092 = vmatprep.subr.bf16.mxu0 0
      %3093 = vmatpush1.bf16.msra.mxu0 0
      %3094 = vmatprep.subr.bf16.mxu0 0
      %3095 = vmatpush1.bf16.msra.mxu0 %v3080
      %3096 = vmatprep.subr.bf16.mxu0 0
      %3097 = vmatpush1.bf16.msra.mxu0 %v3050
      %3098 = vmatprep.subr.bf16.mxu0 0
      %3099 = vmatpush2.bf16.msra.mxu0 0
      %3100 = vmatprep.subr.bf16.mxu0 0
      %3101 = vmatpush2.bf16.msra.mxu0 0
      %3102 = vmatprep.subr.bf16.mxu0 0
      %3103 = vmatpush2.bf16.msra.mxu0 0
      %3104 = vmatprep.subr.bf16.mxu0 0
      %3105 = vmatpush2.bf16.msra.mxu0 0
      %3106 = vmatprep.subr.bf16.mxu0 0
      %3107 = vmatpush2.bf16.msra.mxu0 0
      %3108 = vmatprep.subr.bf16.mxu0 0
      %3109 = vmatpush2.bf16.msra.mxu0 0
      %3110 = vmatprep.subr.bf16.mxu0 0
      %3111 = vmatpush2.bf16.msra.mxu0 0
      %3112 = vmatprep.subr.bf16.mxu0 0
      %3113 = vmatpush2.bf16.msra.mxu0 0
      %3114 = vmatprep.mubr.bf16.mxu0 0
      %3115 = vmatmul.mubr.bf16.gmra.mxu0 %v3055
      %v3116 = vpop.f32.mrf.mxu0
      %v3117 = vadd.f32 0.0, %v3116
      %v3118 = vpop.f32.mrf.mxu0
      %v3119 = vpop.f32.mrf.mxu0
      %v3120 = vadd.f32 0.0, %v3119
      %v3121 = vpop.f32.mrf.mxu0
      %3122 = vmatprep.mubr.bf16.mxu0 0
      %3123 = vmatmul.mubr.bf16.gmra.mxu0 %v3058
      %v3124 = vpop.f32.mrf.mxu0
      %v3125 = vadd.f32 0.0, %v3124
      %v3126 = vpop.f32.mrf.mxu0
      %v3127 = vpop.f32.mrf.mxu0
      %v3128 = vadd.f32 0.0, %v3127
      %v3129 = vpop.f32.mrf.mxu0
      %3130 = vmatprep.mubr.bf16.mxu0 0
      %3131 = vmatmul.mubr.bf16.gmra.mxu0 %v3061
      %v3132 = vpop.f32.mrf.mxu0
      %v3133 = vadd.f32 0.0, %v3132
      %v3134 = vpop.f32.mrf.mxu0
      %v3135 = vpop.f32.mrf.mxu0
      %v3136 = vadd.f32 0.0, %v3135
      %v3137 = vpop.f32.mrf.mxu0
      %3138 = vmatprep.mubr.bf16.mxu0 0
      %3139 = vmatmul.mubr.bf16.gmra.mxu0 %v3064
      %v3140 = vpop.f32.mrf.mxu0
      %v3141 = vadd.f32 0.0, %v3140
      %v3142 = vpop.f32.mrf.mxu0
      %v3143 = vpop.f32.mrf.mxu0
      %v3144 = vadd.f32 0.0, %v3143
      %v3145 = vpop.f32.mrf.mxu0
      %3146 = vmatprep.mubr.bf16.mxu0 0
      %3147 = vmatmul.mubr.bf16.gmra.mxu0 %v3067
      %v3148 = vpop.f32.mrf.mxu0
      %v3149 = vadd.f32 0.0, %v3148
      %v3150 = vpop.f32.mrf.mxu0
      %v3151 = vpop.f32.mrf.mxu0
      %v3152 = vadd.f32 0.0, %v3151
      %v3153 = vpop.f32.mrf.mxu0
      %3154 = vmatprep.mubr.bf16.mxu0 0
      %3155 = vmatmul.mubr.bf16.gmra.mxu0 %v3070
      %v3156 = vpop.f32.mrf.mxu0
      %v3157 = vadd.f32 0.0, %v3156
      %v3158 = vpop.f32.mrf.mxu0
      %v3159 = vpop.f32.mrf.mxu0
      %v3160 = vadd.f32 0.0, %v3159
      %v3161 = vpop.f32.mrf.mxu0
      %3162 = vmatprep.mubr.bf16.mxu0 0
      %3163 = vmatmul.mubr.bf16.gmra.mxu0 %v3073
      %v3164 = vpop.f32.mrf.mxu0
      %v3165 = vadd.f32 0.0, %v3164
      %v3166 = vpop.f32.mrf.mxu0
      %v3167 = vpop.f32.mrf.mxu0
      %v3168 = vadd.f32 0.0, %v3167
      %v3169 = vpop.f32.mrf.mxu0
      %3170 = vmatprep.mubr.bf16.mxu0 0
      %3171 = vmatmul.mubr.bf16.gmra.mxu0 %v3076
      %v3172 = vpop.f32.mrf.mxu0
      %v3173 = vadd.f32 0.0, %v3172
      %v3174 = vpop.f32.mrf.mxu0
      %v3175 = vpop.f32.mrf.mxu0
      %v3176 = vadd.f32 0.0, %v3175
      %v3177 = vpop.f32.mrf.mxu0
      %3178 = vdwg.mxu0
      %v3179 = vadd.f32 %v3001, %v3117
      %v3180 = vadd.f32 %v3002, %v3120
      %v3181 = vadd.f32 %v3003, %v3125
      %v3182 = vadd.f32 %v3004, %v3128
      %v3183 = vadd.f32 %v3005, %v3133
      %v3184 = vadd.f32 %v3006, %v3136
      %v3185 = vadd.f32 %v3007, %v3141
      %v3186 = vadd.f32 %v3008, %v3144
      %v3187 = vadd.f32 %v3009, %v3149
      %v3188 = vadd.f32 %v3010, %v3152
      %v3189 = vadd.f32 %v3011, %v3157
      %v3190 = vadd.f32 %v3012, %v3160
      %v3191 = vadd.f32 %v3013, %v3165
      %v3192 = vadd.f32 %v3014, %v3168
      %v3193 = vadd.f32 %v3015, %v3173
      %v3194 = vadd.f32 %v3016, %v3176
      %v3195 = vmax.f32 %v3179, 0.0
      %v3196 = vmax.f32 %v3180, 0.0
      %v3197 = vmax.f32 %v3181, 0.0
      %v3198 = vmax.f32 %v3182, 0.0
      %v3199 = vmax.f32 %v3183, 0.0
      %v3200 = vmax.f32 %v3184, 0.0
      %v3201 = vmax.f32 %v3185, 0.0
      %v3202 = vmax.f32 %v3186, 0.0
      %v3203 = vmax.f32 %v3187, 0.0
      %v3204 = vmax.f32 %v3188, 0.0
      %v3205 = vmax.f32 %v3189, 0.0
      %v3206 = vmax.f32 %v3190, 0.0
      %v3207 = vmax.f32 %v3191, 0.0
      %v3208 = vmax.f32 %v3192, 0.0
      %v3209 = vmax.f32 %v3193, 0.0
      %v3210 = vmax.f32 %v3194, 0.0
      %v3211 = vpack.c.bf16 %v3196, %v3195
      %v3212 = vpack.c.bf16 %v3198, %v3197
      %v3213 = vpack.c.bf16 %v3200, %v3199
      %v3214 = vpack.c.bf16 %v3202, %v3201
      %v3215 = vpack.c.bf16 %v3204, %v3203
      %v3216 = vpack.c.bf16 %v3206, %v3205
      %v3217 = vpack.c.bf16 %v3208, %v3207
      %v3218 = vpack.c.bf16 %v3210, %v3209
      %v3219 = vld [vmem:[%s4] sm:$0xf]
      %v3220 = vld [vmem:[%s4 + $0x4] sm:$0xf]
      %v3221 = vld [vmem:[%s4 + $0x8] sm:$0xf]
      %v3222 = vld [vmem:[%s4 + $0xc] sm:$0xf]
      %v3223 = vld [vmem:[%s4 + $0x10] sm:$0xf]
      %v3224 = vld [vmem:[%s4 + $0x14] sm:$0xf]
      %v3225 = vld [vmem:[%s4 + $0x18] sm:$0xf]
      %v3226 = vld [vmem:[%s4 + $0x1c] sm:$0xf]
      %v3235 = vunpack.c.l.b16 %v3219
      %v3236 = vunpack.c.l.b16 %v3220
      %v3237 = vunpack.c.l.b16 %v3221
      %v3238 = vunpack.c.l.b16 %v3222
      %v3239 = vunpack.c.l.b16 %v3223
      %v3240 = vunpack.c.l.b16 %v3224
      %v3241 = vunpack.c.l.b16 %v3225
      %v3242 = vunpack.c.l.b16 %v3226
      %v3243 = vpack.c.b16 %v3236, %v3235
      %v3244 = vpack.c.b16 %v3238, %v3237
      %v3245 = vpack.c.b16 %v3240, %v3239
      %v3246 = vpack.c.b16 %v3242, %v3241
      %vm3251 = vcmask 523264
      %v3253 = vsel %vm3251, %v3211, 0
      %v3256 = vsel %vm3251, %v3212, 0
      %v3259 = vsel %vm3251, %v3213, 0
      %v3262 = vsel %vm3251, %v3214, 0
      %v3265 = vsel %vm3251, %v3215, 0
      %v3268 = vsel %vm3251, %v3216, 0
      %v3271 = vsel %vm3251, %v3217, 0
      %v3274 = vsel %vm3251, %v3218, 0
      %3276 = vmatprep.subr.bf16.mxu0 0
      %3277 = vmatpush1.bf16.msra.mxu0 0
      %3278 = vmatprep.subr.bf16.mxu0 0
      %3279 = vmatpush1.bf16.msra.mxu0 0
      %3280 = vmatprep.subr.bf16.mxu0 0
      %3281 = vmatpush1.bf16.msra.mxu0 0
      %3282 = vmatprep.subr.bf16.mxu0 0
      %3283 = vmatpush1.bf16.msra.mxu0 0
      %3284 = vmatprep.subr.bf16.mxu0 0
      %3285 = vmatpush1.bf16.msra.mxu0 %v3246
      %3286 = vmatprep.subr.bf16.mxu0 0
      %3287 = vmatpush1.bf16.msra.mxu0 %v3245
      %3288 = vmatprep.subr.bf16.mxu0 0
      %3289 = vmatpush1.bf16.msra.mxu0 %v3244
      %3290 = vmatprep.subr.bf16.mxu0 0
      %3291 = vmatpush1.bf16.msra.mxu0 %v3243
      %3292 = vmatprep.subr.bf16.mxu0 0
      %3293 = vmatpush2.bf16.msra.mxu0 0
      %3294 = vmatprep.subr.bf16.mxu0 0
      %3295 = vmatpush2.bf16.msra.mxu0 0
      %3296 = vmatprep.subr.bf16.mxu0 0
      %3297 = vmatpush2.bf16.msra.mxu0 0
      %3298 = vmatprep.subr.bf16.mxu0 0
      %3299 = vmatpush2.bf16.msra.mxu0 0
      %3300 = vmatprep.subr.bf16.mxu0 0
      %3301 = vmatpush2.bf16.msra.mxu0 0
      %3302 = vmatprep.subr.bf16.mxu0 0
      %3303 = vmatpush2.bf16.msra.mxu0 0
      %3304 = vmatprep.subr.bf16.mxu0 0
      %3305 = vmatpush2.bf16.msra.mxu0 0
      %3306 = vmatprep.subr.bf16.mxu0 0
      %3307 = vmatpush2.bf16.msra.mxu0 0
      %3308 = vmatprep.mubr.bf16.mxu0 0
      %3309 = vmatmul.mubr.bf16.gmra.mxu0 %v3253
      %v3310 = vpop.f32.mrf.mxu0
      %v3311 = vadd.f32 0.0, %v3310
      %v3312 = vpop.f32.mrf.mxu0
      %v3313 = vpop.f32.mrf.mxu0
      %v3314 = vadd.f32 0.0, %v3313
      %v3315 = vpop.f32.mrf.mxu0
      %3316 = vmatprep.mubr.bf16.mxu0 0
      %3317 = vmatmul.mubr.bf16.gmra.mxu0 %v3256
      %v3318 = vpop.f32.mrf.mxu0
      %v3319 = vadd.f32 0.0, %v3318
      %v3320 = vpop.f32.mrf.mxu0
      %v3321 = vpop.f32.mrf.mxu0
      %v3322 = vadd.f32 0.0, %v3321
      %v3323 = vpop.f32.mrf.mxu0
      %3324 = vmatprep.mubr.bf16.mxu0 0
      %3325 = vmatmul.mubr.bf16.gmra.mxu0 %v3259
      %v3326 = vpop.f32.mrf.mxu0
      %v3327 = vadd.f32 0.0, %v3326
      %v3328 = vpop.f32.mrf.mxu0
      %v3329 = vpop.f32.mrf.mxu0
      %v3330 = vadd.f32 0.0, %v3329
      %v3331 = vpop.f32.mrf.mxu0
      %3332 = vmatprep.mubr.bf16.mxu0 0
      %3333 = vmatmul.mubr.bf16.gmra.mxu0 %v3262
      %v3334 = vpop.f32.mrf.mxu0
      %v3335 = vadd.f32 0.0, %v3334
      %v3336 = vpop.f32.mrf.mxu0
      %v3337 = vpop.f32.mrf.mxu0
      %v3338 = vadd.f32 0.0, %v3337
      %v3339 = vpop.f32.mrf.mxu0
      %3340 = vmatprep.mubr.bf16.mxu0 0
      %3341 = vmatmul.mubr.bf16.gmra.mxu0 %v3265
      %v3342 = vpop.f32.mrf.mxu0
      %v3343 = vadd.f32 0.0, %v3342
      %v3344 = vpop.f32.mrf.mxu0
      %v3345 = vpop.f32.mrf.mxu0
      %v3346 = vadd.f32 0.0, %v3345
      %v3347 = vpop.f32.mrf.mxu0
      %3348 = vmatprep.mubr.bf16.mxu0 0
      %3349 = vmatmul.mubr.bf16.gmra.mxu0 %v3268
      %v3350 = vpop.f32.mrf.mxu0
      %v3351 = vadd.f32 0.0, %v3350
      %v3352 = vpop.f32.mrf.mxu0
      %v3353 = vpop.f32.mrf.mxu0
      %v3354 = vadd.f32 0.0, %v3353
      %v3355 = vpop.f32.mrf.mxu0
      %3356 = vmatprep.mubr.bf16.mxu0 0
      %3357 = vmatmul.mubr.bf16.gmra.mxu0 %v3271
      %v3358 = vpop.f32.mrf.mxu0
      %v3359 = vadd.f32 0.0, %v3358
      %v3360 = vpop.f32.mrf.mxu0
      %v3361 = vpop.f32.mrf.mxu0
      %v3362 = vadd.f32 0.0, %v3361
      %v3363 = vpop.f32.mrf.mxu0
      %3364 = vmatprep.mubr.bf16.mxu0 0
      %3365 = vmatmul.mubr.bf16.gmra.mxu0 %v3274
      %v3366 = vpop.f32.mrf.mxu0
      %v3367 = vadd.f32 0.0, %v3366
      %v3368 = vpop.f32.mrf.mxu0
      %v3369 = vpop.f32.mrf.mxu0
      %v3370 = vadd.f32 0.0, %v3369
      %v3371 = vpop.f32.mrf.mxu0
      %3372 = vdwg.mxu0
      %v3373 = vmax.f32 %v3311, 0.0
      %v3374 = vmax.f32 %v3314, 0.0
      %v3375 = vmax.f32 %v3319, 0.0
      %v3376 = vmax.f32 %v3322, 0.0
      %v3377 = vmax.f32 %v3327, 0.0
      %v3378 = vmax.f32 %v3330, 0.0
      %v3379 = vmax.f32 %v3335, 0.0
      %v3380 = vmax.f32 %v3338, 0.0
      %v3381 = vmax.f32 %v3343, 0.0
      %v3382 = vmax.f32 %v3346, 0.0
      %v3383 = vmax.f32 %v3351, 0.0
      %v3384 = vmax.f32 %v3354, 0.0
      %v3385 = vmax.f32 %v3359, 0.0
      %v3386 = vmax.f32 %v3362, 0.0
      %v3387 = vmax.f32 %v3367, 0.0
      %v3388 = vmax.f32 %v3370, 0.0
      %v3389 = vpack.c.bf16 %v3374, %v3373
      %v3390 = vpack.c.bf16 %v3376, %v3375
      %v3391 = vpack.c.bf16 %v3378, %v3377
      %v3392 = vpack.c.bf16 %v3380, %v3379
      %v3393 = vpack.c.bf16 %v3382, %v3381
      %v3394 = vpack.c.bf16 %v3384, %v3383
      %v3395 = vpack.c.bf16 %v3386, %v3385
      %v3396 = vpack.c.bf16 %v3388, %v3387
      %v3397 = vld [vmem:[%s5] sm:$0xf]
      %v3398 = vld [vmem:[%s5 + $0x4] sm:$0xf]
      %v3399 = vld [vmem:[%s5 + $0x8] sm:$0xf]
      %v3400 = vld [vmem:[%s5 + $0xc] sm:$0xf]
      %v3401 = vld [vmem:[%s5 + $0x10] sm:$0xf]
      %v3402 = vld [vmem:[%s5 + $0x14] sm:$0xf]
      %v3403 = vld [vmem:[%s5 + $0x18] sm:$0xf]
      %v3404 = vld [vmem:[%s5 + $0x1c] sm:$0xf]
      %v3413 = vunpack.c.l.b16 %v3397
      %v3414 = vunpack.c.l.b16 %v3398
      %v3415 = vunpack.c.l.b16 %v3399
      %v3416 = vunpack.c.l.b16 %v3400
      %v3417 = vunpack.c.l.b16 %v3401
      %v3418 = vunpack.c.l.b16 %v3402
      %v3419 = vunpack.c.l.b16 %v3403
      %v3420 = vunpack.c.l.b16 %v3404
      %v3421 = vpack.c.b16 %v3414, %v3413
      %v3422 = vpack.c.b16 %v3416, %v3415
      %v3423 = vpack.c.b16 %v3418, %v3417
      %v3424 = vpack.c.b16 %v3420, %v3419
      %v3430 = vsel %vm3251, %v3389, 0
      %v3433 = vsel %vm3251, %v3390, 0
      %v3436 = vsel %vm3251, %v3391, 0
      %v3439 = vsel %vm3251, %v3392, 0
      %v3442 = vsel %vm3251, %v3393, 0
      %v3445 = vsel %vm3251, %v3394, 0
      %v3448 = vsel %vm3251, %v3395, 0
      %v3451 = vsel %vm3251, %v3396, 0
      %3453 = vmatprep.subr.bf16.mxu0 0
      %3454 = vmatpush1.bf16.msra.mxu0 0
      %3455 = vmatprep.subr.bf16.mxu0 0
      %3456 = vmatpush1.bf16.msra.mxu0 0
      %3457 = vmatprep.subr.bf16.mxu0 0
      %3458 = vmatpush1.bf16.msra.mxu0 0
      %3459 = vmatprep.subr.bf16.mxu0 0
      %3460 = vmatpush1.bf16.msra.mxu0 0
      %3461 = vmatprep.subr.bf16.mxu0 0
      %3462 = vmatpush1.bf16.msra.mxu0 %v3424
      %3463 = vmatprep.subr.bf16.mxu0 0
      %3464 = vmatpush1.bf16.msra.mxu0 %v3423
      %3465 = vmatprep.subr.bf16.mxu0 0
      %3466 = vmatpush1.bf16.msra.mxu0 %v3422
      %3467 = vmatprep.subr.bf16.mxu0 0
      %3468 = vmatpush1.bf16.msra.mxu0 %v3421
      %3469 = vmatprep.subr.bf16.mxu0 0
      %3470 = vmatpush2.bf16.msra.mxu0 0
      %3471 = vmatprep.subr.bf16.mxu0 0
      %3472 = vmatpush2.bf16.msra.mxu0 0
      %3473 = vmatprep.subr.bf16.mxu0 0
      %3474 = vmatpush2.bf16.msra.mxu0 0
      %3475 = vmatprep.subr.bf16.mxu0 0
      %3476 = vmatpush2.bf16.msra.mxu0 0
      %3477 = vmatprep.subr.bf16.mxu0 0
      %3478 = vmatpush2.bf16.msra.mxu0 0
      %3479 = vmatprep.subr.bf16.mxu0 0
      %3480 = vmatpush2.bf16.msra.mxu0 0
      %3481 = vmatprep.subr.bf16.mxu0 0
      %3482 = vmatpush2.bf16.msra.mxu0 0
      %3483 = vmatprep.subr.bf16.mxu0 0
      %3484 = vmatpush2.bf16.msra.mxu0 0
      %3485 = vmatprep.mubr.bf16.mxu0 0
      %3486 = vmatmul.mubr.bf16.gmra.mxu0 %v3430
      %v3487 = vpop.f32.mrf.mxu0
      %v3488 = vadd.f32 0.0, %v3487
      %v3489 = vpop.f32.mrf.mxu0
      %v3490 = vpop.f32.mrf.mxu0
      %v3491 = vadd.f32 0.0, %v3490
      %v3492 = vpop.f32.mrf.mxu0
      %3493 = vmatprep.mubr.bf16.mxu0 0
      %3494 = vmatmul.mubr.bf16.gmra.mxu0 %v3433
      %v3495 = vpop.f32.mrf.mxu0
      %v3496 = vadd.f32 0.0, %v3495
      %v3497 = vpop.f32.mrf.mxu0
      %v3498 = vpop.f32.mrf.mxu0
      %v3499 = vadd.f32 0.0, %v3498
      %v3500 = vpop.f32.mrf.mxu0
      %3501 = vmatprep.mubr.bf16.mxu0 0
      %3502 = vmatmul.mubr.bf16.gmra.mxu0 %v3436
      %v3503 = vpop.f32.mrf.mxu0
      %v3504 = vadd.f32 0.0, %v3503
      %v3505 = vpop.f32.mrf.mxu0
      %v3506 = vpop.f32.mrf.mxu0
      %v3507 = vadd.f32 0.0, %v3506
      %v3508 = vpop.f32.mrf.mxu0
      %3509 = vmatprep.mubr.bf16.mxu0 0
      %3510 = vmatmul.mubr.bf16.gmra.mxu0 %v3439
      %v3511 = vpop.f32.mrf.mxu0
      %v3512 = vadd.f32 0.0, %v3511
      %v3513 = vpop.f32.mrf.mxu0
      %v3514 = vpop.f32.mrf.mxu0
      %v3515 = vadd.f32 0.0, %v3514
      %v3516 = vpop.f32.mrf.mxu0
      %3517 = vmatprep.mubr.bf16.mxu0 0
      %3518 = vmatmul.mubr.bf16.gmra.mxu0 %v3442
      %v3519 = vpop.f32.mrf.mxu0
      %v3520 = vadd.f32 0.0, %v3519
      %v3521 = vpop.f32.mrf.mxu0
      %v3522 = vpop.f32.mrf.mxu0
      %v3523 = vadd.f32 0.0, %v3522
      %v3524 = vpop.f32.mrf.mxu0
      %3525 = vmatprep.mubr.bf16.mxu0 0
      %3526 = vmatmul.mubr.bf16.gmra.mxu0 %v3445
      %v3527 = vpop.f32.mrf.mxu0
      %v3528 = vadd.f32 0.0, %v3527
      %v3529 = vpop.f32.mrf.mxu0
      %v3530 = vpop.f32.mrf.mxu0
      %v3531 = vadd.f32 0.0, %v3530
      %v3532 = vpop.f32.mrf.mxu0
      %3533 = vmatprep.mubr.bf16.mxu0 0
      %3534 = vmatmul.mubr.bf16.gmra.mxu0 %v3448
      %v3535 = vpop.f32.mrf.mxu0
      %v3536 = vadd.f32 0.0, %v3535
      %v3537 = vpop.f32.mrf.mxu0
      %v3538 = vpop.f32.mrf.mxu0
      %v3539 = vadd.f32 0.0, %v3538
      %v3540 = vpop.f32.mrf.mxu0
      %3541 = vmatprep.mubr.bf16.mxu0 0
      %3542 = vmatmul.mubr.bf16.gmra.mxu0 %v3451
      %v3543 = vpop.f32.mrf.mxu0
      %v3544 = vadd.f32 0.0, %v3543
      %v3545 = vpop.f32.mrf.mxu0
      %v3546 = vpop.f32.mrf.mxu0
      %v3547 = vadd.f32 0.0, %v3546
      %v3548 = vpop.f32.mrf.mxu0
      %3549 = vdwg.mxu0
      %v3550 = vxor.u32 %v3488, 2147483648
      %v3551 = vxor.u32 %v3491, 2147483648
      %v3552 = vxor.u32 %v3496, 2147483648
      %v3553 = vxor.u32 %v3499, 2147483648
      %v3554 = vxor.u32 %v3504, 2147483648
      %v3555 = vxor.u32 %v3507, 2147483648
      %v3556 = vxor.u32 %v3512, 2147483648
      %v3557 = vxor.u32 %v3515, 2147483648
      %v3558 = vxor.u32 %v3520, 2147483648
      %v3559 = vxor.u32 %v3523, 2147483648
      %v3560 = vxor.u32 %v3528, 2147483648
      %v3561 = vxor.u32 %v3531, 2147483648
      %v3562 = vxor.u32 %v3536, 2147483648
      %v3563 = vxor.u32 %v3539, 2147483648
      %v3564 = vxor.u32 %v3544, 2147483648
      %v3565 = vxor.u32 %v3547, 2147483648
      %v3566 = vmul.f32 %v3550, 1.442695
      %v3567 = vpow.pop %v3566
      %v3568 = vmul.f32 %v3551, 1.442695
      %v3569 = vpow.pop %v3568
      %v3570 = vmul.f32 %v3552, 1.442695
      %v3571 = vpow.pop %v3570
      %v3572 = vmul.f32 %v3553, 1.442695
      %v3573 = vpow.pop %v3572
      %v3574 = vmul.f32 %v3554, 1.442695
      %v3575 = vpow.pop %v3574
      %v3576 = vmul.f32 %v3555, 1.442695
      %v3577 = vpow.pop %v3576
      %v3578 = vmul.f32 %v3556, 1.442695
      %v3579 = vpow.pop %v3578
      %v3580 = vmul.f32 %v3557, 1.442695
      %v3581 = vpow.pop %v3580
      %v3582 = vmul.f32 %v3558, 1.442695
      %v3583 = vpow.pop %v3582
      %v3584 = vmul.f32 %v3559, 1.442695
      %v3585 = vpow.pop %v3584
      %v3586 = vmul.f32 %v3560, 1.442695
      %v3587 = vpow.pop %v3586
      %v3588 = vmul.f32 %v3561, 1.442695
      %v3589 = vpow.pop %v3588
      %v3590 = vmul.f32 %v3562, 1.442695
      %v3591 = vpow.pop %v3590
      %v3592 = vmul.f32 %v3563, 1.442695
      %v3593 = vpow.pop %v3592
      %v3594 = vmul.f32 %v3564, 1.442695
      %v3595 = vpow.pop %v3594
      %v3596 = vmul.f32 %v3565, 1.442695
      %v3597 = vpow.pop %v3596
      %v3598 = vadd.f32 %v3567, 1.0
      %v3599 = vadd.f32 %v3569, 1.0
      %v3600 = vadd.f32 %v3571, 1.0
      %v3601 = vadd.f32 %v3573, 1.0
      %v3602 = vadd.f32 %v3575, 1.0
      %v3603 = vadd.f32 %v3577, 1.0
      %v3604 = vadd.f32 %v3579, 1.0
      %v3605 = vadd.f32 %v3581, 1.0
      %v3606 = vadd.f32 %v3583, 1.0
      %v3607 = vadd.f32 %v3585, 1.0
      %v3608 = vadd.f32 %v3587, 1.0
      %v3609 = vadd.f32 %v3589, 1.0
      %v3610 = vadd.f32 %v3591, 1.0
      %v3611 = vadd.f32 %v3593, 1.0
      %v3612 = vadd.f32 %v3595, 1.0
      %v3613 = vadd.f32 %v3597, 1.0
      %v3614 = vrcp.pop %v3598
      %v3615 = vmul.f32 1.0, %v3614
      %v3616 = vrcp.pop %v3599
      %v3617 = vmul.f32 1.0, %v3616
      %v3618 = vrcp.pop %v3600
      %v3619 = vmul.f32 1.0, %v3618
      %v3620 = vrcp.pop %v3601
      %v3621 = vmul.f32 1.0, %v3620
      %v3622 = vrcp.pop %v3602
      %v3623 = vmul.f32 1.0, %v3622
      %v3624 = vrcp.pop %v3603
      %v3625 = vmul.f32 1.0, %v3624
      %v3626 = vrcp.pop %v3604
      %v3627 = vmul.f32 1.0, %v3626
      %v3628 = vrcp.pop %v3605
      %v3629 = vmul.f32 1.0, %v3628
      %v3630 = vrcp.pop %v3606
      %v3631 = vmul.f32 1.0, %v3630
      %v3632 = vrcp.pop %v3607
      %v3633 = vmul.f32 1.0, %v3632
      %v3634 = vrcp.pop %v3608
      %v3635 = vmul.f32 1.0, %v3634
      %v3636 = vrcp.pop %v3609
      %v3637 = vmul.f32 1.0, %v3636
      %v3638 = vrcp.pop %v3610
      %v3639 = vmul.f32 1.0, %v3638
      %v3640 = vrcp.pop %v3611
      %v3641 = vmul.f32 1.0, %v3640
      %v3642 = vrcp.pop %v3612
      %v3643 = vmul.f32 1.0, %v3642
      %v3644 = vrcp.pop %v3613
      %v3645 = vmul.f32 1.0, %v3644
      %vm3646 = vcmask 23552
      %3647 = vst.msk [vmem:[%s275] sm:$0xff] %vm3646, %v3615
      %3648 = vst.msk [vmem:[%s275 + $0x8] sm:$0xff] %vm3646, %v3617
      %3649 = vst.msk [vmem:[%s275 + $0x10] sm:$0xff] %vm3646, %v3619
      %3650 = vst.msk [vmem:[%s275 + $0x18] sm:$0xff] %vm3646, %v3621
      %3651 = vst.msk [vmem:[%s275 + $0x20] sm:$0xff] %vm3646, %v3623
      %3652 = vst.msk [vmem:[%s275 + $0x28] sm:$0xff] %vm3646, %v3625
      %3653 = vst.msk [vmem:[%s275 + $0x30] sm:$0xff] %vm3646, %v3627
      %3654 = vst.msk [vmem:[%s275 + $0x38] sm:$0xff] %vm3646, %v3629
      %3655 = vst.msk [vmem:[%s275 + $0x40] sm:$0xff] %vm3646, %v3631
      %3656 = vst.msk [vmem:[%s275 + $0x48] sm:$0xff] %vm3646, %v3633
      %3657 = vst.msk [vmem:[%s275 + $0x50] sm:$0xff] %vm3646, %v3635
      %3658 = vst.msk [vmem:[%s275 + $0x58] sm:$0xff] %vm3646, %v3637
      %3659 = vst.msk [vmem:[%s275 + $0x60] sm:$0xff] %vm3646, %v3639
      %3660 = vst.msk [vmem:[%s275 + $0x68] sm:$0xff] %vm3646, %v3641
      %3661 = vst.msk [vmem:[%s275 + $0x70] sm:$0xff] %vm3646, %v3643
      %3662 = vst.msk [vmem:[%s275 + $0x78] sm:$0xff] %vm3646, %v3645
      %s3663 = smul.u32 16, %s17
      %p3664 = scmp.lt.s32.totalorder %s3663, 47
      %s3665 = scalar_select %p3664, %s3663, 47
      %s3666 = smul.addr %s3665, 8
      %s3667 = scalar_lea.vmem %s6, %s3666
      // Predicated region
      $region45: #{rgb_network_forward.1} parent=43 // pred_check
        %p3668 = pneg %p171
      $region46: #{rgb_network_forward.1} parent=43 // pred_check_branch
        %3670 = sbr.rel (%p3668) target = $region48
      $region47: #{rgb_network_forward.1} parent=43 // pred_region
        %s3671 = smul.u32 16, %s17
      $region48: #{rgb_network_forward.1} parent=43 // pred_fallthru
        _
    $region44: #{rgb_network_forward.1} parent=5 // pred_fallthru
      _
    %p3672 = scmp.le.s32.totalorder 2, %s12
    // Predicated region
    $region49: #{rgb_network_forward.1} parent=5 // pred_check
      %p3673 = pneg %p3672
    $region50: #{rgb_network_forward.1} parent=5 // pred_check_branch
      %3675 = sbr.rel (%p3673) target = $region52
    $region51: #{rgb_network_forward.1} parent=5 // pred_region
      %s3676 = ssub.s32 %s12, 2
      // Predicated region
      $region53: #{rgb_network_forward.1} parent=51 // pred_check
        %p3677 = pneg %p177
      $region54: #{rgb_network_forward.1} parent=51 // pred_check_branch
        %3679 = sbr.rel (%p3677) target = $region56
      $region55: #{rgb_network_forward.1} parent=51 // pred_region
        %s3680 = smul.u32 16, %s18
        %p3681 = scmp.lt.s32.totalorder %s3680, 47
        %s3682 = scalar_select %p3681, %s3680, 47
        %s3683 = smul.addr %s3682, 8
        %s3684 = scalar_lea.vmem %s6, %s3683
      $region56: #{rgb_network_forward.1} parent=51 // pred_fallthru
        _
    $region52: #{rgb_network_forward.1} parent=5 // pred_fallthru
      _
  $region6: #{rgb_network_forward.1} parent=0 // loop_footer
    %s16 = sadd.s32 1, %s12
  $region7: #{rgb_network_forward.1} parent=0 // loop_footer_branch
    %11 = sbr.rel target = $region3
  $region8: #{rgb_network_forward.1} parent=0 // loop_exit
    _

</llo_original>
